<compile_context>
chip_gen: v5e
topology: v5e:2x2
jax: 0.10.0
libtpu: 0.0.40
codegen_flags: <defaults>
</compile_context>

<pallas_src>
import jax
import jax.numpy as jnp
from jax import lax
from jax.experimental import pallas as pl
from jax.experimental.pallas import tpu as pltpu

# (fan_in, fan_out) of each Linear layer, in order.
LAYER_DIMS = [(4, 16), (16, 32), (32, 64), (64, 32), (32, 16), (16, 7)]
N_LAYERS = len(LAYER_DIMS)
IN_DIM = LAYER_DIMS[0][0]        # 4
OUT_DIM = LAYER_DIMS[-1][1]      # 7
PAD = 64                         # padded feature width (max layer width)
CHUNK = 256                      # batch rows per inner compute chunk (lanes)
_PRECISION = jax.lax.Precision.HIGHEST


def _round_up(x, m):
    return (x + m - 1) // m * m


def _mlp_kernel(x_ref, w_ref, bc_ref, bl_ref, o_ref):
    """Fused forward for one batch tile.

    x_ref:  (BT, 4)      batch-major input tile
    w_ref:  (6, 64, 64)  zero-padded weights, w_ref[l] is (out, in)
    bc_ref: (64, 6)      zero-padded per-layer bias columns
    bl_ref: (1, 8)       last-layer bias row (entry 7 is zero padding)
    o_ref:  (BT, 7)      batch-major output tile
    """
    n_chunks = x_ref.shape[0] // CHUNK

    def chunk_body(c, carry):
        off = pl.multiple_of(c * CHUNK, CHUNK)
        xc = x_ref[pl.ds(off, CHUNK), :]                        # (CHUNK, 4)

        # Layer 0: flip to feature-major on the MXU (A @ B^T pattern):
        # h = W0 @ xc^T -> (64, CHUNK).  Padded weight/bias rows are zero, so
        # the padded activation rows stay exactly zero through the chain.
        h = lax.dot_general(
            w_ref[0, :, :IN_DIM], xc,
            (((1,), (1,)), ((), ())),
            preferred_element_type=jnp.float32, precision=_PRECISION)
        h = jnp.maximum(h + bc_ref[:, 0:1], 0.0)

        # Layers 1..4: uniform zero-padded (64, 64) feature-major matmuls with
        # the batch on the 256-wide lane axis (wide MXU N), bias+ReLU fused.
        for li in range(1, N_LAYERS - 1):
            h = lax.dot_general(
                w_ref[li], h,
                (((1,), (0,)), ((), ())),
                preferred_element_type=jnp.float32, precision=_PRECISION)
            h = jnp.maximum(h + bc_ref[:, li:li + 1], 0.0)

        # Layer 5 (no ReLU): small feature-major matmul, then flip back to
        # batch-major in-kernel so the kernel stores the (CHUNK, 7) slab
        # directly (no wrapper-side transpose / extra HBM traffic).
        y = lax.dot_general(
            w_ref[N_LAYERS - 1, :8, :], h,
            (((1,), (0,)), ((), ())),
            preferred_element_type=jnp.float32, precision=_PRECISION)   # (8, CHUNK)
        out = jnp.transpose(y) + bl_ref[...]                             # (CHUNK, 8)
        o_ref[pl.ds(off, CHUNK), :] = out[:, :OUT_DIM].astype(o_ref.dtype)
        return carry

    lax.fori_loop(0, n_chunks, chunk_body, 0)


def pack_params(params):
    """Pack per-layer (W, b) into padded, kernel-resident buffers.

    params: list of (W, b) with W of shape (out, in) (torch.nn.Linear layout)
            and b of shape (out,).
    Returns:
      w_stack: (6, 64, 64) f32, w_stack[l, :out, :in] = W_l, rest zero.
      b_cols:  (64, 6)     f32, b_cols[:out, l]  = b_l, rest zero.
      b_last:  (1, 8)      f32, b_last[0, :7]    = b_5, rest zero.
    """
    ws, bs = [], []
    for (w, b), (fan_in, fan_out) in zip(params, LAYER_DIMS):
        w = jnp.asarray(w, jnp.float32)
        b = jnp.asarray(b, jnp.float32)
        assert w.shape == (fan_out, fan_in), w.shape
        assert b.shape == (fan_out,), b.shape
        ws.append(jnp.pad(w, ((0, PAD - fan_out), (0, PAD - fan_in))))
        bs.append(jnp.pad(b, (0, PAD - fan_out)))
    w_stack = jnp.stack(ws)                         # (6, 64, 64)
    b_cols = jnp.stack(bs, axis=1)                  # (64, 6)
    b_last = jnp.pad(jnp.asarray(params[-1][1], jnp.float32),
                     (0, 8 - OUT_DIM)).reshape(1, 8)
    return w_stack, b_cols, b_last


def _vmem_limit_bytes(batch_tile):
    # (BT, 4) / (BT, 7) f32 blocks are lane-padded to 128 in VMEM and
    # double-buffered by the pipeline: 2 blocks * 2 buffers * BT * 128 * 4 B.
    io = 4 * batch_tile * 128 * 4
    resident = 1 << 20            # packed weights/biases incl. layout padding
    headroom = 8 << 20            # spills / compiler scratch
    return min(io + resident + headroom, 56 * 1024 * 1024)   # < v7x 64 MiB


def simple_action_reward(state, params, *, batch_tile=4096):
    """Fused MLP forward.

    state:  [B, 4] float array (any B; batch padding handled internally).
    params: list of (W, b) with W of shape (out, in) and b of shape (out,).
    Returns [B, 7] float32.
    """
    B, in_dim = state.shape
    assert in_dim == IN_DIM

    # The batch tile is the sublane dim of the batch-major I/O blocks; it must
    # be a multiple of the inner compute CHUNK.
    batch_tile = max(CHUNK, _round_up(int(batch_tile), CHUNK))
    b_pad = _round_up(B, CHUNK)
    if b_pad <= batch_tile:
        batch_tile = b_pad                      # small batch: shrink the tile
    b_pad = _round_up(B, batch_tile)
    # Keep >= 2 grid steps when the batch allows it so the "parallel" grid
    # axis can shard across the 2 TensorCores of a v7x chip.
    if b_pad == batch_tile and batch_tile >= 2 * CHUNK:
        batch_tile = _round_up(batch_tile // 2, CHUNK)
        b_pad = 2 * batch_tile

    w_stack, b_cols, b_last = pack_params(params)

    x = state.astype(jnp.float32)
    if b_pad != B:
        # Only batch padding remains wrapper-side (no transposes / relayouts).
        x = jnp.pad(x, ((0, b_pad - B), (0, 0)))

    grid = (b_pad // batch_tile,)

    out = pl.pallas_call(
        _mlp_kernel,
        out_shape=jax.ShapeDtypeStruct((b_pad, OUT_DIM), jnp.float32),
        grid_spec=pltpu.PrefetchScalarGridSpec(
            num_scalar_prefetch=0,
            grid=grid,
            in_specs=[
                # Streaming batch-major input blocks.
                pl.BlockSpec((batch_tile, IN_DIM), lambda i: (i, 0)),
                # Resident packed weights / biases: full-array blocks whose
                # block index never changes -> DMA'd once, stay in VMEM.
                pl.BlockSpec(w_stack.shape, lambda i: (0, 0, 0)),
                pl.BlockSpec(b_cols.shape, lambda i: (0, 0)),
                pl.BlockSpec(b_last.shape, lambda i: (0, 0)),
            ],
            out_specs=pl.BlockSpec((batch_tile, OUT_DIM), lambda i: (i, 0)),
        ),
        compiler_params=pltpu.CompilerParams(
            dimension_semantics=("parallel",),
            vmem_limit_bytes=_vmem_limit_bytes(batch_tile)),
    )(x, w_stack, b_cols, b_last)

    return out[:B]


def init_params(key):
    """torch.nn.Linear default init: U(-1/sqrt(fan_in), +1/sqrt(fan_in))."""
    params = []
    for fan_in, fan_out in LAYER_DIMS:
        key, kw, kb = jax.random.split(key, 3)
        bound = 1.0 / jnp.sqrt(float(fan_in))
        w = jax.random.uniform(kw, (fan_out, fan_in), jnp.float32, -bound, bound)
        b = jax.random.uniform(kb, (fan_out,), jnp.float32, -bound, bound)
        params.append((w, b))
    return params


def reference_forward(state, params):
    """Plain-JAX reference matching the PyTorch module (true f32 matmuls)."""
    h = state.astype(jnp.float32)
    for li, (w, b) in enumerate(params):
        h = jnp.dot(h, w.T, precision=_PRECISION) + b
        if li < len(params) - 1:
            h = jnp.maximum(h, 0.0)
    return h


if __name__ == "__main__":
    key = jax.random.PRNGKey(0)
    key, k1, k2, k3 = jax.random.split(key, 4)
    params = init_params(key)

    # 1) Non-tile-aligned batch, explicit tile -> 2 grid steps, 1 chunk/step.
    s1 = jax.random.normal(k1, (300, IN_DIM), jnp.float32)
    o1 = jax.block_until_ready(simple_action_reward(s1, params, batch_tile=512))
    r1 = reference_forward(s1, params)
    assert o1.shape == (300, OUT_DIM), o1.shape
    assert jnp.allclose(o1, r1, atol=1e-5, rtol=1e-5), (
        f"max abs err {jnp.max(jnp.abs(o1 - r1))}")

    # 2) Tiny batch, default tile -> single 256-row tile, single chunk.
    s2 = jax.random.normal(k2, (8, IN_DIM), jnp.float32)
    o2 = jax.block_until_ready(simple_action_reward(s2, params))
    r2 = reference_forward(s2, params)
    assert o2.shape == (8, OUT_DIM), o2.shape
    assert jnp.allclose(o2, r2, atol=1e-5, rtol=1e-5), (
        f"max abs err {jnp.max(jnp.abs(o2 - r2))}")

    # 3) Exercises the inner chunk loop (2 chunks/tile) and the 2-step split
    #    of a single-tile batch (batch_tile 1024 -> 2 x 512-row tiles).
    s3 = jax.random.normal(k3, (1000, IN_DIM), jnp.float32)
    o3 = jax.block_until_ready(simple_action_reward(s3, params, batch_tile=1024))
    r3 = reference_forward(s3, params)
    assert o3.shape == (1000, OUT_DIM), o3.shape
    assert jnp.allclose(o3, r3, atol=1e-5, rtol=1e-5), (
        f"max abs err {jnp.max(jnp.abs(o3 - r3))}")

    print("KERNEL_OK")
</pallas_src>

<mosaic_0001>
module attributes {stable_mosaic.version = 11 : i64} {
  func.func @_mlp_kernel(%arg0: i32, %arg1: memref<256x4xf32, #tpu.memory_space<vmem>>, %arg2: memref<6x64x64xf32, #tpu.memory_space<vmem>>, %arg3: memref<64x6xf32, #tpu.memory_space<vmem>>, %arg4: memref<1x8xf32, #tpu.memory_space<vmem>>, %arg5: memref<256x7xf32, #tpu.memory_space<vmem>>) attributes {dimension_semantics = [#tpu.dimension_semantics<parallel>], iteration_bounds = array<i64: 2>, scalar_prefetch = 0 : i64, scratch_operands = 0 : i64, tpu.core_type = #tpu.core_type<tc>, window_params = [{transform_indices = @transform_0, window_bounds = array<i64: 256, 4>}, {pipeline_mode = #tpu.pipeline_mode<synchronous>, transform_indices = @transform_1, window_bounds = array<i64: 6, 64, 64>}, {pipeline_mode = #tpu.pipeline_mode<synchronous>, transform_indices = @transform_2, window_bounds = array<i64: 64, 6>}, {pipeline_mode = #tpu.pipeline_mode<synchronous>, transform_indices = @transform_3, window_bounds = array<i64: 1, 8>}, {transform_indices = @transform_4, window_bounds = array<i64: 256, 7>}]} {
    %c0_i32 = arith.constant 0 : i32
    %c256_i32 = arith.constant 256 : i32
    %0 = arith.muli %c0_i32, %c256_i32 : i32
    %1 = tpu.assume_multiple %0, 256 : i32
    %2 = arith.index_cast %1 : i32 to index
    %c0 = arith.constant 0 : index
    %3 = vector.load %arg1[%2, %c0] : memref<256x4xf32, #tpu.memory_space<vmem>>, vector<256x4xf32>
    %c0_0 = arith.constant 0 : index
    %c0_1 = arith.constant 0 : index
    %c0_2 = arith.constant 0 : index
    %4 = vector.load %arg2[%c0_0, %c0_1, %c0_2] : memref<6x64x64xf32, #tpu.memory_space<vmem>>, vector<1x64x4xf32>
    %5 = vector.shape_cast %4 : vector<1x64x4xf32> to vector<64x4xf32>
    %cst = arith.constant dense<0.000000e+00> : vector<64x256xf32>
    %6 = tpu.matmul %5, %3, %cst {dimension_numbers = #tpu.dot_dimension_numbers<[1], [1], [0], [0], [0, 0, 1, 0], [], []>, precision = #tpu.contract_precision<fp32>} : vector<64x4xf32>, vector<256x4xf32>, vector<64x256xf32> -> vector<64x256xf32>
    %c0_3 = arith.constant 0 : index
    %c0_4 = arith.constant 0 : index
    %7 = vector.load %arg3[%c0_3, %c0_4] : memref<64x6xf32, #tpu.memory_space<vmem>>, vector<64x1xf32>
    %8 = vector.broadcast %7 : vector<64x1xf32> to vector<64x256xf32>
    %9 = arith.addf %6, %8 : vector<64x256xf32>
    %cst_5 = arith.constant 0.000000e+00 : f32
    %10 = vector.broadcast %cst_5 : f32 to vector<64x256xf32>
    %11 = arith.maximumf %9, %10 : vector<64x256xf32>
    %c1 = arith.constant 1 : index
    %c0_6 = arith.constant 0 : index
    %c0_7 = arith.constant 0 : index
    %12 = vector.load %arg2[%c1, %c0_6, %c0_7] : memref<6x64x64xf32, #tpu.memory_space<vmem>>, vector<1x64x64xf32>
    %13 = vector.shape_cast %12 : vector<1x64x64xf32> to vector<64x64xf32>
    %cst_8 = arith.constant dense<0.000000e+00> : vector<64x256xf32>
    %14 = tpu.matmul %13, %11, %cst_8 {dimension_numbers = #tpu.dot_dimension_numbers<[1], [0], [0], [1], [0, 0, 1, 1], [], []>, precision = #tpu.contract_precision<fp32>} : vector<64x64xf32>, vector<64x256xf32>, vector<64x256xf32> -> vector<64x256xf32>
    %c0_9 = arith.constant 0 : index
    %c1_10 = arith.constant 1 : index
    %15 = vector.load %arg3[%c0_9, %c1_10] : memref<64x6xf32, #tpu.memory_space<vmem>>, vector<64x1xf32>
    %16 = vector.broadcast %15 : vector<64x1xf32> to vector<64x256xf32>
    %17 = arith.addf %14, %16 : vector<64x256xf32>
    %cst_11 = arith.constant 0.000000e+00 : f32
    %18 = vector.broadcast %cst_11 : f32 to vector<64x256xf32>
    %19 = arith.maximumf %17, %18 : vector<64x256xf32>
    %c2 = arith.constant 2 : index
    %c0_12 = arith.constant 0 : index
    %c0_13 = arith.constant 0 : index
    %20 = vector.load %arg2[%c2, %c0_12, %c0_13] : memref<6x64x64xf32, #tpu.memory_space<vmem>>, vector<1x64x64xf32>
    %21 = vector.shape_cast %20 : vector<1x64x64xf32> to vector<64x64xf32>
    %cst_14 = arith.constant dense<0.000000e+00> : vector<64x256xf32>
    %22 = tpu.matmul %21, %19, %cst_14 {dimension_numbers = #tpu.dot_dimension_numbers<[1], [0], [0], [1], [0, 0, 1, 1], [], []>, precision = #tpu.contract_precision<fp32>} : vector<64x64xf32>, vector<64x256xf32>, vector<64x256xf32> -> vector<64x256xf32>
    %c0_15 = arith.constant 0 : index
    %c2_16 = arith.constant 2 : index
    %23 = vector.load %arg3[%c0_15, %c2_16] : memref<64x6xf32, #tpu.memory_space<vmem>>, vector<64x1xf32>
    %24 = vector.broadcast %23 : vector<64x1xf32> to vector<64x256xf32>
    %25 = arith.addf %22, %24 : vector<64x256xf32>
    %cst_17 = arith.constant 0.000000e+00 : f32
    %26 = vector.broadcast %cst_17 : f32 to vector<64x256xf32>
    %27 = arith.maximumf %25, %26 : vector<64x256xf32>
    %c3 = arith.constant 3 : index
    %c0_18 = arith.constant 0 : index
    %c0_19 = arith.constant 0 : index
    %28 = vector.load %arg2[%c3, %c0_18, %c0_19] : memref<6x64x64xf32, #tpu.memory_space<vmem>>, vector<1x64x64xf32>
    %29 = vector.shape_cast %28 : vector<1x64x64xf32> to vector<64x64xf32>
    %cst_20 = arith.constant dense<0.000000e+00> : vector<64x256xf32>
    %30 = tpu.matmul %29, %27, %cst_20 {dimension_numbers = #tpu.dot_dimension_numbers<[1], [0], [0], [1], [0, 0, 1, 1], [], []>, precision = #tpu.contract_precision<fp32>} : vector<64x64xf32>, vector<64x256xf32>, vector<64x256xf32> -> vector<64x256xf32>
    %c0_21 = arith.constant 0 : index
    %c3_22 = arith.constant 3 : index
    %31 = vector.load %arg3[%c0_21, %c3_22] : memref<64x6xf32, #tpu.memory_space<vmem>>, vector<64x1xf32>
    %32 = vector.broadcast %31 : vector<64x1xf32> to vector<64x256xf32>
    %33 = arith.addf %30, %32 : vector<64x256xf32>
    %cst_23 = arith.constant 0.000000e+00 : f32
    %34 = vector.broadcast %cst_23 : f32 to vector<64x256xf32>
    %35 = arith.maximumf %33, %34 : vector<64x256xf32>
    %c4 = arith.constant 4 : index
    %c0_24 = arith.constant 0 : index
    %c0_25 = arith.constant 0 : index
    %36 = vector.load %arg2[%c4, %c0_24, %c0_25] : memref<6x64x64xf32, #tpu.memory_space<vmem>>, vector<1x64x64xf32>
    %37 = vector.shape_cast %36 : vector<1x64x64xf32> to vector<64x64xf32>
    %cst_26 = arith.constant dense<0.000000e+00> : vector<64x256xf32>
    %38 = tpu.matmul %37, %35, %cst_26 {dimension_numbers = #tpu.dot_dimension_numbers<[1], [0], [0], [1], [0, 0, 1, 1], [], []>, precision = #tpu.contract_precision<fp32>} : vector<64x64xf32>, vector<64x256xf32>, vector<64x256xf32> -> vector<64x256xf32>
    %c0_27 = arith.constant 0 : index
    %c4_28 = arith.constant 4 : index
    %39 = vector.load %arg3[%c0_27, %c4_28] : memref<64x6xf32, #tpu.memory_space<vmem>>, vector<64x1xf32>
    %40 = vector.broadcast %39 : vector<64x1xf32> to vector<64x256xf32>
    %41 = arith.addf %38, %40 : vector<64x256xf32>
    %cst_29 = arith.constant 0.000000e+00 : f32
    %42 = vector.broadcast %cst_29 : f32 to vector<64x256xf32>
    %43 = arith.maximumf %41, %42 : vector<64x256xf32>
    %c5 = arith.constant 5 : index
    %c0_30 = arith.constant 0 : index
    %c0_31 = arith.constant 0 : index
    %44 = vector.load %arg2[%c5, %c0_30, %c0_31] : memref<6x64x64xf32, #tpu.memory_space<vmem>>, vector<1x8x64xf32>
    %45 = vector.shape_cast %44 : vector<1x8x64xf32> to vector<8x64xf32>
    %cst_32 = arith.constant dense<0.000000e+00> : vector<8x256xf32>
    %46 = tpu.matmul %45, %43, %cst_32 {dimension_numbers = #tpu.dot_dimension_numbers<[1], [0], [0], [1], [0, 0, 1, 1], [], []>, precision = #tpu.contract_precision<fp32>} : vector<8x64xf32>, vector<64x256xf32>, vector<8x256xf32> -> vector<8x256xf32>
    %47 = tpu.transpose %46, [1, 0] : vector<8x256xf32> -> vector<256x8xf32>
    %c0_33 = arith.constant 0 : index
    %c0_34 = arith.constant 0 : index
    %48 = vector.load %arg4[%c0_33, %c0_34] : memref<1x8xf32, #tpu.memory_space<vmem>>, vector<1x8xf32>
    %49 = vector.broadcast %48 : vector<1x8xf32> to vector<256x8xf32>
    %50 = arith.addf %47, %49 : vector<256x8xf32>
    %51 = vector.extract_strided_slice %50 {offsets = [0, 0], sizes = [256, 7], strides = [1, 1]} : vector<256x8xf32> to vector<256x7xf32>
    %52 = arith.index_cast %1 : i32 to index
    %c0_35 = arith.constant 0 : index
    %53 = vector.load %arg5[%52, %c0_35] : memref<256x7xf32, #tpu.memory_space<vmem>>, vector<256x7xf32>
    tpu.vector_store %arg5[%52, %c0_35], %51 {strides = array<i32>} : memref<256x7xf32, #tpu.memory_space<vmem>>, vector<256x7xf32>,
    %c1_i32 = arith.constant 1 : i32
    return
  }
  func.func @transform_0(%arg0: i32) -> (i32, i32) {
    %c0_i32 = arith.constant 0 : i32
    %c0_i32_0 = arith.constant 0 : i32
    return %arg0, %c0_i32 : i32, i32
  }
  func.func @transform_1(%arg0: i32) -> (i32, i32, i32) {
    %c0_i32 = arith.constant 0 : i32
    %c0_i32_0 = arith.constant 0 : i32
    %c0_i32_1 = arith.constant 0 : i32
    %c0_i32_2 = arith.constant 0 : i32
    return %c0_i32, %c0_i32_0, %c0_i32_1 : i32, i32, i32
  }
  func.func @transform_2(%arg0: i32) -> (i32, i32) {
    %c0_i32 = arith.constant 0 : i32
    %c0_i32_0 = arith.constant 0 : i32
    %c0_i32_1 = arith.constant 0 : i32
    return %c0_i32, %c0_i32_0 : i32, i32
  }
  func.func @transform_3(%arg0: i32) -> (i32, i32) {
    %c0_i32 = arith.constant 0 : i32
    %c0_i32_0 = arith.constant 0 : i32
    %c0_i32_1 = arith.constant 0 : i32
    return %c0_i32, %c0_i32_0 : i32, i32
  }
  func.func @transform_4(%arg0: i32) -> (i32, i32) {
    %c0_i32 = arith.constant 0 : i32
    %c0_i32_0 = arith.constant 0 : i32
    return %arg0, %c0_i32 : i32, i32
  }
}

</mosaic_0001>

<llo_original>
// kernel: tpu_custom_call.1
$region0: #{tpu_custom_call.1}
  #allocation0 [shape = 'u32[]', space=smem, size = 0x4, offset = 0x4, fixed_abs, tag = 'smem constant byte address 0x4 - core index']
  #allocation1 [shape = 'u32[72,128]{1,0:T(1,128)}', space=vmem, size = 0x9000, scoped, tag = 'internal scratch']
  %s0 = inlined_call_operand.vmem [shape: f32[512,4], index: 0, kind: input, shape index: {}]
  %s1 = inlined_call_operand.vmem [shape: f32[6,64,64], index: 1, kind: input, shape index: {}]
  %s2 = inlined_call_operand.vmem [shape: f32[64,6], index: 2, kind: input, shape index: {}]
  %s3 = inlined_call_operand.vmem [shape: f32[1,8], index: 3, kind: input, shape index: {}]
  %s4 = inlined_call_operand.vmem [shape: f32[512,7], index: 4, kind: output, shape index: {}]
  %s5 = sld [smem:[#allocation0]]
  $region49: #{tpu_custom_call.1} parent=0
    _
  %s7 = ssub.s32 1, %s5
  %s8 = scalar_select 0, %s7, %s5
  loop: start=0, step=1, limit=4
  $region2: #{tpu_custom_call.1} parent=0 // loop_pre_header
    _
  $region3: #{tpu_custom_call.1} parent=0 // loop_header
    %s10 = sphi 0, %s14
    %p11 = scmp.ge.s32.totalorder %s10, 4
    %s20 = sphi 0, %s22
    %s23 = sphi 0, %s20
    %s24 = sphi 0, %s23
    %s40 = sphi 0, %s24
    %s44 = sphi 0, %s44
    %s46 = sphi 0, %s44
    %s47 = sphi 0, %s46
    %s61 = sphi 0, %s47
    %s65 = sphi 0, %s65
    %s67 = sphi 0, %s65
    %s68 = sphi 0, %s67
    %s82 = sphi 0, %s68
    %s86 = sphi 0, %s86
    %s88 = sphi 0, %s86
    %s89 = sphi 0, %s88
    %s103 = sphi 0, %s89
    %s109 = sphi 0, %s111
    %s112 = sphi 0, %s109
    %s113 = sphi 0, %s112
    %s129 = sphi 0, %s113
  $region4: #{tpu_custom_call.1} parent=0 // loop_header_branch
    %13 = sbr.rel (%p11) target = $region8
  $region5: #{tpu_custom_call.1} parent=0 // loop_body
    %s15 = ssub.s32 %s10, 1
    %s16 = ssub.s32 %s10, 2
    %s17 = sadd.s32 %s10, 1
    %s18 = ssub.s32 %s10, %s17
    %p19 = scmp.eq.s32.totalorder %s18, 0
    %s21 = sadd.s32 %s20, 1
    %s22 = scalar_select %p19, %s20, %s21
    %p25 = pneg %p19
    %p26 = scmp.eq.s32.totalorder %s10, 1
    %p27 = por %p25, %p26
    %p28 = scmp.ne.s32.totalorder %s20, %s23
    %p29 = scmp.eq.s32.totalorder %s10, 0
    %p30 = por %p28, %p29
    %p31 = scmp.ne.s32.totalorder %s20, %s23
    %p32 = scmp.eq.s32.totalorder %s15, 1
    %p33 = por %p31, %p32
    %p34 = scmp.ne.s32.totalorder %s23, %s24
    %p35 = scmp.eq.s32.totalorder %s15, 0
    %p36 = por %p34, %p35
    %p37 = scmp.ne.s32.totalorder %s23, %s24
    %p38 = scmp.eq.s32.totalorder %s16, 1
    %p39 = por %p37, %p38
    %p41 = scmp.ne.s32.totalorder %s24, %s40
    %p42 = scmp.eq.s32.totalorder %s16, 0
    %p43 = por %p41, %p42
    %s45 = sadd.s32 %s44, 1
    %p48 = scmp.eq.s32.totalorder %s10, 1
    %p49 = scmp.ne.s32.totalorder %s44, %s46
    %p50 = scmp.eq.s32.totalorder %s10, 0
    %p51 = por %p49, %p50
    %p52 = scmp.ne.s32.totalorder %s44, %s46
    %p53 = scmp.eq.s32.totalorder %s15, 1
    %p54 = por %p52, %p53
    %p55 = scmp.ne.s32.totalorder %s46, %s47
    %p56 = scmp.eq.s32.totalorder %s15, 0
    %p57 = por %p55, %p56
    %p58 = scmp.ne.s32.totalorder %s46, %s47
    %p59 = scmp.eq.s32.totalorder %s16, 1
    %p60 = por %p58, %p59
    %p62 = scmp.ne.s32.totalorder %s47, %s61
    %p63 = scmp.eq.s32.totalorder %s16, 0
    %p64 = por %p62, %p63
    %s66 = sadd.s32 %s65, 1
    %p69 = scmp.eq.s32.totalorder %s10, 1
    %p70 = scmp.ne.s32.totalorder %s65, %s67
    %p71 = scmp.eq.s32.totalorder %s10, 0
    %p72 = por %p70, %p71
    %p73 = scmp.ne.s32.totalorder %s65, %s67
    %p74 = scmp.eq.s32.totalorder %s15, 1
    %p75 = por %p73, %p74
    %p76 = scmp.ne.s32.totalorder %s67, %s68
    %p77 = scmp.eq.s32.totalorder %s15, 0
    %p78 = por %p76, %p77
    %p79 = scmp.ne.s32.totalorder %s67, %s68
    %p80 = scmp.eq.s32.totalorder %s16, 1
    %p81 = por %p79, %p80
    %p83 = scmp.ne.s32.totalorder %s68, %s82
    %p84 = scmp.eq.s32.totalorder %s16, 0
    %p85 = por %p83, %p84
    %s87 = sadd.s32 %s86, 1
    %p90 = scmp.eq.s32.totalorder %s10, 1
    %p91 = scmp.ne.s32.totalorder %s86, %s88
    %p92 = scmp.eq.s32.totalorder %s10, 0
    %p93 = por %p91, %p92
    %p94 = scmp.ne.s32.totalorder %s86, %s88
    %p95 = scmp.eq.s32.totalorder %s15, 1
    %p96 = por %p94, %p95
    %p97 = scmp.ne.s32.totalorder %s88, %s89
    %p98 = scmp.eq.s32.totalorder %s15, 0
    %p99 = por %p97, %p98
    %p100 = scmp.ne.s32.totalorder %s88, %s89
    %p101 = scmp.eq.s32.totalorder %s16, 1
    %p102 = por %p100, %p101
    %p104 = scmp.ne.s32.totalorder %s89, %s103
    %p105 = scmp.eq.s32.totalorder %s16, 0
    %p106 = por %p104, %p105
    %s107 = ssub.s32 %s10, %s17
    %p108 = scmp.eq.s32.totalorder %s107, 0
    %s110 = sadd.s32 %s109, 1
    %s111 = scalar_select %p108, %s109, %s110
    %p114 = pneg %p108
    %p115 = scmp.eq.s32.totalorder %s10, 1
    %p116 = por %p114, %p115
    %p117 = scmp.ne.s32.totalorder %s109, %s112
    %p118 = scmp.eq.s32.totalorder %s10, 0
    %p119 = por %p117, %p118
    %p120 = scmp.ne.s32.totalorder %s109, %s112
    %p121 = scmp.eq.s32.totalorder %s15, 1
    %p122 = por %p120, %p121
    %p123 = scmp.ne.s32.totalorder %s112, %s113
    %p124 = scmp.eq.s32.totalorder %s15, 0
    %p125 = por %p123, %p124
    %p126 = scmp.ne.s32.totalorder %s112, %s113
    %p127 = scmp.eq.s32.totalorder %s16, 1
    %p128 = por %p126, %p127
    %p130 = scmp.ne.s32.totalorder %s113, %s129
    %p131 = scmp.eq.s32.totalorder %s16, 0
    %p132 = por %p130, %p131
    %p133 = scmp.le.s32.totalorder 1, %s10
    %p134 = scmp.lt.s32.totalorder %s10, 3
    %p135 = pnand %p133, %p134
    %p136 = pneg %p135
    // Predicated region
    $region9: #{tpu_custom_call.1} parent=5 // pred_check
      _
    $region10: #{tpu_custom_call.1} parent=5 // pred_check_branch
      %138 = sbr.rel (%p135) target = $region12
    $region11: #{tpu_custom_call.1} parent=5 // pred_region
      %s139 = ssub.s32 %s10, 1
      // Predicated region
      $region13: #{tpu_custom_call.1} parent=11 // pred_check
        %p140 = pneg %p57
      $region14: #{tpu_custom_call.1} parent=11 // pred_check_branch
        %142 = sbr.rel (%p140) target = $region16
      $region15: #{tpu_custom_call.1} parent=11 // pred_region
        _
      $region16: #{tpu_custom_call.1} parent=11 // pred_fallthru
        _
      // Predicated region
      $region17: #{tpu_custom_call.1} parent=11 // pred_check
        %p143 = pneg %p78
      $region18: #{tpu_custom_call.1} parent=11 // pred_check_branch
        %145 = sbr.rel (%p143) target = $region20
      $region19: #{tpu_custom_call.1} parent=11 // pred_region
        _
      $region20: #{tpu_custom_call.1} parent=11 // pred_fallthru
        _
      // Predicated region
      $region21: #{tpu_custom_call.1} parent=11 // pred_check
        %p146 = pneg %p99
      $region22: #{tpu_custom_call.1} parent=11 // pred_check_branch
        %148 = sbr.rel (%p146) target = $region24
      $region23: #{tpu_custom_call.1} parent=11 // pred_region
        _
      $region24: #{tpu_custom_call.1} parent=11 // pred_fallthru
        _
    $region12: #{tpu_custom_call.1} parent=5 // pred_fallthru
      _
    %p149 = scmp.lt.s32.totalorder %s10, 2
    // Predicated region
    $region25: #{tpu_custom_call.1} parent=5 // pred_check
      %p150 = pneg %p149
    $region26: #{tpu_custom_call.1} parent=5 // pred_check_branch
      %152 = sbr.rel (%p150) target = $region28
    $region27: #{tpu_custom_call.1} parent=5 // pred_region
      // Predicated region
      $region29: #{tpu_custom_call.1} parent=27 // pred_check
        %p153 = pneg %p30
      $region30: #{tpu_custom_call.1} parent=27 // pred_check_branch
        %155 = sbr.rel (%p153) target = $region32
      $region31: #{tpu_custom_call.1} parent=27 // pred_region
        %s156 = smul.u32 32, %s10
        %p157 = scmp.lt.s32.totalorder %s156, 63
        %s158 = scalar_select %p157, %s156, 63
        %s159 = smul.addr %s158, 8
        %s160 = scalar_lea.vmem %s0, %s159
        %s161 = smul.u32 32, %s10
      $region32: #{tpu_custom_call.1} parent=27 // pred_fallthru
        _
    $region28: #{tpu_custom_call.1} parent=5 // pred_fallthru
      _
    %p162 = scmp.le.s32.totalorder 1, %s10
    %p163 = scmp.lt.s32.totalorder %s10, 3
    %p164 = pnand %p162, %p163
    %p165 = pneg %p164
    // Predicated region
    $region33: #{tpu_custom_call.1} parent=5 // pred_check
      _
    $region34: #{tpu_custom_call.1} parent=5 // pred_check_branch
      %167 = sbr.rel (%p164) target = $region36
    $region35: #{tpu_custom_call.1} parent=5 // pred_region
      %s168 = ssub.s32 %s10, 1
      %s169 = smul.u32 32, %s15
      %p170 = scmp.lt.s32.totalorder %s169, 63
      %s171 = scalar_select %p170, %s169, 63
      %s172 = smul.addr %s171, 8
      %s173 = scalar_lea.vmem %s0, %s172
      %p174 = pneg %p36
      %p175 = pneg %p33
      %p176 = pneg %p57
      %p177 = pneg %p54
      %p178 = pneg %p78
      %p179 = pneg %p75
      %p180 = pneg %p99
      %p181 = pneg %p96
      %p182 = pneg %p125
      %p183 = pneg %p122
      %s184 = smul.u32 32, %s15
      %p185 = scmp.lt.s32.totalorder %s184, 63
      %s186 = scalar_select %p185, %s184, 63
      %s187 = smul.addr %s186, 8
      %s188 = scalar_lea.vmem %s4, %s187
      %s189 = smul.u32 32, %s15
      %p190 = scmp.lt.s32.totalorder %s189, 63
      %s191 = scalar_select %p190, %s189, 63
      %s192 = smul.addr %s191, 8
      %s193 = scalar_lea.vmem %s0, %s192
      %s194 = smul.u32 32, %s15
      %s195 = smul.u32 32, %s15
      %p196 = scmp.lt.s32.totalorder %s195, 63
      %s197 = scalar_select %p196, %s195, 63
      %s198 = smul.addr %s197, 8
      %s199 = scalar_lea.vmem %s4, %s198
      %s200 = smul.u32 32, %s15
      %v201 = vld [vmem:[%s193] sm:$0xff]
      %v202 = vld [vmem:[%s193 + $0x8] sm:$0xff]
      %v203 = vld [vmem:[%s193 + $0x10] sm:$0xff]
      %v204 = vld [vmem:[%s193 + $0x18] sm:$0xff]
      %v205 = vld [vmem:[%s193 + $0x20] sm:$0xff]
      %v206 = vld [vmem:[%s193 + $0x28] sm:$0xff]
      %v207 = vld [vmem:[%s193 + $0x30] sm:$0xff]
      %v208 = vld [vmem:[%s193 + $0x38] sm:$0xff]
      %v209 = vld [vmem:[%s193 + $0x40] sm:$0xff]
      %v210 = vld [vmem:[%s193 + $0x48] sm:$0xff]
      %v211 = vld [vmem:[%s193 + $0x50] sm:$0xff]
      %v212 = vld [vmem:[%s193 + $0x58] sm:$0xff]
      %v213 = vld [vmem:[%s193 + $0x60] sm:$0xff]
      %v214 = vld [vmem:[%s193 + $0x68] sm:$0xff]
      %v215 = vld [vmem:[%s193 + $0x70] sm:$0xff]
      %v216 = vld [vmem:[%s193 + $0x78] sm:$0xff]
      %v217 = vld [vmem:[%s193 + $0x80] sm:$0xff]
      %v218 = vld [vmem:[%s193 + $0x88] sm:$0xff]
      %v219 = vld [vmem:[%s193 + $0x90] sm:$0xff]
      %v220 = vld [vmem:[%s193 + $0x98] sm:$0xff]
      %v221 = vld [vmem:[%s193 + $0xa0] sm:$0xff]
      %v222 = vld [vmem:[%s193 + $0xa8] sm:$0xff]
      %v223 = vld [vmem:[%s193 + $0xb0] sm:$0xff]
      %v224 = vld [vmem:[%s193 + $0xb8] sm:$0xff]
      %v225 = vld [vmem:[%s193 + $0xc0] sm:$0xff]
      %v226 = vld [vmem:[%s193 + $0xc8] sm:$0xff]
      %v227 = vld [vmem:[%s193 + $0xd0] sm:$0xff]
      %v228 = vld [vmem:[%s193 + $0xd8] sm:$0xff]
      %v229 = vld [vmem:[%s193 + $0xe0] sm:$0xff]
      %v230 = vld [vmem:[%s193 + $0xe8] sm:$0xff]
      %v231 = vld [vmem:[%s193 + $0xf0] sm:$0xff]
      %v232 = vld [vmem:[%s193 + $0xf8] sm:$0xff]
      %v233 = vld [vmem:[%s1] sm:$0xff]
      %v234 = vld [vmem:[%s1 + $0x8] sm:$0xff]
      %v235 = vld [vmem:[%s1 + $0x10] sm:$0xff]
      %v236 = vld [vmem:[%s1 + $0x18] sm:$0xff]
      %v237 = vld [vmem:[%s1 + $0x20] sm:$0xff]
      %v238 = vld [vmem:[%s1 + $0x28] sm:$0xff]
      %v239 = vld [vmem:[%s1 + $0x30] sm:$0xff]
      %v240 = vld [vmem:[%s1 + $0x38] sm:$0xff]
      %v241 = vld [vmem:[%s2] sm:$0xff]
      %v242 = vld [vmem:[%s2 + $0x8] sm:$0xff]
      %v243 = vld [vmem:[%s2 + $0x10] sm:$0xff]
      %v244 = vld [vmem:[%s2 + $0x18] sm:$0xff]
      %v245 = vld [vmem:[%s2 + $0x20] sm:$0xff]
      %v246 = vld [vmem:[%s2 + $0x28] sm:$0xff]
      %v247 = vld [vmem:[%s2 + $0x30] sm:$0xff]
      %v248 = vld [vmem:[%s2 + $0x38] sm:$0xff]
      %250 = vset.pattern.permute.xlu0 0
      %251 = vperm.xlu0 %250, %v241
      %v252 = vpop.permute.xlu0 %251
      %255 = vset.pattern.permute.xlu0 0
      %256 = vperm.xlu0 %255, %v242
      %v257 = vpop.permute.xlu0 %256
      %260 = vset.pattern.permute.xlu0 0
      %261 = vperm.xlu0 %260, %v243
      %v262 = vpop.permute.xlu0 %261
      %265 = vset.pattern.permute.xlu0 0
      %266 = vperm.xlu0 %265, %v244
      %v267 = vpop.permute.xlu0 %266
      %270 = vset.pattern.permute.xlu0 0
      %271 = vperm.xlu0 %270, %v245
      %v272 = vpop.permute.xlu0 %271
      %275 = vset.pattern.permute.xlu0 0
      %276 = vperm.xlu0 %275, %v246
      %v277 = vpop.permute.xlu0 %276
      %280 = vset.pattern.permute.xlu0 0
      %281 = vperm.xlu0 %280, %v247
      %v282 = vpop.permute.xlu0 %281
      %285 = vset.pattern.permute.xlu0 0
      %286 = vperm.xlu0 %285, %v248
      %v287 = vpop.permute.xlu0 %286
      %vm289 = vcmask 31744
      %v291 = vsel %vm289, %v233, 0
      %v294 = vsel %vm289, %v234, 0
      %v297 = vsel %vm289, %v235, 0
      %v300 = vsel %vm289, %v236, 0
      %v303 = vsel %vm289, %v237, 0
      %v306 = vsel %vm289, %v238, 0
      %v309 = vsel %vm289, %v239, 0
      %v312 = vsel %vm289, %v240, 0
      %v315 = vsel %vm289, %v201, 0
      %v318 = vsel %vm289, %v202, 0
      %v321 = vsel %vm289, %v203, 0
      %v324 = vsel %vm289, %v204, 0
      %v327 = vsel %vm289, %v205, 0
      %v330 = vsel %vm289, %v206, 0
      %v333 = vsel %vm289, %v207, 0
      %v336 = vsel %vm289, %v208, 0
      %v339 = vsel %vm289, %v209, 0
      %v342 = vsel %vm289, %v210, 0
      %v345 = vsel %vm289, %v211, 0
      %v348 = vsel %vm289, %v212, 0
      %v351 = vsel %vm289, %v213, 0
      %v354 = vsel %vm289, %v214, 0
      %v357 = vsel %vm289, %v215, 0
      %v360 = vsel %vm289, %v216, 0
      %v363 = vsel %vm289, %v217, 0
      %v366 = vsel %vm289, %v218, 0
      %v369 = vsel %vm289, %v219, 0
      %v372 = vsel %vm289, %v220, 0
      %v375 = vsel %vm289, %v221, 0
      %v378 = vsel %vm289, %v222, 0
      %v381 = vsel %vm289, %v223, 0
      %v384 = vsel %vm289, %v224, 0
      %v387 = vsel %vm289, %v225, 0
      %v390 = vsel %vm289, %v226, 0
      %v393 = vsel %vm289, %v227, 0
      %v396 = vsel %vm289, %v228, 0
      %v399 = vsel %vm289, %v229, 0
      %v402 = vsel %vm289, %v230, 0
      %v405 = vsel %vm289, %v231, 0
      %v408 = vsel %vm289, %v232, 0
      %v410 = vand.u32 %v360, 4294901760
      %411 = vmatpush.xpose.msra.mxu0 %v410
      %v412 = vand.u32 %v357, 4294901760
      %413 = vmatpush.xpose.msra.mxu0 %v412
      %v414 = vand.u32 %v354, 4294901760
      %415 = vmatpush.xpose.msra.mxu0 %v414
      %v416 = vand.u32 %v351, 4294901760
      %417 = vmatpush.xpose.msra.mxu0 %v416
      %v418 = vand.u32 %v348, 4294901760
      %419 = vmatpush.xpose.msra.mxu0 %v418
      %v420 = vand.u32 %v345, 4294901760
      %421 = vmatpush.xpose.msra.mxu0 %v420
      %v422 = vand.u32 %v342, 4294901760
      %423 = vmatpush.xpose.msra.mxu0 %v422
      %v424 = vand.u32 %v339, 4294901760
      %425 = vmatpush.xpose.msra.mxu0 %v424
      %v426 = vand.u32 %v336, 4294901760
      %427 = vmatpush.xpose.msra.mxu0 %v426
      %v428 = vand.u32 %v333, 4294901760
      %429 = vmatpush.xpose.msra.mxu0 %v428
      %v430 = vand.u32 %v330, 4294901760
      %431 = vmatpush.xpose.msra.mxu0 %v430
      %v432 = vand.u32 %v327, 4294901760
      %433 = vmatpush.xpose.msra.mxu0 %v432
      %v434 = vand.u32 %v324, 4294901760
      %435 = vmatpush.xpose.msra.mxu0 %v434
      %v436 = vand.u32 %v321, 4294901760
      %437 = vmatpush.xpose.msra.mxu0 %v436
      %v438 = vand.u32 %v318, 4294901760
      %439 = vmatpush.xpose.msra.mxu0 %v438
      %v440 = vand.u32 %v315, 4294901760
      %441 = vmatpush.xpose.msra.mxu0 %v440
      %v442 = vand.u32 %v291, 4294901760
      %v443 = vsub.f32 %v291, %v442
      %v444 = vand.u32 %v443, 4294901760
      %v445 = vsub.f32 %v443, %v444
      %v446 = vand.u32 %v445, 4294901760
      %447 = vmatmul.f32.gmra.mxu0 %v446
      %v448 = vpop.f32.mrf.mxu0
      %v449 = vadd.f32 %v252, %v448
      %v450 = vand.u32 %v294, 4294901760
      %v451 = vsub.f32 %v294, %v450
      %v452 = vand.u32 %v451, 4294901760
      %v453 = vsub.f32 %v451, %v452
      %v454 = vand.u32 %v453, 4294901760
      %455 = vmatmul.f32.gmra.mxu0 %v454
      %v456 = vpop.f32.mrf.mxu0
      %v457 = vadd.f32 %v257, %v456
      %v458 = vand.u32 %v297, 4294901760
      %v459 = vsub.f32 %v297, %v458
      %v460 = vand.u32 %v459, 4294901760
      %v461 = vsub.f32 %v459, %v460
      %v462 = vand.u32 %v461, 4294901760
      %463 = vmatmul.f32.gmra.mxu0 %v462
      %v464 = vpop.f32.mrf.mxu0
      %v465 = vadd.f32 %v262, %v464
      %v466 = vand.u32 %v300, 4294901760
      %v467 = vsub.f32 %v300, %v466
      %v468 = vand.u32 %v467, 4294901760
      %v469 = vsub.f32 %v467, %v468
      %v470 = vand.u32 %v469, 4294901760
      %471 = vmatmul.f32.gmra.mxu0 %v470
      %v472 = vpop.f32.mrf.mxu0
      %v473 = vadd.f32 %v267, %v472
      %v474 = vand.u32 %v303, 4294901760
      %v475 = vsub.f32 %v303, %v474
      %v476 = vand.u32 %v475, 4294901760
      %v477 = vsub.f32 %v475, %v476
      %v478 = vand.u32 %v477, 4294901760
      %479 = vmatmul.f32.gmra.mxu0 %v478
      %v480 = vpop.f32.mrf.mxu0
      %v481 = vadd.f32 %v272, %v480
      %v482 = vand.u32 %v306, 4294901760
      %v483 = vsub.f32 %v306, %v482
      %v484 = vand.u32 %v483, 4294901760
      %v485 = vsub.f32 %v483, %v484
      %v486 = vand.u32 %v485, 4294901760
      %487 = vmatmul.f32.gmra.mxu0 %v486
      %v488 = vpop.f32.mrf.mxu0
      %v489 = vadd.f32 %v277, %v488
      %v490 = vand.u32 %v309, 4294901760
      %v491 = vsub.f32 %v309, %v490
      %v492 = vand.u32 %v491, 4294901760
      %v493 = vsub.f32 %v491, %v492
      %v494 = vand.u32 %v493, 4294901760
      %495 = vmatmul.f32.gmra.mxu0 %v494
      %v496 = vpop.f32.mrf.mxu0
      %v497 = vadd.f32 %v282, %v496
      %v498 = vand.u32 %v312, 4294901760
      %v499 = vsub.f32 %v312, %v498
      %v500 = vand.u32 %v499, 4294901760
      %v501 = vsub.f32 %v499, %v500
      %v502 = vand.u32 %v501, 4294901760
      %503 = vmatmul.f32.gmra.mxu0 %v502
      %v504 = vpop.f32.mrf.mxu0
      %v505 = vadd.f32 %v287, %v504
      %506 = vdwg.mxu0
      %v507 = vand.u32 %v360, 4294901760
      %v508 = vsub.f32 %v360, %v507
      %v509 = vand.u32 %v508, 4294901760
      %v510 = vsub.f32 %v508, %v509
      %v511 = vand.u32 %v510, 4294901760
      %512 = vmatpush.xpose.msra.mxu0 %v511
      %v513 = vand.u32 %v357, 4294901760
      %v514 = vsub.f32 %v357, %v513
      %v515 = vand.u32 %v514, 4294901760
      %v516 = vsub.f32 %v514, %v515
      %v517 = vand.u32 %v516, 4294901760
      %518 = vmatpush.xpose.msra.mxu0 %v517
      %v519 = vand.u32 %v354, 4294901760
      %v520 = vsub.f32 %v354, %v519
      %v521 = vand.u32 %v520, 4294901760
      %v522 = vsub.f32 %v520, %v521
      %v523 = vand.u32 %v522, 4294901760
      %524 = vmatpush.xpose.msra.mxu0 %v523
      %v525 = vand.u32 %v351, 4294901760
      %v526 = vsub.f32 %v351, %v525
      %v527 = vand.u32 %v526, 4294901760
      %v528 = vsub.f32 %v526, %v527
      %v529 = vand.u32 %v528, 4294901760
      %530 = vmatpush.xpose.msra.mxu0 %v529
      %v531 = vand.u32 %v348, 4294901760
      %v532 = vsub.f32 %v348, %v531
      %v533 = vand.u32 %v532, 4294901760
      %v534 = vsub.f32 %v532, %v533
      %v535 = vand.u32 %v534, 4294901760
      %536 = vmatpush.xpose.msra.mxu0 %v535
      %v537 = vand.u32 %v345, 4294901760
      %v538 = vsub.f32 %v345, %v537
      %v539 = vand.u32 %v538, 4294901760
      %v540 = vsub.f32 %v538, %v539
      %v541 = vand.u32 %v540, 4294901760
      %542 = vmatpush.xpose.msra.mxu0 %v541
      %v543 = vand.u32 %v342, 4294901760
      %v544 = vsub.f32 %v342, %v543
      %v545 = vand.u32 %v544, 4294901760
      %v546 = vsub.f32 %v544, %v545
      %v547 = vand.u32 %v546, 4294901760
      %548 = vmatpush.xpose.msra.mxu0 %v547
      %v549 = vand.u32 %v339, 4294901760
      %v550 = vsub.f32 %v339, %v549
      %v551 = vand.u32 %v550, 4294901760
      %v552 = vsub.f32 %v550, %v551
      %v553 = vand.u32 %v552, 4294901760
      %554 = vmatpush.xpose.msra.mxu0 %v553
      %v555 = vand.u32 %v336, 4294901760
      %v556 = vsub.f32 %v336, %v555
      %v557 = vand.u32 %v556, 4294901760
      %v558 = vsub.f32 %v556, %v557
      %v559 = vand.u32 %v558, 4294901760
      %560 = vmatpush.xpose.msra.mxu0 %v559
      %v561 = vand.u32 %v333, 4294901760
      %v562 = vsub.f32 %v333, %v561
      %v563 = vand.u32 %v562, 4294901760
      %v564 = vsub.f32 %v562, %v563
      %v565 = vand.u32 %v564, 4294901760
      %566 = vmatpush.xpose.msra.mxu0 %v565
      %v567 = vand.u32 %v330, 4294901760
      %v568 = vsub.f32 %v330, %v567
      %v569 = vand.u32 %v568, 4294901760
      %v570 = vsub.f32 %v568, %v569
      %v571 = vand.u32 %v570, 4294901760
      %572 = vmatpush.xpose.msra.mxu0 %v571
      %v573 = vand.u32 %v327, 4294901760
      %v574 = vsub.f32 %v327, %v573
      %v575 = vand.u32 %v574, 4294901760
      %v576 = vsub.f32 %v574, %v575
      %v577 = vand.u32 %v576, 4294901760
      %578 = vmatpush.xpose.msra.mxu0 %v577
      %v579 = vand.u32 %v324, 4294901760
      %v580 = vsub.f32 %v324, %v579
      %v581 = vand.u32 %v580, 4294901760
      %v582 = vsub.f32 %v580, %v581
      %v583 = vand.u32 %v582, 4294901760
      %584 = vmatpush.xpose.msra.mxu0 %v583
      %v585 = vand.u32 %v321, 4294901760
      %v586 = vsub.f32 %v321, %v585
      %v587 = vand.u32 %v586, 4294901760
      %v588 = vsub.f32 %v586, %v587
      %v589 = vand.u32 %v588, 4294901760
      %590 = vmatpush.xpose.msra.mxu0 %v589
      %v591 = vand.u32 %v318, 4294901760
      %v592 = vsub.f32 %v318, %v591
      %v593 = vand.u32 %v592, 4294901760
      %v594 = vsub.f32 %v592, %v593
      %v595 = vand.u32 %v594, 4294901760
      %596 = vmatpush.xpose.msra.mxu0 %v595
      %v597 = vand.u32 %v315, 4294901760
      %v598 = vsub.f32 %v315, %v597
      %v599 = vand.u32 %v598, 4294901760
      %v600 = vsub.f32 %v598, %v599
      %v601 = vand.u32 %v600, 4294901760
      %602 = vmatpush.xpose.msra.mxu0 %v601
      %v603 = vand.u32 %v291, 4294901760
      %604 = vmatmul.f32.gmra.mxu0 %v603
      %v605 = vpop.f32.mrf.mxu0
      %v606 = vadd.f32 %v449, %v605
      %v607 = vand.u32 %v294, 4294901760
      %608 = vmatmul.f32.gmra.mxu0 %v607
      %v609 = vpop.f32.mrf.mxu0
      %v610 = vadd.f32 %v457, %v609
      %v611 = vand.u32 %v297, 4294901760
      %612 = vmatmul.f32.gmra.mxu0 %v611
      %v613 = vpop.f32.mrf.mxu0
      %v614 = vadd.f32 %v465, %v613
      %v615 = vand.u32 %v300, 4294901760
      %616 = vmatmul.f32.gmra.mxu0 %v615
      %v617 = vpop.f32.mrf.mxu0
      %v618 = vadd.f32 %v473, %v617
      %v619 = vand.u32 %v303, 4294901760
      %620 = vmatmul.f32.gmra.mxu0 %v619
      %v621 = vpop.f32.mrf.mxu0
      %v622 = vadd.f32 %v481, %v621
      %v623 = vand.u32 %v306, 4294901760
      %624 = vmatmul.f32.gmra.mxu0 %v623
      %v625 = vpop.f32.mrf.mxu0
      %v626 = vadd.f32 %v489, %v625
      %v627 = vand.u32 %v309, 4294901760
      %628 = vmatmul.f32.gmra.mxu0 %v627
      %v629 = vpop.f32.mrf.mxu0
      %v630 = vadd.f32 %v497, %v629
      %v631 = vand.u32 %v312, 4294901760
      %632 = vmatmul.f32.gmra.mxu0 %v631
      %v633 = vpop.f32.mrf.mxu0
      %v634 = vadd.f32 %v505, %v633
      %635 = vdwg.mxu0
      %v636 = vand.u32 %v360, 4294901760
      %v637 = vsub.f32 %v360, %v636
      %638 = vmatpush.xpose.msra.mxu0 %v637
      %v639 = vand.u32 %v357, 4294901760
      %v640 = vsub.f32 %v357, %v639
      %641 = vmatpush.xpose.msra.mxu0 %v640
      %v642 = vand.u32 %v354, 4294901760
      %v643 = vsub.f32 %v354, %v642
      %644 = vmatpush.xpose.msra.mxu0 %v643
      %v645 = vand.u32 %v351, 4294901760
      %v646 = vsub.f32 %v351, %v645
      %647 = vmatpush.xpose.msra.mxu0 %v646
      %v648 = vand.u32 %v348, 4294901760
      %v649 = vsub.f32 %v348, %v648
      %650 = vmatpush.xpose.msra.mxu0 %v649
      %v651 = vand.u32 %v345, 4294901760
      %v652 = vsub.f32 %v345, %v651
      %653 = vmatpush.xpose.msra.mxu0 %v652
      %v654 = vand.u32 %v342, 4294901760
      %v655 = vsub.f32 %v342, %v654
      %656 = vmatpush.xpose.msra.mxu0 %v655
      %v657 = vand.u32 %v339, 4294901760
      %v658 = vsub.f32 %v339, %v657
      %659 = vmatpush.xpose.msra.mxu0 %v658
      %v660 = vand.u32 %v336, 4294901760
      %v661 = vsub.f32 %v336, %v660
      %662 = vmatpush.xpose.msra.mxu0 %v661
      %v663 = vand.u32 %v333, 4294901760
      %v664 = vsub.f32 %v333, %v663
      %665 = vmatpush.xpose.msra.mxu0 %v664
      %v666 = vand.u32 %v330, 4294901760
      %v667 = vsub.f32 %v330, %v666
      %668 = vmatpush.xpose.msra.mxu0 %v667
      %v669 = vand.u32 %v327, 4294901760
      %v670 = vsub.f32 %v327, %v669
      %671 = vmatpush.xpose.msra.mxu0 %v670
      %v672 = vand.u32 %v324, 4294901760
      %v673 = vsub.f32 %v324, %v672
      %674 = vmatpush.xpose.msra.mxu0 %v673
      %v675 = vand.u32 %v321, 4294901760
      %v676 = vsub.f32 %v321, %v675
      %677 = vmatpush.xpose.msra.mxu0 %v676
      %v678 = vand.u32 %v318, 4294901760
      %v679 = vsub.f32 %v318, %v678
      %680 = vmatpush.xpose.msra.mxu0 %v679
      %v681 = vand.u32 %v315, 4294901760
      %v682 = vsub.f32 %v315, %v681
      %683 = vmatpush.xpose.msra.mxu0 %v682
      %v684 = vand.u32 %v291, 4294901760
      %v685 = vsub.f32 %v291, %v684
      %686 = vmatmul.f32.gmra.mxu0 %v685
      %v687 = vpop.f32.mrf.mxu0
      %v688 = vadd.f32 %v606, %v687
      %v689 = vand.u32 %v294, 4294901760
      %v690 = vsub.f32 %v294, %v689
      %691 = vmatmul.f32.gmra.mxu0 %v690
      %v692 = vpop.f32.mrf.mxu0
      %v693 = vadd.f32 %v610, %v692
      %v694 = vand.u32 %v297, 4294901760
      %v695 = vsub.f32 %v297, %v694
      %696 = vmatmul.f32.gmra.mxu0 %v695
      %v697 = vpop.f32.mrf.mxu0
      %v698 = vadd.f32 %v614, %v697
      %v699 = vand.u32 %v300, 4294901760
      %v700 = vsub.f32 %v300, %v699
      %701 = vmatmul.f32.gmra.mxu0 %v700
      %v702 = vpop.f32.mrf.mxu0
      %v703 = vadd.f32 %v618, %v702
      %v704 = vand.u32 %v303, 4294901760
      %v705 = vsub.f32 %v303, %v704
      %706 = vmatmul.f32.gmra.mxu0 %v705
      %v707 = vpop.f32.mrf.mxu0
      %v708 = vadd.f32 %v622, %v707
      %v709 = vand.u32 %v306, 4294901760
      %v710 = vsub.f32 %v306, %v709
      %711 = vmatmul.f32.gmra.mxu0 %v710
      %v712 = vpop.f32.mrf.mxu0
      %v713 = vadd.f32 %v626, %v712
      %v714 = vand.u32 %v309, 4294901760
      %v715 = vsub.f32 %v309, %v714
      %716 = vmatmul.f32.gmra.mxu0 %v715
      %v717 = vpop.f32.mrf.mxu0
      %v718 = vadd.f32 %v630, %v717
      %v719 = vand.u32 %v312, 4294901760
      %v720 = vsub.f32 %v312, %v719
      %721 = vmatmul.f32.gmra.mxu0 %v720
      %v722 = vpop.f32.mrf.mxu0
      %v723 = vadd.f32 %v634, %v722
      %724 = vdwg.mxu0
      %v725 = vand.u32 %v360, 4294901760
      %726 = vmatpush.xpose.msra.mxu0 %v725
      %v727 = vand.u32 %v357, 4294901760
      %728 = vmatpush.xpose.msra.mxu0 %v727
      %v729 = vand.u32 %v354, 4294901760
      %730 = vmatpush.xpose.msra.mxu0 %v729
      %v731 = vand.u32 %v351, 4294901760
      %732 = vmatpush.xpose.msra.mxu0 %v731
      %v733 = vand.u32 %v348, 4294901760
      %734 = vmatpush.xpose.msra.mxu0 %v733
      %v735 = vand.u32 %v345, 4294901760
      %736 = vmatpush.xpose.msra.mxu0 %v735
      %v737 = vand.u32 %v342, 4294901760
      %738 = vmatpush.xpose.msra.mxu0 %v737
      %v739 = vand.u32 %v339, 4294901760
      %740 = vmatpush.xpose.msra.mxu0 %v739
      %v741 = vand.u32 %v336, 4294901760
      %742 = vmatpush.xpose.msra.mxu0 %v741
      %v743 = vand.u32 %v333, 4294901760
      %744 = vmatpush.xpose.msra.mxu0 %v743
      %v745 = vand.u32 %v330, 4294901760
      %746 = vmatpush.xpose.msra.mxu0 %v745
      %v747 = vand.u32 %v327, 4294901760
      %748 = vmatpush.xpose.msra.mxu0 %v747
      %v749 = vand.u32 %v324, 4294901760
      %750 = vmatpush.xpose.msra.mxu0 %v749
      %v751 = vand.u32 %v321, 4294901760
      %752 = vmatpush.xpose.msra.mxu0 %v751
      %v753 = vand.u32 %v318, 4294901760
      %754 = vmatpush.xpose.msra.mxu0 %v753
      %v755 = vand.u32 %v315, 4294901760
      %756 = vmatpush.xpose.msra.mxu0 %v755
      %v757 = vand.u32 %v291, 4294901760
      %v758 = vsub.f32 %v291, %v757
      %v759 = vand.u32 %v758, 4294901760
      %760 = vmatmul.f32.gmra.mxu0 %v759
      %v761 = vpop.f32.mrf.mxu0
      %v762 = vadd.f32 %v688, %v761
      %v763 = vand.u32 %v294, 4294901760
      %v764 = vsub.f32 %v294, %v763
      %v765 = vand.u32 %v764, 4294901760
      %766 = vmatmul.f32.gmra.mxu0 %v765
      %v767 = vpop.f32.mrf.mxu0
      %v768 = vadd.f32 %v693, %v767
      %v769 = vand.u32 %v297, 4294901760
      %v770 = vsub.f32 %v297, %v769
      %v771 = vand.u32 %v770, 4294901760
      %772 = vmatmul.f32.gmra.mxu0 %v771
      %v773 = vpop.f32.mrf.mxu0
      %v774 = vadd.f32 %v698, %v773
      %v775 = vand.u32 %v300, 4294901760
      %v776 = vsub.f32 %v300, %v775
      %v777 = vand.u32 %v776, 4294901760
      %778 = vmatmul.f32.gmra.mxu0 %v777
      %v779 = vpop.f32.mrf.mxu0
      %v780 = vadd.f32 %v703, %v779
      %v781 = vand.u32 %v303, 4294901760
      %v782 = vsub.f32 %v303, %v781
      %v783 = vand.u32 %v782, 4294901760
      %784 = vmatmul.f32.gmra.mxu0 %v783
      %v785 = vpop.f32.mrf.mxu0
      %v786 = vadd.f32 %v708, %v785
      %v787 = vand.u32 %v306, 4294901760
      %v788 = vsub.f32 %v306, %v787
      %v789 = vand.u32 %v788, 4294901760
      %790 = vmatmul.f32.gmra.mxu0 %v789
      %v791 = vpop.f32.mrf.mxu0
      %v792 = vadd.f32 %v713, %v791
      %v793 = vand.u32 %v309, 4294901760
      %v794 = vsub.f32 %v309, %v793
      %v795 = vand.u32 %v794, 4294901760
      %796 = vmatmul.f32.gmra.mxu0 %v795
      %v797 = vpop.f32.mrf.mxu0
      %v798 = vadd.f32 %v718, %v797
      %v799 = vand.u32 %v312, 4294901760
      %v800 = vsub.f32 %v312, %v799
      %v801 = vand.u32 %v800, 4294901760
      %802 = vmatmul.f32.gmra.mxu0 %v801
      %v803 = vpop.f32.mrf.mxu0
      %v804 = vadd.f32 %v723, %v803
      %805 = vdwg.mxu0
      %v806 = vand.u32 %v360, 4294901760
      %v807 = vsub.f32 %v360, %v806
      %v808 = vand.u32 %v807, 4294901760
      %809 = vmatpush.xpose.msra.mxu0 %v808
      %v810 = vand.u32 %v357, 4294901760
      %v811 = vsub.f32 %v357, %v810
      %v812 = vand.u32 %v811, 4294901760
      %813 = vmatpush.xpose.msra.mxu0 %v812
      %v814 = vand.u32 %v354, 4294901760
      %v815 = vsub.f32 %v354, %v814
      %v816 = vand.u32 %v815, 4294901760
      %817 = vmatpush.xpose.msra.mxu0 %v816
      %v818 = vand.u32 %v351, 4294901760
      %v819 = vsub.f32 %v351, %v818
      %v820 = vand.u32 %v819, 4294901760
      %821 = vmatpush.xpose.msra.mxu0 %v820
      %v822 = vand.u32 %v348, 4294901760
      %v823 = vsub.f32 %v348, %v822
      %v824 = vand.u32 %v823, 4294901760
      %825 = vmatpush.xpose.msra.mxu0 %v824
      %v826 = vand.u32 %v345, 4294901760
      %v827 = vsub.f32 %v345, %v826
      %v828 = vand.u32 %v827, 4294901760
      %829 = vmatpush.xpose.msra.mxu0 %v828
      %v830 = vand.u32 %v342, 4294901760
      %v831 = vsub.f32 %v342, %v830
      %v832 = vand.u32 %v831, 4294901760
      %833 = vmatpush.xpose.msra.mxu0 %v832
      %v834 = vand.u32 %v339, 4294901760
      %v835 = vsub.f32 %v339, %v834
      %v836 = vand.u32 %v835, 4294901760
      %837 = vmatpush.xpose.msra.mxu0 %v836
      %v838 = vand.u32 %v336, 4294901760
      %v839 = vsub.f32 %v336, %v838
      %v840 = vand.u32 %v839, 4294901760
      %841 = vmatpush.xpose.msra.mxu0 %v840
      %v842 = vand.u32 %v333, 4294901760
      %v843 = vsub.f32 %v333, %v842
      %v844 = vand.u32 %v843, 4294901760
      %845 = vmatpush.xpose.msra.mxu0 %v844
      %v846 = vand.u32 %v330, 4294901760
      %v847 = vsub.f32 %v330, %v846
      %v848 = vand.u32 %v847, 4294901760
      %849 = vmatpush.xpose.msra.mxu0 %v848
      %v850 = vand.u32 %v327, 4294901760
      %v851 = vsub.f32 %v327, %v850
      %v852 = vand.u32 %v851, 4294901760
      %853 = vmatpush.xpose.msra.mxu0 %v852
      %v854 = vand.u32 %v324, 4294901760
      %v855 = vsub.f32 %v324, %v854
      %v856 = vand.u32 %v855, 4294901760
      %857 = vmatpush.xpose.msra.mxu0 %v856
      %v858 = vand.u32 %v321, 4294901760
      %v859 = vsub.f32 %v321, %v858
      %v860 = vand.u32 %v859, 4294901760
      %861 = vmatpush.xpose.msra.mxu0 %v860
      %v862 = vand.u32 %v318, 4294901760
      %v863 = vsub.f32 %v318, %v862
      %v864 = vand.u32 %v863, 4294901760
      %865 = vmatpush.xpose.msra.mxu0 %v864
      %v866 = vand.u32 %v315, 4294901760
      %v867 = vsub.f32 %v315, %v866
      %v868 = vand.u32 %v867, 4294901760
      %869 = vmatpush.xpose.msra.mxu0 %v868
      %v870 = vand.u32 %v291, 4294901760
      %871 = vmatmul.f32.gmra.mxu0 %v870
      %v872 = vpop.f32.mrf.mxu0
      %v873 = vadd.f32 %v762, %v872
      %v874 = vand.u32 %v294, 4294901760
      %875 = vmatmul.f32.gmra.mxu0 %v874
      %v876 = vpop.f32.mrf.mxu0
      %v877 = vadd.f32 %v768, %v876
      %v878 = vand.u32 %v297, 4294901760
      %879 = vmatmul.f32.gmra.mxu0 %v878
      %v880 = vpop.f32.mrf.mxu0
      %v881 = vadd.f32 %v774, %v880
      %v882 = vand.u32 %v300, 4294901760
      %883 = vmatmul.f32.gmra.mxu0 %v882
      %v884 = vpop.f32.mrf.mxu0
      %v885 = vadd.f32 %v780, %v884
      %v886 = vand.u32 %v303, 4294901760
      %887 = vmatmul.f32.gmra.mxu0 %v886
      %v888 = vpop.f32.mrf.mxu0
      %v889 = vadd.f32 %v786, %v888
      %v890 = vand.u32 %v306, 4294901760
      %891 = vmatmul.f32.gmra.mxu0 %v890
      %v892 = vpop.f32.mrf.mxu0
      %v893 = vadd.f32 %v792, %v892
      %v894 = vand.u32 %v309, 4294901760
      %895 = vmatmul.f32.gmra.mxu0 %v894
      %v896 = vpop.f32.mrf.mxu0
      %v897 = vadd.f32 %v798, %v896
      %v898 = vand.u32 %v312, 4294901760
      %899 = vmatmul.f32.gmra.mxu0 %v898
      %v900 = vpop.f32.mrf.mxu0
      %v901 = vadd.f32 %v804, %v900
      %902 = vdwg.mxu0
      %v903 = vand.u32 %v360, 4294901760
      %904 = vmatpush.xpose.msra.mxu0 %v903
      %v905 = vand.u32 %v357, 4294901760
      %906 = vmatpush.xpose.msra.mxu0 %v905
      %v907 = vand.u32 %v354, 4294901760
      %908 = vmatpush.xpose.msra.mxu0 %v907
      %v909 = vand.u32 %v351, 4294901760
      %910 = vmatpush.xpose.msra.mxu0 %v909
      %v911 = vand.u32 %v348, 4294901760
      %912 = vmatpush.xpose.msra.mxu0 %v911
      %v913 = vand.u32 %v345, 4294901760
      %914 = vmatpush.xpose.msra.mxu0 %v913
      %v915 = vand.u32 %v342, 4294901760
      %916 = vmatpush.xpose.msra.mxu0 %v915
      %v917 = vand.u32 %v339, 4294901760
      %918 = vmatpush.xpose.msra.mxu0 %v917
      %v919 = vand.u32 %v336, 4294901760
      %920 = vmatpush.xpose.msra.mxu0 %v919
      %v921 = vand.u32 %v333, 4294901760
      %922 = vmatpush.xpose.msra.mxu0 %v921
      %v923 = vand.u32 %v330, 4294901760
      %924 = vmatpush.xpose.msra.mxu0 %v923
      %v925 = vand.u32 %v327, 4294901760
      %926 = vmatpush.xpose.msra.mxu0 %v925
      %v927 = vand.u32 %v324, 4294901760
      %928 = vmatpush.xpose.msra.mxu0 %v927
      %v929 = vand.u32 %v321, 4294901760
      %930 = vmatpush.xpose.msra.mxu0 %v929
      %v931 = vand.u32 %v318, 4294901760
      %932 = vmatpush.xpose.msra.mxu0 %v931
      %v933 = vand.u32 %v315, 4294901760
      %934 = vmatpush.xpose.msra.mxu0 %v933
      %v935 = vand.u32 %v291, 4294901760
      %936 = vmatmul.f32.gmra.mxu0 %v935
      %v937 = vpop.f32.mrf.mxu0
      %v938 = vadd.f32 %v873, %v937
      %v939 = vand.u32 %v294, 4294901760
      %940 = vmatmul.f32.gmra.mxu0 %v939
      %v941 = vpop.f32.mrf.mxu0
      %v942 = vadd.f32 %v877, %v941
      %v943 = vand.u32 %v297, 4294901760
      %944 = vmatmul.f32.gmra.mxu0 %v943
      %v945 = vpop.f32.mrf.mxu0
      %v946 = vadd.f32 %v881, %v945
      %v947 = vand.u32 %v300, 4294901760
      %948 = vmatmul.f32.gmra.mxu0 %v947
      %v949 = vpop.f32.mrf.mxu0
      %v950 = vadd.f32 %v885, %v949
      %v951 = vand.u32 %v303, 4294901760
      %952 = vmatmul.f32.gmra.mxu0 %v951
      %v953 = vpop.f32.mrf.mxu0
      %v954 = vadd.f32 %v889, %v953
      %v955 = vand.u32 %v306, 4294901760
      %956 = vmatmul.f32.gmra.mxu0 %v955
      %v957 = vpop.f32.mrf.mxu0
      %v958 = vadd.f32 %v893, %v957
      %v959 = vand.u32 %v309, 4294901760
      %960 = vmatmul.f32.gmra.mxu0 %v959
      %v961 = vpop.f32.mrf.mxu0
      %v962 = vadd.f32 %v897, %v961
      %v963 = vand.u32 %v312, 4294901760
      %964 = vmatmul.f32.gmra.mxu0 %v963
      %v965 = vpop.f32.mrf.mxu0
      %v966 = vadd.f32 %v901, %v965
      %967 = vdwg.mxu0
      %v968 = vand.u32 %v408, 4294901760
      %969 = vmatpush.xpose.msra.mxu0 %v968
      %v970 = vand.u32 %v405, 4294901760
      %971 = vmatpush.xpose.msra.mxu0 %v970
      %v972 = vand.u32 %v402, 4294901760
      %973 = vmatpush.xpose.msra.mxu0 %v972
      %v974 = vand.u32 %v399, 4294901760
      %975 = vmatpush.xpose.msra.mxu0 %v974
      %v976 = vand.u32 %v396, 4294901760
      %977 = vmatpush.xpose.msra.mxu0 %v976
      %v978 = vand.u32 %v393, 4294901760
      %979 = vmatpush.xpose.msra.mxu0 %v978
      %v980 = vand.u32 %v390, 4294901760
      %981 = vmatpush.xpose.msra.mxu0 %v980
      %v982 = vand.u32 %v387, 4294901760
      %983 = vmatpush.xpose.msra.mxu0 %v982
      %v984 = vand.u32 %v384, 4294901760
      %985 = vmatpush.xpose.msra.mxu0 %v984
      %v986 = vand.u32 %v381, 4294901760
      %987 = vmatpush.xpose.msra.mxu0 %v986
      %v988 = vand.u32 %v378, 4294901760
      %989 = vmatpush.xpose.msra.mxu0 %v988
      %v990 = vand.u32 %v375, 4294901760
      %991 = vmatpush.xpose.msra.mxu0 %v990
      %v992 = vand.u32 %v372, 4294901760
      %993 = vmatpush.xpose.msra.mxu0 %v992
      %v994 = vand.u32 %v369, 4294901760
      %995 = vmatpush.xpose.msra.mxu0 %v994
      %v996 = vand.u32 %v366, 4294901760
      %997 = vmatpush.xpose.msra.mxu0 %v996
      %v998 = vand.u32 %v363, 4294901760
      %999 = vmatpush.xpose.msra.mxu0 %v998
      %v1000 = vand.u32 %v291, 4294901760
      %v1001 = vsub.f32 %v291, %v1000
      %v1002 = vand.u32 %v1001, 4294901760
      %v1003 = vsub.f32 %v1001, %v1002
      %v1004 = vand.u32 %v1003, 4294901760
      %1005 = vmatmul.f32.gmra.mxu0 %v1004
      %v1006 = vpop.f32.mrf.mxu0
      %v1007 = vadd.f32 %v252, %v1006
      %v1008 = vand.u32 %v294, 4294901760
      %v1009 = vsub.f32 %v294, %v1008
      %v1010 = vand.u32 %v1009, 4294901760
      %v1011 = vsub.f32 %v1009, %v1010
      %v1012 = vand.u32 %v1011, 4294901760
      %1013 = vmatmul.f32.gmra.mxu0 %v1012
      %v1014 = vpop.f32.mrf.mxu0
      %v1015 = vadd.f32 %v257, %v1014
      %v1016 = vand.u32 %v297, 4294901760
      %v1017 = vsub.f32 %v297, %v1016
      %v1018 = vand.u32 %v1017, 4294901760
      %v1019 = vsub.f32 %v1017, %v1018
      %v1020 = vand.u32 %v1019, 4294901760
      %1021 = vmatmul.f32.gmra.mxu0 %v1020
      %v1022 = vpop.f32.mrf.mxu0
      %v1023 = vadd.f32 %v262, %v1022
      %v1024 = vand.u32 %v300, 4294901760
      %v1025 = vsub.f32 %v300, %v1024
      %v1026 = vand.u32 %v1025, 4294901760
      %v1027 = vsub.f32 %v1025, %v1026
      %v1028 = vand.u32 %v1027, 4294901760
      %1029 = vmatmul.f32.gmra.mxu0 %v1028
      %v1030 = vpop.f32.mrf.mxu0
      %v1031 = vadd.f32 %v267, %v1030
      %v1032 = vand.u32 %v303, 4294901760
      %v1033 = vsub.f32 %v303, %v1032
      %v1034 = vand.u32 %v1033, 4294901760
      %v1035 = vsub.f32 %v1033, %v1034
      %v1036 = vand.u32 %v1035, 4294901760
      %1037 = vmatmul.f32.gmra.mxu0 %v1036
      %v1038 = vpop.f32.mrf.mxu0
      %v1039 = vadd.f32 %v272, %v1038
      %v1040 = vand.u32 %v306, 4294901760
      %v1041 = vsub.f32 %v306, %v1040
      %v1042 = vand.u32 %v1041, 4294901760
      %v1043 = vsub.f32 %v1041, %v1042
      %v1044 = vand.u32 %v1043, 4294901760
      %1045 = vmatmul.f32.gmra.mxu0 %v1044
      %v1046 = vpop.f32.mrf.mxu0
      %v1047 = vadd.f32 %v277, %v1046
      %v1048 = vand.u32 %v309, 4294901760
      %v1049 = vsub.f32 %v309, %v1048
      %v1050 = vand.u32 %v1049, 4294901760
      %v1051 = vsub.f32 %v1049, %v1050
      %v1052 = vand.u32 %v1051, 4294901760
      %1053 = vmatmul.f32.gmra.mxu0 %v1052
      %v1054 = vpop.f32.mrf.mxu0
      %v1055 = vadd.f32 %v282, %v1054
      %v1056 = vand.u32 %v312, 4294901760
      %v1057 = vsub.f32 %v312, %v1056
      %v1058 = vand.u32 %v1057, 4294901760
      %v1059 = vsub.f32 %v1057, %v1058
      %v1060 = vand.u32 %v1059, 4294901760
      %1061 = vmatmul.f32.gmra.mxu0 %v1060
      %v1062 = vpop.f32.mrf.mxu0
      %v1063 = vadd.f32 %v287, %v1062
      %1064 = vdwg.mxu0
      %v1065 = vand.u32 %v408, 4294901760
      %v1066 = vsub.f32 %v408, %v1065
      %v1067 = vand.u32 %v1066, 4294901760
      %v1068 = vsub.f32 %v1066, %v1067
      %v1069 = vand.u32 %v1068, 4294901760
      %1070 = vmatpush.xpose.msra.mxu0 %v1069
      %v1071 = vand.u32 %v405, 4294901760
      %v1072 = vsub.f32 %v405, %v1071
      %v1073 = vand.u32 %v1072, 4294901760
      %v1074 = vsub.f32 %v1072, %v1073
      %v1075 = vand.u32 %v1074, 4294901760
      %1076 = vmatpush.xpose.msra.mxu0 %v1075
      %v1077 = vand.u32 %v402, 4294901760
      %v1078 = vsub.f32 %v402, %v1077
      %v1079 = vand.u32 %v1078, 4294901760
      %v1080 = vsub.f32 %v1078, %v1079
      %v1081 = vand.u32 %v1080, 4294901760
      %1082 = vmatpush.xpose.msra.mxu0 %v1081
      %v1083 = vand.u32 %v399, 4294901760
      %v1084 = vsub.f32 %v399, %v1083
      %v1085 = vand.u32 %v1084, 4294901760
      %v1086 = vsub.f32 %v1084, %v1085
      %v1087 = vand.u32 %v1086, 4294901760
      %1088 = vmatpush.xpose.msra.mxu0 %v1087
      %v1089 = vand.u32 %v396, 4294901760
      %v1090 = vsub.f32 %v396, %v1089
      %v1091 = vand.u32 %v1090, 4294901760
      %v1092 = vsub.f32 %v1090, %v1091
      %v1093 = vand.u32 %v1092, 4294901760
      %1094 = vmatpush.xpose.msra.mxu0 %v1093
      %v1095 = vand.u32 %v393, 4294901760
      %v1096 = vsub.f32 %v393, %v1095
      %v1097 = vand.u32 %v1096, 4294901760
      %v1098 = vsub.f32 %v1096, %v1097
      %v1099 = vand.u32 %v1098, 4294901760
      %1100 = vmatpush.xpose.msra.mxu0 %v1099
      %v1101 = vand.u32 %v390, 4294901760
      %v1102 = vsub.f32 %v390, %v1101
      %v1103 = vand.u32 %v1102, 4294901760
      %v1104 = vsub.f32 %v1102, %v1103
      %v1105 = vand.u32 %v1104, 4294901760
      %1106 = vmatpush.xpose.msra.mxu0 %v1105
      %v1107 = vand.u32 %v387, 4294901760
      %v1108 = vsub.f32 %v387, %v1107
      %v1109 = vand.u32 %v1108, 4294901760
      %v1110 = vsub.f32 %v1108, %v1109
      %v1111 = vand.u32 %v1110, 4294901760
      %1112 = vmatpush.xpose.msra.mxu0 %v1111
      %v1113 = vand.u32 %v384, 4294901760
      %v1114 = vsub.f32 %v384, %v1113
      %v1115 = vand.u32 %v1114, 4294901760
      %v1116 = vsub.f32 %v1114, %v1115
      %v1117 = vand.u32 %v1116, 4294901760
      %1118 = vmatpush.xpose.msra.mxu0 %v1117
      %v1119 = vand.u32 %v381, 4294901760
      %v1120 = vsub.f32 %v381, %v1119
      %v1121 = vand.u32 %v1120, 4294901760
      %v1122 = vsub.f32 %v1120, %v1121
      %v1123 = vand.u32 %v1122, 4294901760
      %1124 = vmatpush.xpose.msra.mxu0 %v1123
      %v1125 = vand.u32 %v378, 4294901760
      %v1126 = vsub.f32 %v378, %v1125
      %v1127 = vand.u32 %v1126, 4294901760
      %v1128 = vsub.f32 %v1126, %v1127
      %v1129 = vand.u32 %v1128, 4294901760
      %1130 = vmatpush.xpose.msra.mxu0 %v1129
      %v1131 = vand.u32 %v375, 4294901760
      %v1132 = vsub.f32 %v375, %v1131
      %v1133 = vand.u32 %v1132, 4294901760
      %v1134 = vsub.f32 %v1132, %v1133
      %v1135 = vand.u32 %v1134, 4294901760
      %1136 = vmatpush.xpose.msra.mxu0 %v1135
      %v1137 = vand.u32 %v372, 4294901760
      %v1138 = vsub.f32 %v372, %v1137
      %v1139 = vand.u32 %v1138, 4294901760
      %v1140 = vsub.f32 %v1138, %v1139
      %v1141 = vand.u32 %v1140, 4294901760
      %1142 = vmatpush.xpose.msra.mxu0 %v1141
      %v1143 = vand.u32 %v369, 4294901760
      %v1144 = vsub.f32 %v369, %v1143
      %v1145 = vand.u32 %v1144, 4294901760
      %v1146 = vsub.f32 %v1144, %v1145
      %v1147 = vand.u32 %v1146, 4294901760
      %1148 = vmatpush.xpose.msra.mxu0 %v1147
      %v1149 = vand.u32 %v366, 4294901760
      %v1150 = vsub.f32 %v366, %v1149
      %v1151 = vand.u32 %v1150, 4294901760
      %v1152 = vsub.f32 %v1150, %v1151
      %v1153 = vand.u32 %v1152, 4294901760
      %1154 = vmatpush.xpose.msra.mxu0 %v1153
      %v1155 = vand.u32 %v363, 4294901760
      %v1156 = vsub.f32 %v363, %v1155
      %v1157 = vand.u32 %v1156, 4294901760
      %v1158 = vsub.f32 %v1156, %v1157
      %v1159 = vand.u32 %v1158, 4294901760
      %1160 = vmatpush.xpose.msra.mxu0 %v1159
      %v1161 = vand.u32 %v291, 4294901760
      %1162 = vmatmul.f32.gmra.mxu0 %v1161
      %v1163 = vpop.f32.mrf.mxu0
      %v1164 = vadd.f32 %v1007, %v1163
      %v1165 = vand.u32 %v294, 4294901760
      %1166 = vmatmul.f32.gmra.mxu0 %v1165
      %v1167 = vpop.f32.mrf.mxu0
      %v1168 = vadd.f32 %v1015, %v1167
      %v1169 = vand.u32 %v297, 4294901760
      %1170 = vmatmul.f32.gmra.mxu0 %v1169
      %v1171 = vpop.f32.mrf.mxu0
      %v1172 = vadd.f32 %v1023, %v1171
      %v1173 = vand.u32 %v300, 4294901760
      %1174 = vmatmul.f32.gmra.mxu0 %v1173
      %v1175 = vpop.f32.mrf.mxu0
      %v1176 = vadd.f32 %v1031, %v1175
      %v1177 = vand.u32 %v303, 4294901760
      %1178 = vmatmul.f32.gmra.mxu0 %v1177
      %v1179 = vpop.f32.mrf.mxu0
      %v1180 = vadd.f32 %v1039, %v1179
      %v1181 = vand.u32 %v306, 4294901760
      %1182 = vmatmul.f32.gmra.mxu0 %v1181
      %v1183 = vpop.f32.mrf.mxu0
      %v1184 = vadd.f32 %v1047, %v1183
      %v1185 = vand.u32 %v309, 4294901760
      %1186 = vmatmul.f32.gmra.mxu0 %v1185
      %v1187 = vpop.f32.mrf.mxu0
      %v1188 = vadd.f32 %v1055, %v1187
      %v1189 = vand.u32 %v312, 4294901760
      %1190 = vmatmul.f32.gmra.mxu0 %v1189
      %v1191 = vpop.f32.mrf.mxu0
      %v1192 = vadd.f32 %v1063, %v1191
      %1193 = vdwg.mxu0
      %v1194 = vand.u32 %v408, 4294901760
      %v1195 = vsub.f32 %v408, %v1194
      %1196 = vmatpush.xpose.msra.mxu0 %v1195
      %v1197 = vand.u32 %v405, 4294901760
      %v1198 = vsub.f32 %v405, %v1197
      %1199 = vmatpush.xpose.msra.mxu0 %v1198
      %v1200 = vand.u32 %v402, 4294901760
      %v1201 = vsub.f32 %v402, %v1200
      %1202 = vmatpush.xpose.msra.mxu0 %v1201
      %v1203 = vand.u32 %v399, 4294901760
      %v1204 = vsub.f32 %v399, %v1203
      %1205 = vmatpush.xpose.msra.mxu0 %v1204
      %v1206 = vand.u32 %v396, 4294901760
      %v1207 = vsub.f32 %v396, %v1206
      %1208 = vmatpush.xpose.msra.mxu0 %v1207
      %v1209 = vand.u32 %v393, 4294901760
      %v1210 = vsub.f32 %v393, %v1209
      %1211 = vmatpush.xpose.msra.mxu0 %v1210
      %v1212 = vand.u32 %v390, 4294901760
      %v1213 = vsub.f32 %v390, %v1212
      %1214 = vmatpush.xpose.msra.mxu0 %v1213
      %v1215 = vand.u32 %v387, 4294901760
      %v1216 = vsub.f32 %v387, %v1215
      %1217 = vmatpush.xpose.msra.mxu0 %v1216
      %v1218 = vand.u32 %v384, 4294901760
      %v1219 = vsub.f32 %v384, %v1218
      %1220 = vmatpush.xpose.msra.mxu0 %v1219
      %v1221 = vand.u32 %v381, 4294901760
      %v1222 = vsub.f32 %v381, %v1221
      %1223 = vmatpush.xpose.msra.mxu0 %v1222
      %v1224 = vand.u32 %v378, 4294901760
      %v1225 = vsub.f32 %v378, %v1224
      %1226 = vmatpush.xpose.msra.mxu0 %v1225
      %v1227 = vand.u32 %v375, 4294901760
      %v1228 = vsub.f32 %v375, %v1227
      %1229 = vmatpush.xpose.msra.mxu0 %v1228
      %v1230 = vand.u32 %v372, 4294901760
      %v1231 = vsub.f32 %v372, %v1230
      %1232 = vmatpush.xpose.msra.mxu0 %v1231
      %v1233 = vand.u32 %v369, 4294901760
      %v1234 = vsub.f32 %v369, %v1233
      %1235 = vmatpush.xpose.msra.mxu0 %v1234
      %v1236 = vand.u32 %v366, 4294901760
      %v1237 = vsub.f32 %v366, %v1236
      %1238 = vmatpush.xpose.msra.mxu0 %v1237
      %v1239 = vand.u32 %v363, 4294901760
      %v1240 = vsub.f32 %v363, %v1239
      %1241 = vmatpush.xpose.msra.mxu0 %v1240
      %v1242 = vand.u32 %v291, 4294901760
      %v1243 = vsub.f32 %v291, %v1242
      %1244 = vmatmul.f32.gmra.mxu0 %v1243
      %v1245 = vpop.f32.mrf.mxu0
      %v1246 = vadd.f32 %v1164, %v1245
      %v1247 = vand.u32 %v294, 4294901760
      %v1248 = vsub.f32 %v294, %v1247
      %1249 = vmatmul.f32.gmra.mxu0 %v1248
      %v1250 = vpop.f32.mrf.mxu0
      %v1251 = vadd.f32 %v1168, %v1250
      %v1252 = vand.u32 %v297, 4294901760
      %v1253 = vsub.f32 %v297, %v1252
      %1254 = vmatmul.f32.gmra.mxu0 %v1253
      %v1255 = vpop.f32.mrf.mxu0
      %v1256 = vadd.f32 %v1172, %v1255
      %v1257 = vand.u32 %v300, 4294901760
      %v1258 = vsub.f32 %v300, %v1257
      %1259 = vmatmul.f32.gmra.mxu0 %v1258
      %v1260 = vpop.f32.mrf.mxu0
      %v1261 = vadd.f32 %v1176, %v1260
      %v1262 = vand.u32 %v303, 4294901760
      %v1263 = vsub.f32 %v303, %v1262
      %1264 = vmatmul.f32.gmra.mxu0 %v1263
      %v1265 = vpop.f32.mrf.mxu0
      %v1266 = vadd.f32 %v1180, %v1265
      %v1267 = vand.u32 %v306, 4294901760
      %v1268 = vsub.f32 %v306, %v1267
      %1269 = vmatmul.f32.gmra.mxu0 %v1268
      %v1270 = vpop.f32.mrf.mxu0
      %v1271 = vadd.f32 %v1184, %v1270
      %v1272 = vand.u32 %v309, 4294901760
      %v1273 = vsub.f32 %v309, %v1272
      %1274 = vmatmul.f32.gmra.mxu0 %v1273
      %v1275 = vpop.f32.mrf.mxu0
      %v1276 = vadd.f32 %v1188, %v1275
      %v1277 = vand.u32 %v312, 4294901760
      %v1278 = vsub.f32 %v312, %v1277
      %1279 = vmatmul.f32.gmra.mxu0 %v1278
      %v1280 = vpop.f32.mrf.mxu0
      %v1281 = vadd.f32 %v1192, %v1280
      %1282 = vdwg.mxu0
      %v1283 = vand.u32 %v408, 4294901760
      %1284 = vmatpush.xpose.msra.mxu0 %v1283
      %v1285 = vand.u32 %v405, 4294901760
      %1286 = vmatpush.xpose.msra.mxu0 %v1285
      %v1287 = vand.u32 %v402, 4294901760
      %1288 = vmatpush.xpose.msra.mxu0 %v1287
      %v1289 = vand.u32 %v399, 4294901760
      %1290 = vmatpush.xpose.msra.mxu0 %v1289
      %v1291 = vand.u32 %v396, 4294901760
      %1292 = vmatpush.xpose.msra.mxu0 %v1291
      %v1293 = vand.u32 %v393, 4294901760
      %1294 = vmatpush.xpose.msra.mxu0 %v1293
      %v1295 = vand.u32 %v390, 4294901760
      %1296 = vmatpush.xpose.msra.mxu0 %v1295
      %v1297 = vand.u32 %v387, 4294901760
      %1298 = vmatpush.xpose.msra.mxu0 %v1297
      %v1299 = vand.u32 %v384, 4294901760
      %1300 = vmatpush.xpose.msra.mxu0 %v1299
      %v1301 = vand.u32 %v381, 4294901760
      %1302 = vmatpush.xpose.msra.mxu0 %v1301
      %v1303 = vand.u32 %v378, 4294901760
      %1304 = vmatpush.xpose.msra.mxu0 %v1303
      %v1305 = vand.u32 %v375, 4294901760
      %1306 = vmatpush.xpose.msra.mxu0 %v1305
      %v1307 = vand.u32 %v372, 4294901760
      %1308 = vmatpush.xpose.msra.mxu0 %v1307
      %v1309 = vand.u32 %v369, 4294901760
      %1310 = vmatpush.xpose.msra.mxu0 %v1309
      %v1311 = vand.u32 %v366, 4294901760
      %1312 = vmatpush.xpose.msra.mxu0 %v1311
      %v1313 = vand.u32 %v363, 4294901760
      %1314 = vmatpush.xpose.msra.mxu0 %v1313
      %v1315 = vand.u32 %v291, 4294901760
      %v1316 = vsub.f32 %v291, %v1315
      %v1317 = vand.u32 %v1316, 4294901760
      %1318 = vmatmul.f32.gmra.mxu0 %v1317
      %v1319 = vpop.f32.mrf.mxu0
      %v1320 = vadd.f32 %v1246, %v1319
      %v1321 = vand.u32 %v294, 4294901760
      %v1322 = vsub.f32 %v294, %v1321
      %v1323 = vand.u32 %v1322, 4294901760
      %1324 = vmatmul.f32.gmra.mxu0 %v1323
      %v1325 = vpop.f32.mrf.mxu0
      %v1326 = vadd.f32 %v1251, %v1325
      %v1327 = vand.u32 %v297, 4294901760
      %v1328 = vsub.f32 %v297, %v1327
      %v1329 = vand.u32 %v1328, 4294901760
      %1330 = vmatmul.f32.gmra.mxu0 %v1329
      %v1331 = vpop.f32.mrf.mxu0
      %v1332 = vadd.f32 %v1256, %v1331
      %v1333 = vand.u32 %v300, 4294901760
      %v1334 = vsub.f32 %v300, %v1333
      %v1335 = vand.u32 %v1334, 4294901760
      %1336 = vmatmul.f32.gmra.mxu0 %v1335
      %v1337 = vpop.f32.mrf.mxu0
      %v1338 = vadd.f32 %v1261, %v1337
      %v1339 = vand.u32 %v303, 4294901760
      %v1340 = vsub.f32 %v303, %v1339
      %v1341 = vand.u32 %v1340, 4294901760
      %1342 = vmatmul.f32.gmra.mxu0 %v1341
      %v1343 = vpop.f32.mrf.mxu0
      %v1344 = vadd.f32 %v1266, %v1343
      %v1345 = vand.u32 %v306, 4294901760
      %v1346 = vsub.f32 %v306, %v1345
      %v1347 = vand.u32 %v1346, 4294901760
      %1348 = vmatmul.f32.gmra.mxu0 %v1347
      %v1349 = vpop.f32.mrf.mxu0
      %v1350 = vadd.f32 %v1271, %v1349
      %v1351 = vand.u32 %v309, 4294901760
      %v1352 = vsub.f32 %v309, %v1351
      %v1353 = vand.u32 %v1352, 4294901760
      %1354 = vmatmul.f32.gmra.mxu0 %v1353
      %v1355 = vpop.f32.mrf.mxu0
      %v1356 = vadd.f32 %v1276, %v1355
      %v1357 = vand.u32 %v312, 4294901760
      %v1358 = vsub.f32 %v312, %v1357
      %v1359 = vand.u32 %v1358, 4294901760
      %1360 = vmatmul.f32.gmra.mxu0 %v1359
      %v1361 = vpop.f32.mrf.mxu0
      %v1362 = vadd.f32 %v1281, %v1361
      %1363 = vdwg.mxu0
      %v1364 = vand.u32 %v408, 4294901760
      %v1365 = vsub.f32 %v408, %v1364
      %v1366 = vand.u32 %v1365, 4294901760
      %1367 = vmatpush.xpose.msra.mxu0 %v1366
      %v1368 = vand.u32 %v405, 4294901760
      %v1369 = vsub.f32 %v405, %v1368
      %v1370 = vand.u32 %v1369, 4294901760
      %1371 = vmatpush.xpose.msra.mxu0 %v1370
      %v1372 = vand.u32 %v402, 4294901760
      %v1373 = vsub.f32 %v402, %v1372
      %v1374 = vand.u32 %v1373, 4294901760
      %1375 = vmatpush.xpose.msra.mxu0 %v1374
      %v1376 = vand.u32 %v399, 4294901760
      %v1377 = vsub.f32 %v399, %v1376
      %v1378 = vand.u32 %v1377, 4294901760
      %1379 = vmatpush.xpose.msra.mxu0 %v1378
      %v1380 = vand.u32 %v396, 4294901760
      %v1381 = vsub.f32 %v396, %v1380
      %v1382 = vand.u32 %v1381, 4294901760
      %1383 = vmatpush.xpose.msra.mxu0 %v1382
      %v1384 = vand.u32 %v393, 4294901760
      %v1385 = vsub.f32 %v393, %v1384
      %v1386 = vand.u32 %v1385, 4294901760
      %1387 = vmatpush.xpose.msra.mxu0 %v1386
      %v1388 = vand.u32 %v390, 4294901760
      %v1389 = vsub.f32 %v390, %v1388
      %v1390 = vand.u32 %v1389, 4294901760
      %1391 = vmatpush.xpose.msra.mxu0 %v1390
      %v1392 = vand.u32 %v387, 4294901760
      %v1393 = vsub.f32 %v387, %v1392
      %v1394 = vand.u32 %v1393, 4294901760
      %1395 = vmatpush.xpose.msra.mxu0 %v1394
      %v1396 = vand.u32 %v384, 4294901760
      %v1397 = vsub.f32 %v384, %v1396
      %v1398 = vand.u32 %v1397, 4294901760
      %1399 = vmatpush.xpose.msra.mxu0 %v1398
      %v1400 = vand.u32 %v381, 4294901760
      %v1401 = vsub.f32 %v381, %v1400
      %v1402 = vand.u32 %v1401, 4294901760
      %1403 = vmatpush.xpose.msra.mxu0 %v1402
      %v1404 = vand.u32 %v378, 4294901760
      %v1405 = vsub.f32 %v378, %v1404
      %v1406 = vand.u32 %v1405, 4294901760
      %1407 = vmatpush.xpose.msra.mxu0 %v1406
      %v1408 = vand.u32 %v375, 4294901760
      %v1409 = vsub.f32 %v375, %v1408
      %v1410 = vand.u32 %v1409, 4294901760
      %1411 = vmatpush.xpose.msra.mxu0 %v1410
      %v1412 = vand.u32 %v372, 4294901760
      %v1413 = vsub.f32 %v372, %v1412
      %v1414 = vand.u32 %v1413, 4294901760
      %1415 = vmatpush.xpose.msra.mxu0 %v1414
      %v1416 = vand.u32 %v369, 4294901760
      %v1417 = vsub.f32 %v369, %v1416
      %v1418 = vand.u32 %v1417, 4294901760
      %1419 = vmatpush.xpose.msra.mxu0 %v1418
      %v1420 = vand.u32 %v366, 4294901760
      %v1421 = vsub.f32 %v366, %v1420
      %v1422 = vand.u32 %v1421, 4294901760
      %1423 = vmatpush.xpose.msra.mxu0 %v1422
      %v1424 = vand.u32 %v363, 4294901760
      %v1425 = vsub.f32 %v363, %v1424
      %v1426 = vand.u32 %v1425, 4294901760
      %1427 = vmatpush.xpose.msra.mxu0 %v1426
      %v1428 = vand.u32 %v291, 4294901760
      %1429 = vmatmul.f32.gmra.mxu0 %v1428
      %v1430 = vpop.f32.mrf.mxu0
      %v1431 = vadd.f32 %v1320, %v1430
      %v1432 = vand.u32 %v294, 4294901760
      %1433 = vmatmul.f32.gmra.mxu0 %v1432
      %v1434 = vpop.f32.mrf.mxu0
      %v1435 = vadd.f32 %v1326, %v1434
      %v1436 = vand.u32 %v297, 4294901760
      %1437 = vmatmul.f32.gmra.mxu0 %v1436
      %v1438 = vpop.f32.mrf.mxu0
      %v1439 = vadd.f32 %v1332, %v1438
      %v1440 = vand.u32 %v300, 4294901760
      %1441 = vmatmul.f32.gmra.mxu0 %v1440
      %v1442 = vpop.f32.mrf.mxu0
      %v1443 = vadd.f32 %v1338, %v1442
      %v1444 = vand.u32 %v303, 4294901760
      %1445 = vmatmul.f32.gmra.mxu0 %v1444
      %v1446 = vpop.f32.mrf.mxu0
      %v1447 = vadd.f32 %v1344, %v1446
      %v1448 = vand.u32 %v306, 4294901760
      %1449 = vmatmul.f32.gmra.mxu0 %v1448
      %v1450 = vpop.f32.mrf.mxu0
      %v1451 = vadd.f32 %v1350, %v1450
      %v1452 = vand.u32 %v309, 4294901760
      %1453 = vmatmul.f32.gmra.mxu0 %v1452
      %v1454 = vpop.f32.mrf.mxu0
      %v1455 = vadd.f32 %v1356, %v1454
      %v1456 = vand.u32 %v312, 4294901760
      %1457 = vmatmul.f32.gmra.mxu0 %v1456
      %v1458 = vpop.f32.mrf.mxu0
      %v1459 = vadd.f32 %v1362, %v1458
      %1460 = vdwg.mxu0
      %v1461 = vand.u32 %v408, 4294901760
      %1462 = vmatpush.xpose.msra.mxu0 %v1461
      %v1463 = vand.u32 %v405, 4294901760
      %1464 = vmatpush.xpose.msra.mxu0 %v1463
      %v1465 = vand.u32 %v402, 4294901760
      %1466 = vmatpush.xpose.msra.mxu0 %v1465
      %v1467 = vand.u32 %v399, 4294901760
      %1468 = vmatpush.xpose.msra.mxu0 %v1467
      %v1469 = vand.u32 %v396, 4294901760
      %1470 = vmatpush.xpose.msra.mxu0 %v1469
      %v1471 = vand.u32 %v393, 4294901760
      %1472 = vmatpush.xpose.msra.mxu0 %v1471
      %v1473 = vand.u32 %v390, 4294901760
      %1474 = vmatpush.xpose.msra.mxu0 %v1473
      %v1475 = vand.u32 %v387, 4294901760
      %1476 = vmatpush.xpose.msra.mxu0 %v1475
      %v1477 = vand.u32 %v384, 4294901760
      %1478 = vmatpush.xpose.msra.mxu0 %v1477
      %v1479 = vand.u32 %v381, 4294901760
      %1480 = vmatpush.xpose.msra.mxu0 %v1479
      %v1481 = vand.u32 %v378, 4294901760
      %1482 = vmatpush.xpose.msra.mxu0 %v1481
      %v1483 = vand.u32 %v375, 4294901760
      %1484 = vmatpush.xpose.msra.mxu0 %v1483
      %v1485 = vand.u32 %v372, 4294901760
      %1486 = vmatpush.xpose.msra.mxu0 %v1485
      %v1487 = vand.u32 %v369, 4294901760
      %1488 = vmatpush.xpose.msra.mxu0 %v1487
      %v1489 = vand.u32 %v366, 4294901760
      %1490 = vmatpush.xpose.msra.mxu0 %v1489
      %v1491 = vand.u32 %v363, 4294901760
      %1492 = vmatpush.xpose.msra.mxu0 %v1491
      %v1493 = vand.u32 %v291, 4294901760
      %1494 = vmatmul.f32.gmra.mxu0 %v1493
      %v1495 = vpop.f32.mrf.mxu0
      %v1496 = vadd.f32 %v1431, %v1495
      %v1497 = vand.u32 %v294, 4294901760
      %1498 = vmatmul.f32.gmra.mxu0 %v1497
      %v1499 = vpop.f32.mrf.mxu0
      %v1500 = vadd.f32 %v1435, %v1499
      %v1501 = vand.u32 %v297, 4294901760
      %1502 = vmatmul.f32.gmra.mxu0 %v1501
      %v1503 = vpop.f32.mrf.mxu0
      %v1504 = vadd.f32 %v1439, %v1503
      %v1505 = vand.u32 %v300, 4294901760
      %1506 = vmatmul.f32.gmra.mxu0 %v1505
      %v1507 = vpop.f32.mrf.mxu0
      %v1508 = vadd.f32 %v1443, %v1507
      %v1509 = vand.u32 %v303, 4294901760
      %1510 = vmatmul.f32.gmra.mxu0 %v1509
      %v1511 = vpop.f32.mrf.mxu0
      %v1512 = vadd.f32 %v1447, %v1511
      %v1513 = vand.u32 %v306, 4294901760
      %1514 = vmatmul.f32.gmra.mxu0 %v1513
      %v1515 = vpop.f32.mrf.mxu0
      %v1516 = vadd.f32 %v1451, %v1515
      %v1517 = vand.u32 %v309, 4294901760
      %1518 = vmatmul.f32.gmra.mxu0 %v1517
      %v1519 = vpop.f32.mrf.mxu0
      %v1520 = vadd.f32 %v1455, %v1519
      %v1521 = vand.u32 %v312, 4294901760
      %1522 = vmatmul.f32.gmra.mxu0 %v1521
      %v1523 = vpop.f32.mrf.mxu0
      %v1524 = vadd.f32 %v1459, %v1523
      %1525 = vdwg.mxu0
      %v1526 = vmax.f32 %v938, 0.0
      %v1527 = vmax.f32 %v1496, 0.0
      %v1528 = vmax.f32 %v942, 0.0
      %v1529 = vmax.f32 %v1500, 0.0
      %v1530 = vmax.f32 %v946, 0.0
      %v1531 = vmax.f32 %v1504, 0.0
      %v1532 = vmax.f32 %v950, 0.0
      %v1533 = vmax.f32 %v1508, 0.0
      %v1534 = vmax.f32 %v954, 0.0
      %v1535 = vmax.f32 %v1512, 0.0
      %v1536 = vmax.f32 %v958, 0.0
      %v1537 = vmax.f32 %v1516, 0.0
      %v1538 = vmax.f32 %v962, 0.0
      %v1539 = vmax.f32 %v1520, 0.0
      %v1540 = vmax.f32 %v966, 0.0
      %v1541 = vmax.f32 %v1524, 0.0
      %s1542 = scalar_lea.vmem %s1, 64
      %v1543 = vld [vmem:[%s1542] sm:$0xff]
      %v1544 = vld [vmem:[%s1542 + $0x8] sm:$0xff]
      %v1545 = vld [vmem:[%s1542 + $0x10] sm:$0xff]
      %v1546 = vld [vmem:[%s1542 + $0x18] sm:$0xff]
      %v1547 = vld [vmem:[%s1542 + $0x20] sm:$0xff]
      %v1548 = vld [vmem:[%s1542 + $0x28] sm:$0xff]
      %v1549 = vld [vmem:[%s1542 + $0x30] sm:$0xff]
      %v1550 = vld [vmem:[%s1542 + $0x38] sm:$0xff]
      %1551 = vset.pattern.permute.xlu0 1
      %1552 = vperm.xlu0 %1551, %v241
      %v1553 = vpop.permute.xlu0 %1552
      %1555 = vset.pattern.permute.xlu0 1
      %1556 = vperm.xlu0 %1555, %v242
      %v1557 = vpop.permute.xlu0 %1556
      %1559 = vset.pattern.permute.xlu0 1
      %1560 = vperm.xlu0 %1559, %v243
      %v1561 = vpop.permute.xlu0 %1560
      %1563 = vset.pattern.permute.xlu0 1
      %1564 = vperm.xlu0 %1563, %v244
      %v1565 = vpop.permute.xlu0 %1564
      %1567 = vset.pattern.permute.xlu0 1
      %1568 = vperm.xlu0 %1567, %v245
      %v1569 = vpop.permute.xlu0 %1568
      %1571 = vset.pattern.permute.xlu0 1
      %1572 = vperm.xlu0 %1571, %v246
      %v1573 = vpop.permute.xlu0 %1572
      %1575 = vset.pattern.permute.xlu0 1
      %1576 = vperm.xlu0 %1575, %v247
      %v1577 = vpop.permute.xlu0 %1576
      %1579 = vset.pattern.permute.xlu0 1
      %1580 = vperm.xlu0 %1579, %v248
      %v1581 = vpop.permute.xlu0 %1580
      %vm1583 = vcmask 523264
      %v1585 = vsel %vm1583, %v1543, 0
      %v1588 = vsel %vm1583, %v1544, 0
      %v1591 = vsel %vm1583, %v1545, 0
      %v1594 = vsel %vm1583, %v1546, 0
      %v1597 = vsel %vm1583, %v1547, 0
      %v1600 = vsel %vm1583, %v1548, 0
      %v1603 = vsel %vm1583, %v1549, 0
      %v1606 = vsel %vm1583, %v1550, 0
      %1608 = vmatpush.msra.mxu0 0.0
      %1609 = vmatpush.msra.mxu0 0.0
      %1610 = vmatpush.msra.mxu0 0.0
      %1611 = vmatpush.msra.mxu0 0.0
      %1612 = vmatpush.msra.mxu0 0.0
      %1613 = vmatpush.msra.mxu0 0.0
      %1614 = vmatpush.msra.mxu0 0.0
      %1615 = vmatpush.msra.mxu0 0.0
      %v1616 = vand.u32 %v1540, 4294901760
      %1617 = vmatpush.msra.mxu0 %v1616
      %v1618 = vand.u32 %v1538, 4294901760
      %1619 = vmatpush.msra.mxu0 %v1618
      %v1620 = vand.u32 %v1536, 4294901760
      %1621 = vmatpush.msra.mxu0 %v1620
      %v1622 = vand.u32 %v1534, 4294901760
      %1623 = vmatpush.msra.mxu0 %v1622
      %v1624 = vand.u32 %v1532, 4294901760
      %1625 = vmatpush.msra.mxu0 %v1624
      %v1626 = vand.u32 %v1530, 4294901760
      %1627 = vmatpush.msra.mxu0 %v1626
      %v1628 = vand.u32 %v1528, 4294901760
      %1629 = vmatpush.msra.mxu0 %v1628
      %v1630 = vand.u32 %v1526, 4294901760
      %1631 = vmatpush.msra.mxu0 %v1630
      %v1632 = vand.u32 %v1585, 4294901760
      %v1633 = vsub.f32 %v1585, %v1632
      %v1634 = vand.u32 %v1633, 4294901760
      %v1635 = vsub.f32 %v1633, %v1634
      %v1636 = vand.u32 %v1635, 4294901760
      %1637 = vmatmul.f32.gmra.mxu0 %v1636
      %v1638 = vpop.f32.mrf.mxu0
      %v1639 = vadd.f32 %v1553, %v1638
      %v1640 = vand.u32 %v1588, 4294901760
      %v1641 = vsub.f32 %v1588, %v1640
      %v1642 = vand.u32 %v1641, 4294901760
      %v1643 = vsub.f32 %v1641, %v1642
      %v1644 = vand.u32 %v1643, 4294901760
      %1645 = vmatmul.f32.gmra.mxu0 %v1644
      %v1646 = vpop.f32.mrf.mxu0
      %v1647 = vadd.f32 %v1557, %v1646
      %v1648 = vand.u32 %v1591, 4294901760
      %v1649 = vsub.f32 %v1591, %v1648
      %v1650 = vand.u32 %v1649, 4294901760
      %v1651 = vsub.f32 %v1649, %v1650
      %v1652 = vand.u32 %v1651, 4294901760
      %1653 = vmatmul.f32.gmra.mxu0 %v1652
      %v1654 = vpop.f32.mrf.mxu0
      %v1655 = vadd.f32 %v1561, %v1654
      %v1656 = vand.u32 %v1594, 4294901760
      %v1657 = vsub.f32 %v1594, %v1656
      %v1658 = vand.u32 %v1657, 4294901760
      %v1659 = vsub.f32 %v1657, %v1658
      %v1660 = vand.u32 %v1659, 4294901760
      %1661 = vmatmul.f32.gmra.mxu0 %v1660
      %v1662 = vpop.f32.mrf.mxu0
      %v1663 = vadd.f32 %v1565, %v1662
      %v1664 = vand.u32 %v1597, 4294901760
      %v1665 = vsub.f32 %v1597, %v1664
      %v1666 = vand.u32 %v1665, 4294901760
      %v1667 = vsub.f32 %v1665, %v1666
      %v1668 = vand.u32 %v1667, 4294901760
      %1669 = vmatmul.f32.gmra.mxu0 %v1668
      %v1670 = vpop.f32.mrf.mxu0
      %v1671 = vadd.f32 %v1569, %v1670
      %v1672 = vand.u32 %v1600, 4294901760
      %v1673 = vsub.f32 %v1600, %v1672
      %v1674 = vand.u32 %v1673, 4294901760
      %v1675 = vsub.f32 %v1673, %v1674
      %v1676 = vand.u32 %v1675, 4294901760
      %1677 = vmatmul.f32.gmra.mxu0 %v1676
      %v1678 = vpop.f32.mrf.mxu0
      %v1679 = vadd.f32 %v1573, %v1678
      %v1680 = vand.u32 %v1603, 4294901760
      %v1681 = vsub.f32 %v1603, %v1680
      %v1682 = vand.u32 %v1681, 4294901760
      %v1683 = vsub.f32 %v1681, %v1682
      %v1684 = vand.u32 %v1683, 4294901760
      %1685 = vmatmul.f32.gmra.mxu0 %v1684
      %v1686 = vpop.f32.mrf.mxu0
      %v1687 = vadd.f32 %v1577, %v1686
      %v1688 = vand.u32 %v1606, 4294901760
      %v1689 = vsub.f32 %v1606, %v1688
      %v1690 = vand.u32 %v1689, 4294901760
      %v1691 = vsub.f32 %v1689, %v1690
      %v1692 = vand.u32 %v1691, 4294901760
      %1693 = vmatmul.f32.gmra.mxu0 %v1692
      %v1694 = vpop.f32.mrf.mxu0
      %v1695 = vadd.f32 %v1581, %v1694
      %1696 = vdwg.mxu0
      %1697 = vmatpush.msra.mxu0 0.0
      %1698 = vmatpush.msra.mxu0 0.0
      %1699 = vmatpush.msra.mxu0 0.0
      %1700 = vmatpush.msra.mxu0 0.0
      %1701 = vmatpush.msra.mxu0 0.0
      %1702 = vmatpush.msra.mxu0 0.0
      %1703 = vmatpush.msra.mxu0 0.0
      %1704 = vmatpush.msra.mxu0 0.0
      %v1705 = vand.u32 %v1540, 4294901760
      %v1706 = vsub.f32 %v1540, %v1705
      %v1707 = vand.u32 %v1706, 4294901760
      %v1708 = vsub.f32 %v1706, %v1707
      %v1709 = vand.u32 %v1708, 4294901760
      %1710 = vmatpush.msra.mxu0 %v1709
      %v1711 = vand.u32 %v1538, 4294901760
      %v1712 = vsub.f32 %v1538, %v1711
      %v1713 = vand.u32 %v1712, 4294901760
      %v1714 = vsub.f32 %v1712, %v1713
      %v1715 = vand.u32 %v1714, 4294901760
      %1716 = vmatpush.msra.mxu0 %v1715
      %v1717 = vand.u32 %v1536, 4294901760
      %v1718 = vsub.f32 %v1536, %v1717
      %v1719 = vand.u32 %v1718, 4294901760
      %v1720 = vsub.f32 %v1718, %v1719
      %v1721 = vand.u32 %v1720, 4294901760
      %1722 = vmatpush.msra.mxu0 %v1721
      %v1723 = vand.u32 %v1534, 4294901760
      %v1724 = vsub.f32 %v1534, %v1723
      %v1725 = vand.u32 %v1724, 4294901760
      %v1726 = vsub.f32 %v1724, %v1725
      %v1727 = vand.u32 %v1726, 4294901760
      %1728 = vmatpush.msra.mxu0 %v1727
      %v1729 = vand.u32 %v1532, 4294901760
      %v1730 = vsub.f32 %v1532, %v1729
      %v1731 = vand.u32 %v1730, 4294901760
      %v1732 = vsub.f32 %v1730, %v1731
      %v1733 = vand.u32 %v1732, 4294901760
      %1734 = vmatpush.msra.mxu0 %v1733
      %v1735 = vand.u32 %v1530, 4294901760
      %v1736 = vsub.f32 %v1530, %v1735
      %v1737 = vand.u32 %v1736, 4294901760
      %v1738 = vsub.f32 %v1736, %v1737
      %v1739 = vand.u32 %v1738, 4294901760
      %1740 = vmatpush.msra.mxu0 %v1739
      %v1741 = vand.u32 %v1528, 4294901760
      %v1742 = vsub.f32 %v1528, %v1741
      %v1743 = vand.u32 %v1742, 4294901760
      %v1744 = vsub.f32 %v1742, %v1743
      %v1745 = vand.u32 %v1744, 4294901760
      %1746 = vmatpush.msra.mxu0 %v1745
      %v1747 = vand.u32 %v1526, 4294901760
      %v1748 = vsub.f32 %v1526, %v1747
      %v1749 = vand.u32 %v1748, 4294901760
      %v1750 = vsub.f32 %v1748, %v1749
      %v1751 = vand.u32 %v1750, 4294901760
      %1752 = vmatpush.msra.mxu0 %v1751
      %v1753 = vand.u32 %v1585, 4294901760
      %1754 = vmatmul.f32.gmra.mxu0 %v1753
      %v1755 = vpop.f32.mrf.mxu0
      %v1756 = vadd.f32 %v1639, %v1755
      %v1757 = vand.u32 %v1588, 4294901760
      %1758 = vmatmul.f32.gmra.mxu0 %v1757
      %v1759 = vpop.f32.mrf.mxu0
      %v1760 = vadd.f32 %v1647, %v1759
      %v1761 = vand.u32 %v1591, 4294901760
      %1762 = vmatmul.f32.gmra.mxu0 %v1761
      %v1763 = vpop.f32.mrf.mxu0
      %v1764 = vadd.f32 %v1655, %v1763
      %v1765 = vand.u32 %v1594, 4294901760
      %1766 = vmatmul.f32.gmra.mxu0 %v1765
      %v1767 = vpop.f32.mrf.mxu0
      %v1768 = vadd.f32 %v1663, %v1767
      %v1769 = vand.u32 %v1597, 4294901760
      %1770 = vmatmul.f32.gmra.mxu0 %v1769
      %v1771 = vpop.f32.mrf.mxu0
      %v1772 = vadd.f32 %v1671, %v1771
      %v1773 = vand.u32 %v1600, 4294901760
      %1774 = vmatmul.f32.gmra.mxu0 %v1773
      %v1775 = vpop.f32.mrf.mxu0
      %v1776 = vadd.f32 %v1679, %v1775
      %v1777 = vand.u32 %v1603, 4294901760
      %1778 = vmatmul.f32.gmra.mxu0 %v1777
      %v1779 = vpop.f32.mrf.mxu0
      %v1780 = vadd.f32 %v1687, %v1779
      %v1781 = vand.u32 %v1606, 4294901760
      %1782 = vmatmul.f32.gmra.mxu0 %v1781
      %v1783 = vpop.f32.mrf.mxu0
      %v1784 = vadd.f32 %v1695, %v1783
      %1785 = vdwg.mxu0
      %1786 = vmatpush.msra.mxu0 0.0
      %1787 = vmatpush.msra.mxu0 0.0
      %1788 = vmatpush.msra.mxu0 0.0
      %1789 = vmatpush.msra.mxu0 0.0
      %1790 = vmatpush.msra.mxu0 0.0
      %1791 = vmatpush.msra.mxu0 0.0
      %1792 = vmatpush.msra.mxu0 0.0
      %1793 = vmatpush.msra.mxu0 0.0
      %v1794 = vand.u32 %v1540, 4294901760
      %v1795 = vsub.f32 %v1540, %v1794
      %1796 = vmatpush.msra.mxu0 %v1795
      %v1797 = vand.u32 %v1538, 4294901760
      %v1798 = vsub.f32 %v1538, %v1797
      %1799 = vmatpush.msra.mxu0 %v1798
      %v1800 = vand.u32 %v1536, 4294901760
      %v1801 = vsub.f32 %v1536, %v1800
      %1802 = vmatpush.msra.mxu0 %v1801
      %v1803 = vand.u32 %v1534, 4294901760
      %v1804 = vsub.f32 %v1534, %v1803
      %1805 = vmatpush.msra.mxu0 %v1804
      %v1806 = vand.u32 %v1532, 4294901760
      %v1807 = vsub.f32 %v1532, %v1806
      %1808 = vmatpush.msra.mxu0 %v1807
      %v1809 = vand.u32 %v1530, 4294901760
      %v1810 = vsub.f32 %v1530, %v1809
      %1811 = vmatpush.msra.mxu0 %v1810
      %v1812 = vand.u32 %v1528, 4294901760
      %v1813 = vsub.f32 %v1528, %v1812
      %1814 = vmatpush.msra.mxu0 %v1813
      %v1815 = vand.u32 %v1526, 4294901760
      %v1816 = vsub.f32 %v1526, %v1815
      %1817 = vmatpush.msra.mxu0 %v1816
      %v1818 = vand.u32 %v1585, 4294901760
      %v1819 = vsub.f32 %v1585, %v1818
      %1820 = vmatmul.f32.gmra.mxu0 %v1819
      %v1821 = vpop.f32.mrf.mxu0
      %v1822 = vadd.f32 %v1756, %v1821
      %v1823 = vand.u32 %v1588, 4294901760
      %v1824 = vsub.f32 %v1588, %v1823
      %1825 = vmatmul.f32.gmra.mxu0 %v1824
      %v1826 = vpop.f32.mrf.mxu0
      %v1827 = vadd.f32 %v1760, %v1826
      %v1828 = vand.u32 %v1591, 4294901760
      %v1829 = vsub.f32 %v1591, %v1828
      %1830 = vmatmul.f32.gmra.mxu0 %v1829
      %v1831 = vpop.f32.mrf.mxu0
      %v1832 = vadd.f32 %v1764, %v1831
      %v1833 = vand.u32 %v1594, 4294901760
      %v1834 = vsub.f32 %v1594, %v1833
      %1835 = vmatmul.f32.gmra.mxu0 %v1834
      %v1836 = vpop.f32.mrf.mxu0
      %v1837 = vadd.f32 %v1768, %v1836
      %v1838 = vand.u32 %v1597, 4294901760
      %v1839 = vsub.f32 %v1597, %v1838
      %1840 = vmatmul.f32.gmra.mxu0 %v1839
      %v1841 = vpop.f32.mrf.mxu0
      %v1842 = vadd.f32 %v1772, %v1841
      %v1843 = vand.u32 %v1600, 4294901760
      %v1844 = vsub.f32 %v1600, %v1843
      %1845 = vmatmul.f32.gmra.mxu0 %v1844
      %v1846 = vpop.f32.mrf.mxu0
      %v1847 = vadd.f32 %v1776, %v1846
      %v1848 = vand.u32 %v1603, 4294901760
      %v1849 = vsub.f32 %v1603, %v1848
      %1850 = vmatmul.f32.gmra.mxu0 %v1849
      %v1851 = vpop.f32.mrf.mxu0
      %v1852 = vadd.f32 %v1780, %v1851
      %v1853 = vand.u32 %v1606, 4294901760
      %v1854 = vsub.f32 %v1606, %v1853
      %1855 = vmatmul.f32.gmra.mxu0 %v1854
      %v1856 = vpop.f32.mrf.mxu0
      %v1857 = vadd.f32 %v1784, %v1856
      %1858 = vdwg.mxu0
      %1859 = vmatpush.msra.mxu0 0.0
      %1860 = vmatpush.msra.mxu0 0.0
      %1861 = vmatpush.msra.mxu0 0.0
      %1862 = vmatpush.msra.mxu0 0.0
      %1863 = vmatpush.msra.mxu0 0.0
      %1864 = vmatpush.msra.mxu0 0.0
      %1865 = vmatpush.msra.mxu0 0.0
      %1866 = vmatpush.msra.mxu0 0.0
      %v1867 = vand.u32 %v1540, 4294901760
      %1868 = vmatpush.msra.mxu0 %v1867
      %v1869 = vand.u32 %v1538, 4294901760
      %1870 = vmatpush.msra.mxu0 %v1869
      %v1871 = vand.u32 %v1536, 4294901760
      %1872 = vmatpush.msra.mxu0 %v1871
      %v1873 = vand.u32 %v1534, 4294901760
      %1874 = vmatpush.msra.mxu0 %v1873
      %v1875 = vand.u32 %v1532, 4294901760
      %1876 = vmatpush.msra.mxu0 %v1875
      %v1877 = vand.u32 %v1530, 4294901760
      %1878 = vmatpush.msra.mxu0 %v1877
      %v1879 = vand.u32 %v1528, 4294901760
      %1880 = vmatpush.msra.mxu0 %v1879
      %v1881 = vand.u32 %v1526, 4294901760
      %1882 = vmatpush.msra.mxu0 %v1881
      %v1883 = vand.u32 %v1585, 4294901760
      %v1884 = vsub.f32 %v1585, %v1883
      %v1885 = vand.u32 %v1884, 4294901760
      %1886 = vmatmul.f32.gmra.mxu0 %v1885
      %v1887 = vpop.f32.mrf.mxu0
      %v1888 = vadd.f32 %v1822, %v1887
      %v1889 = vand.u32 %v1588, 4294901760
      %v1890 = vsub.f32 %v1588, %v1889
      %v1891 = vand.u32 %v1890, 4294901760
      %1892 = vmatmul.f32.gmra.mxu0 %v1891
      %v1893 = vpop.f32.mrf.mxu0
      %v1894 = vadd.f32 %v1827, %v1893
      %v1895 = vand.u32 %v1591, 4294901760
      %v1896 = vsub.f32 %v1591, %v1895
      %v1897 = vand.u32 %v1896, 4294901760
      %1898 = vmatmul.f32.gmra.mxu0 %v1897
      %v1899 = vpop.f32.mrf.mxu0
      %v1900 = vadd.f32 %v1832, %v1899
      %v1901 = vand.u32 %v1594, 4294901760
      %v1902 = vsub.f32 %v1594, %v1901
      %v1903 = vand.u32 %v1902, 4294901760
      %1904 = vmatmul.f32.gmra.mxu0 %v1903
      %v1905 = vpop.f32.mrf.mxu0
      %v1906 = vadd.f32 %v1837, %v1905
      %v1907 = vand.u32 %v1597, 4294901760
      %v1908 = vsub.f32 %v1597, %v1907
      %v1909 = vand.u32 %v1908, 4294901760
      %1910 = vmatmul.f32.gmra.mxu0 %v1909
      %v1911 = vpop.f32.mrf.mxu0
      %v1912 = vadd.f32 %v1842, %v1911
      %v1913 = vand.u32 %v1600, 4294901760
      %v1914 = vsub.f32 %v1600, %v1913
      %v1915 = vand.u32 %v1914, 4294901760
      %1916 = vmatmul.f32.gmra.mxu0 %v1915
      %v1917 = vpop.f32.mrf.mxu0
      %v1918 = vadd.f32 %v1847, %v1917
      %v1919 = vand.u32 %v1603, 4294901760
      %v1920 = vsub.f32 %v1603, %v1919
      %v1921 = vand.u32 %v1920, 4294901760
      %1922 = vmatmul.f32.gmra.mxu0 %v1921
      %v1923 = vpop.f32.mrf.mxu0
      %v1924 = vadd.f32 %v1852, %v1923
      %v1925 = vand.u32 %v1606, 4294901760
      %v1926 = vsub.f32 %v1606, %v1925
      %v1927 = vand.u32 %v1926, 4294901760
      %1928 = vmatmul.f32.gmra.mxu0 %v1927
      %v1929 = vpop.f32.mrf.mxu0
      %v1930 = vadd.f32 %v1857, %v1929
      %1931 = vdwg.mxu0
      %1932 = vmatpush.msra.mxu0 0.0
      %1933 = vmatpush.msra.mxu0 0.0
      %1934 = vmatpush.msra.mxu0 0.0
      %1935 = vmatpush.msra.mxu0 0.0
      %1936 = vmatpush.msra.mxu0 0.0
      %1937 = vmatpush.msra.mxu0 0.0
      %1938 = vmatpush.msra.mxu0 0.0
      %1939 = vmatpush.msra.mxu0 0.0
      %v1940 = vand.u32 %v1540, 4294901760
      %v1941 = vsub.f32 %v1540, %v1940
      %v1942 = vand.u32 %v1941, 4294901760
      %1943 = vmatpush.msra.mxu0 %v1942
      %v1944 = vand.u32 %v1538, 4294901760
      %v1945 = vsub.f32 %v1538, %v1944
      %v1946 = vand.u32 %v1945, 4294901760
      %1947 = vmatpush.msra.mxu0 %v1946
      %v1948 = vand.u32 %v1536, 4294901760
      %v1949 = vsub.f32 %v1536, %v1948
      %v1950 = vand.u32 %v1949, 4294901760
      %1951 = vmatpush.msra.mxu0 %v1950
      %v1952 = vand.u32 %v1534, 4294901760
      %v1953 = vsub.f32 %v1534, %v1952
      %v1954 = vand.u32 %v1953, 4294901760
      %1955 = vmatpush.msra.mxu0 %v1954
      %v1956 = vand.u32 %v1532, 4294901760
      %v1957 = vsub.f32 %v1532, %v1956
      %v1958 = vand.u32 %v1957, 4294901760
      %1959 = vmatpush.msra.mxu0 %v1958
      %v1960 = vand.u32 %v1530, 4294901760
      %v1961 = vsub.f32 %v1530, %v1960
      %v1962 = vand.u32 %v1961, 4294901760
      %1963 = vmatpush.msra.mxu0 %v1962
      %v1964 = vand.u32 %v1528, 4294901760
      %v1965 = vsub.f32 %v1528, %v1964
      %v1966 = vand.u32 %v1965, 4294901760
      %1967 = vmatpush.msra.mxu0 %v1966
      %v1968 = vand.u32 %v1526, 4294901760
      %v1969 = vsub.f32 %v1526, %v1968
      %v1970 = vand.u32 %v1969, 4294901760
      %1971 = vmatpush.msra.mxu0 %v1970
      %v1972 = vand.u32 %v1585, 4294901760
      %1973 = vmatmul.f32.gmra.mxu0 %v1972
      %v1974 = vpop.f32.mrf.mxu0
      %v1975 = vadd.f32 %v1888, %v1974
      %v1976 = vand.u32 %v1588, 4294901760
      %1977 = vmatmul.f32.gmra.mxu0 %v1976
      %v1978 = vpop.f32.mrf.mxu0
      %v1979 = vadd.f32 %v1894, %v1978
      %v1980 = vand.u32 %v1591, 4294901760
      %1981 = vmatmul.f32.gmra.mxu0 %v1980
      %v1982 = vpop.f32.mrf.mxu0
      %v1983 = vadd.f32 %v1900, %v1982
      %v1984 = vand.u32 %v1594, 4294901760
      %1985 = vmatmul.f32.gmra.mxu0 %v1984
      %v1986 = vpop.f32.mrf.mxu0
      %v1987 = vadd.f32 %v1906, %v1986
      %v1988 = vand.u32 %v1597, 4294901760
      %1989 = vmatmul.f32.gmra.mxu0 %v1988
      %v1990 = vpop.f32.mrf.mxu0
      %v1991 = vadd.f32 %v1912, %v1990
      %v1992 = vand.u32 %v1600, 4294901760
      %1993 = vmatmul.f32.gmra.mxu0 %v1992
      %v1994 = vpop.f32.mrf.mxu0
      %v1995 = vadd.f32 %v1918, %v1994
      %v1996 = vand.u32 %v1603, 4294901760
      %1997 = vmatmul.f32.gmra.mxu0 %v1996
      %v1998 = vpop.f32.mrf.mxu0
      %v1999 = vadd.f32 %v1924, %v1998
      %v2000 = vand.u32 %v1606, 4294901760
      %2001 = vmatmul.f32.gmra.mxu0 %v2000
      %v2002 = vpop.f32.mrf.mxu0
      %v2003 = vadd.f32 %v1930, %v2002
      %2004 = vdwg.mxu0
      %2005 = vmatpush.msra.mxu0 0.0
      %2006 = vmatpush.msra.mxu0 0.0
      %2007 = vmatpush.msra.mxu0 0.0
      %2008 = vmatpush.msra.mxu0 0.0
      %2009 = vmatpush.msra.mxu0 0.0
      %2010 = vmatpush.msra.mxu0 0.0
      %2011 = vmatpush.msra.mxu0 0.0
      %2012 = vmatpush.msra.mxu0 0.0
      %v2013 = vand.u32 %v1540, 4294901760
      %2014 = vmatpush.msra.mxu0 %v2013
      %v2015 = vand.u32 %v1538, 4294901760
      %2016 = vmatpush.msra.mxu0 %v2015
      %v2017 = vand.u32 %v1536, 4294901760
      %2018 = vmatpush.msra.mxu0 %v2017
      %v2019 = vand.u32 %v1534, 4294901760
      %2020 = vmatpush.msra.mxu0 %v2019
      %v2021 = vand.u32 %v1532, 4294901760
      %2022 = vmatpush.msra.mxu0 %v2021
      %v2023 = vand.u32 %v1530, 4294901760
      %2024 = vmatpush.msra.mxu0 %v2023
      %v2025 = vand.u32 %v1528, 4294901760
      %2026 = vmatpush.msra.mxu0 %v2025
      %v2027 = vand.u32 %v1526, 4294901760
      %2028 = vmatpush.msra.mxu0 %v2027
      %v2029 = vand.u32 %v1585, 4294901760
      %2030 = vmatmul.f32.gmra.mxu0 %v2029
      %v2031 = vpop.f32.mrf.mxu0
      %v2032 = vadd.f32 %v1975, %v2031
      %v2033 = vand.u32 %v1588, 4294901760
      %2034 = vmatmul.f32.gmra.mxu0 %v2033
      %v2035 = vpop.f32.mrf.mxu0
      %v2036 = vadd.f32 %v1979, %v2035
      %v2037 = vand.u32 %v1591, 4294901760
      %2038 = vmatmul.f32.gmra.mxu0 %v2037
      %v2039 = vpop.f32.mrf.mxu0
      %v2040 = vadd.f32 %v1983, %v2039
      %v2041 = vand.u32 %v1594, 4294901760
      %2042 = vmatmul.f32.gmra.mxu0 %v2041
      %v2043 = vpop.f32.mrf.mxu0
      %v2044 = vadd.f32 %v1987, %v2043
      %v2045 = vand.u32 %v1597, 4294901760
      %2046 = vmatmul.f32.gmra.mxu0 %v2045
      %v2047 = vpop.f32.mrf.mxu0
      %v2048 = vadd.f32 %v1991, %v2047
      %v2049 = vand.u32 %v1600, 4294901760
      %2050 = vmatmul.f32.gmra.mxu0 %v2049
      %v2051 = vpop.f32.mrf.mxu0
      %v2052 = vadd.f32 %v1995, %v2051
      %v2053 = vand.u32 %v1603, 4294901760
      %2054 = vmatmul.f32.gmra.mxu0 %v2053
      %v2055 = vpop.f32.mrf.mxu0
      %v2056 = vadd.f32 %v1999, %v2055
      %v2057 = vand.u32 %v1606, 4294901760
      %2058 = vmatmul.f32.gmra.mxu0 %v2057
      %v2059 = vpop.f32.mrf.mxu0
      %v2060 = vadd.f32 %v2003, %v2059
      %2061 = vdwg.mxu0
      %2062 = vmatpush.msra.mxu0 0.0
      %2063 = vmatpush.msra.mxu0 0.0
      %2064 = vmatpush.msra.mxu0 0.0
      %2065 = vmatpush.msra.mxu0 0.0
      %2066 = vmatpush.msra.mxu0 0.0
      %2067 = vmatpush.msra.mxu0 0.0
      %2068 = vmatpush.msra.mxu0 0.0
      %2069 = vmatpush.msra.mxu0 0.0
      %v2070 = vand.u32 %v1541, 4294901760
      %2071 = vmatpush.msra.mxu0 %v2070
      %v2072 = vand.u32 %v1539, 4294901760
      %2073 = vmatpush.msra.mxu0 %v2072
      %v2074 = vand.u32 %v1537, 4294901760
      %2075 = vmatpush.msra.mxu0 %v2074
      %v2076 = vand.u32 %v1535, 4294901760
      %2077 = vmatpush.msra.mxu0 %v2076
      %v2078 = vand.u32 %v1533, 4294901760
      %2079 = vmatpush.msra.mxu0 %v2078
      %v2080 = vand.u32 %v1531, 4294901760
      %2081 = vmatpush.msra.mxu0 %v2080
      %v2082 = vand.u32 %v1529, 4294901760
      %2083 = vmatpush.msra.mxu0 %v2082
      %v2084 = vand.u32 %v1527, 4294901760
      %2085 = vmatpush.msra.mxu0 %v2084
      %v2086 = vand.u32 %v1585, 4294901760
      %v2087 = vsub.f32 %v1585, %v2086
      %v2088 = vand.u32 %v2087, 4294901760
      %v2089 = vsub.f32 %v2087, %v2088
      %v2090 = vand.u32 %v2089, 4294901760
      %2091 = vmatmul.f32.gmra.mxu0 %v2090
      %v2092 = vpop.f32.mrf.mxu0
      %v2093 = vadd.f32 %v1553, %v2092
      %v2094 = vand.u32 %v1588, 4294901760
      %v2095 = vsub.f32 %v1588, %v2094
      %v2096 = vand.u32 %v2095, 4294901760
      %v2097 = vsub.f32 %v2095, %v2096
      %v2098 = vand.u32 %v2097, 4294901760
      %2099 = vmatmul.f32.gmra.mxu0 %v2098
      %v2100 = vpop.f32.mrf.mxu0
      %v2101 = vadd.f32 %v1557, %v2100
      %v2102 = vand.u32 %v1591, 4294901760
      %v2103 = vsub.f32 %v1591, %v2102
      %v2104 = vand.u32 %v2103, 4294901760
      %v2105 = vsub.f32 %v2103, %v2104
      %v2106 = vand.u32 %v2105, 4294901760
      %2107 = vmatmul.f32.gmra.mxu0 %v2106
      %v2108 = vpop.f32.mrf.mxu0
      %v2109 = vadd.f32 %v1561, %v2108
      %v2110 = vand.u32 %v1594, 4294901760
      %v2111 = vsub.f32 %v1594, %v2110
      %v2112 = vand.u32 %v2111, 4294901760
      %v2113 = vsub.f32 %v2111, %v2112
      %v2114 = vand.u32 %v2113, 4294901760
      %2115 = vmatmul.f32.gmra.mxu0 %v2114
      %v2116 = vpop.f32.mrf.mxu0
      %v2117 = vadd.f32 %v1565, %v2116
      %v2118 = vand.u32 %v1597, 4294901760
      %v2119 = vsub.f32 %v1597, %v2118
      %v2120 = vand.u32 %v2119, 4294901760
      %v2121 = vsub.f32 %v2119, %v2120
      %v2122 = vand.u32 %v2121, 4294901760
      %2123 = vmatmul.f32.gmra.mxu0 %v2122
      %v2124 = vpop.f32.mrf.mxu0
      %v2125 = vadd.f32 %v1569, %v2124
      %v2126 = vand.u32 %v1600, 4294901760
      %v2127 = vsub.f32 %v1600, %v2126
      %v2128 = vand.u32 %v2127, 4294901760
      %v2129 = vsub.f32 %v2127, %v2128
      %v2130 = vand.u32 %v2129, 4294901760
      %2131 = vmatmul.f32.gmra.mxu0 %v2130
      %v2132 = vpop.f32.mrf.mxu0
      %v2133 = vadd.f32 %v1573, %v2132
      %v2134 = vand.u32 %v1603, 4294901760
      %v2135 = vsub.f32 %v1603, %v2134
      %v2136 = vand.u32 %v2135, 4294901760
      %v2137 = vsub.f32 %v2135, %v2136
      %v2138 = vand.u32 %v2137, 4294901760
      %2139 = vmatmul.f32.gmra.mxu0 %v2138
      %v2140 = vpop.f32.mrf.mxu0
      %v2141 = vadd.f32 %v1577, %v2140
      %v2142 = vand.u32 %v1606, 4294901760
      %v2143 = vsub.f32 %v1606, %v2142
      %v2144 = vand.u32 %v2143, 4294901760
      %v2145 = vsub.f32 %v2143, %v2144
      %v2146 = vand.u32 %v2145, 4294901760
      %2147 = vmatmul.f32.gmra.mxu0 %v2146
      %v2148 = vpop.f32.mrf.mxu0
      %v2149 = vadd.f32 %v1581, %v2148
      %2150 = vdwg.mxu0
      %2151 = vmatpush.msra.mxu0 0.0
      %2152 = vmatpush.msra.mxu0 0.0
      %2153 = vmatpush.msra.mxu0 0.0
      %2154 = vmatpush.msra.mxu0 0.0
      %2155 = vmatpush.msra.mxu0 0.0
      %2156 = vmatpush.msra.mxu0 0.0
      %2157 = vmatpush.msra.mxu0 0.0
      %2158 = vmatpush.msra.mxu0 0.0
      %v2159 = vand.u32 %v1541, 4294901760
      %v2160 = vsub.f32 %v1541, %v2159
      %v2161 = vand.u32 %v2160, 4294901760
      %v2162 = vsub.f32 %v2160, %v2161
      %v2163 = vand.u32 %v2162, 4294901760
      %2164 = vmatpush.msra.mxu0 %v2163
      %v2165 = vand.u32 %v1539, 4294901760
      %v2166 = vsub.f32 %v1539, %v2165
      %v2167 = vand.u32 %v2166, 4294901760
      %v2168 = vsub.f32 %v2166, %v2167
      %v2169 = vand.u32 %v2168, 4294901760
      %2170 = vmatpush.msra.mxu0 %v2169
      %v2171 = vand.u32 %v1537, 4294901760
      %v2172 = vsub.f32 %v1537, %v2171
      %v2173 = vand.u32 %v2172, 4294901760
      %v2174 = vsub.f32 %v2172, %v2173
      %v2175 = vand.u32 %v2174, 4294901760
      %2176 = vmatpush.msra.mxu0 %v2175
      %v2177 = vand.u32 %v1535, 4294901760
      %v2178 = vsub.f32 %v1535, %v2177
      %v2179 = vand.u32 %v2178, 4294901760
      %v2180 = vsub.f32 %v2178, %v2179
      %v2181 = vand.u32 %v2180, 4294901760
      %2182 = vmatpush.msra.mxu0 %v2181
      %v2183 = vand.u32 %v1533, 4294901760
      %v2184 = vsub.f32 %v1533, %v2183
      %v2185 = vand.u32 %v2184, 4294901760
      %v2186 = vsub.f32 %v2184, %v2185
      %v2187 = vand.u32 %v2186, 4294901760
      %2188 = vmatpush.msra.mxu0 %v2187
      %v2189 = vand.u32 %v1531, 4294901760
      %v2190 = vsub.f32 %v1531, %v2189
      %v2191 = vand.u32 %v2190, 4294901760
      %v2192 = vsub.f32 %v2190, %v2191
      %v2193 = vand.u32 %v2192, 4294901760
      %2194 = vmatpush.msra.mxu0 %v2193
      %v2195 = vand.u32 %v1529, 4294901760
      %v2196 = vsub.f32 %v1529, %v2195
      %v2197 = vand.u32 %v2196, 4294901760
      %v2198 = vsub.f32 %v2196, %v2197
      %v2199 = vand.u32 %v2198, 4294901760
      %2200 = vmatpush.msra.mxu0 %v2199
      %v2201 = vand.u32 %v1527, 4294901760
      %v2202 = vsub.f32 %v1527, %v2201
      %v2203 = vand.u32 %v2202, 4294901760
      %v2204 = vsub.f32 %v2202, %v2203
      %v2205 = vand.u32 %v2204, 4294901760
      %2206 = vmatpush.msra.mxu0 %v2205
      %v2207 = vand.u32 %v1585, 4294901760
      %2208 = vmatmul.f32.gmra.mxu0 %v2207
      %v2209 = vpop.f32.mrf.mxu0
      %v2210 = vadd.f32 %v2093, %v2209
      %v2211 = vand.u32 %v1588, 4294901760
      %2212 = vmatmul.f32.gmra.mxu0 %v2211
      %v2213 = vpop.f32.mrf.mxu0
      %v2214 = vadd.f32 %v2101, %v2213
      %v2215 = vand.u32 %v1591, 4294901760
      %2216 = vmatmul.f32.gmra.mxu0 %v2215
      %v2217 = vpop.f32.mrf.mxu0
      %v2218 = vadd.f32 %v2109, %v2217
      %v2219 = vand.u32 %v1594, 4294901760
      %2220 = vmatmul.f32.gmra.mxu0 %v2219
      %v2221 = vpop.f32.mrf.mxu0
      %v2222 = vadd.f32 %v2117, %v2221
      %v2223 = vand.u32 %v1597, 4294901760
      %2224 = vmatmul.f32.gmra.mxu0 %v2223
      %v2225 = vpop.f32.mrf.mxu0
      %v2226 = vadd.f32 %v2125, %v2225
      %v2227 = vand.u32 %v1600, 4294901760
      %2228 = vmatmul.f32.gmra.mxu0 %v2227
      %v2229 = vpop.f32.mrf.mxu0
      %v2230 = vadd.f32 %v2133, %v2229
      %v2231 = vand.u32 %v1603, 4294901760
      %2232 = vmatmul.f32.gmra.mxu0 %v2231
      %v2233 = vpop.f32.mrf.mxu0
      %v2234 = vadd.f32 %v2141, %v2233
      %v2235 = vand.u32 %v1606, 4294901760
      %2236 = vmatmul.f32.gmra.mxu0 %v2235
      %v2237 = vpop.f32.mrf.mxu0
      %v2238 = vadd.f32 %v2149, %v2237
      %2239 = vdwg.mxu0
      %2240 = vmatpush.msra.mxu0 0.0
      %2241 = vmatpush.msra.mxu0 0.0
      %2242 = vmatpush.msra.mxu0 0.0
      %2243 = vmatpush.msra.mxu0 0.0
      %2244 = vmatpush.msra.mxu0 0.0
      %2245 = vmatpush.msra.mxu0 0.0
      %2246 = vmatpush.msra.mxu0 0.0
      %2247 = vmatpush.msra.mxu0 0.0
      %v2248 = vand.u32 %v1541, 4294901760
      %v2249 = vsub.f32 %v1541, %v2248
      %2250 = vmatpush.msra.mxu0 %v2249
      %v2251 = vand.u32 %v1539, 4294901760
      %v2252 = vsub.f32 %v1539, %v2251
      %2253 = vmatpush.msra.mxu0 %v2252
      %v2254 = vand.u32 %v1537, 4294901760
      %v2255 = vsub.f32 %v1537, %v2254
      %2256 = vmatpush.msra.mxu0 %v2255
      %v2257 = vand.u32 %v1535, 4294901760
      %v2258 = vsub.f32 %v1535, %v2257
      %2259 = vmatpush.msra.mxu0 %v2258
      %v2260 = vand.u32 %v1533, 4294901760
      %v2261 = vsub.f32 %v1533, %v2260
      %2262 = vmatpush.msra.mxu0 %v2261
      %v2263 = vand.u32 %v1531, 4294901760
      %v2264 = vsub.f32 %v1531, %v2263
      %2265 = vmatpush.msra.mxu0 %v2264
      %v2266 = vand.u32 %v1529, 4294901760
      %v2267 = vsub.f32 %v1529, %v2266
      %2268 = vmatpush.msra.mxu0 %v2267
      %v2269 = vand.u32 %v1527, 4294901760
      %v2270 = vsub.f32 %v1527, %v2269
      %2271 = vmatpush.msra.mxu0 %v2270
      %v2272 = vand.u32 %v1585, 4294901760
      %v2273 = vsub.f32 %v1585, %v2272
      %2274 = vmatmul.f32.gmra.mxu0 %v2273
      %v2275 = vpop.f32.mrf.mxu0
      %v2276 = vadd.f32 %v2210, %v2275
      %v2277 = vand.u32 %v1588, 4294901760
      %v2278 = vsub.f32 %v1588, %v2277
      %2279 = vmatmul.f32.gmra.mxu0 %v2278
      %v2280 = vpop.f32.mrf.mxu0
      %v2281 = vadd.f32 %v2214, %v2280
      %v2282 = vand.u32 %v1591, 4294901760
      %v2283 = vsub.f32 %v1591, %v2282
      %2284 = vmatmul.f32.gmra.mxu0 %v2283
      %v2285 = vpop.f32.mrf.mxu0
      %v2286 = vadd.f32 %v2218, %v2285
      %v2287 = vand.u32 %v1594, 4294901760
      %v2288 = vsub.f32 %v1594, %v2287
      %2289 = vmatmul.f32.gmra.mxu0 %v2288
      %v2290 = vpop.f32.mrf.mxu0
      %v2291 = vadd.f32 %v2222, %v2290
      %v2292 = vand.u32 %v1597, 4294901760
      %v2293 = vsub.f32 %v1597, %v2292
      %2294 = vmatmul.f32.gmra.mxu0 %v2293
      %v2295 = vpop.f32.mrf.mxu0
      %v2296 = vadd.f32 %v2226, %v2295
      %v2297 = vand.u32 %v1600, 4294901760
      %v2298 = vsub.f32 %v1600, %v2297
      %2299 = vmatmul.f32.gmra.mxu0 %v2298
      %v2300 = vpop.f32.mrf.mxu0
      %v2301 = vadd.f32 %v2230, %v2300
      %v2302 = vand.u32 %v1603, 4294901760
      %v2303 = vsub.f32 %v1603, %v2302
      %2304 = vmatmul.f32.gmra.mxu0 %v2303
      %v2305 = vpop.f32.mrf.mxu0
      %v2306 = vadd.f32 %v2234, %v2305
      %v2307 = vand.u32 %v1606, 4294901760
      %v2308 = vsub.f32 %v1606, %v2307
      %2309 = vmatmul.f32.gmra.mxu0 %v2308
      %v2310 = vpop.f32.mrf.mxu0
      %v2311 = vadd.f32 %v2238, %v2310
      %2312 = vdwg.mxu0
      %2313 = vmatpush.msra.mxu0 0.0
      %2314 = vmatpush.msra.mxu0 0.0
      %2315 = vmatpush.msra.mxu0 0.0
      %2316 = vmatpush.msra.mxu0 0.0
      %2317 = vmatpush.msra.mxu0 0.0
      %2318 = vmatpush.msra.mxu0 0.0
      %2319 = vmatpush.msra.mxu0 0.0
      %2320 = vmatpush.msra.mxu0 0.0
      %v2321 = vand.u32 %v1541, 4294901760
      %2322 = vmatpush.msra.mxu0 %v2321
      %v2323 = vand.u32 %v1539, 4294901760
      %2324 = vmatpush.msra.mxu0 %v2323
      %v2325 = vand.u32 %v1537, 4294901760
      %2326 = vmatpush.msra.mxu0 %v2325
      %v2327 = vand.u32 %v1535, 4294901760
      %2328 = vmatpush.msra.mxu0 %v2327
      %v2329 = vand.u32 %v1533, 4294901760
      %2330 = vmatpush.msra.mxu0 %v2329
      %v2331 = vand.u32 %v1531, 4294901760
      %2332 = vmatpush.msra.mxu0 %v2331
      %v2333 = vand.u32 %v1529, 4294901760
      %2334 = vmatpush.msra.mxu0 %v2333
      %v2335 = vand.u32 %v1527, 4294901760
      %2336 = vmatpush.msra.mxu0 %v2335
      %v2337 = vand.u32 %v1585, 4294901760
      %v2338 = vsub.f32 %v1585, %v2337
      %v2339 = vand.u32 %v2338, 4294901760
      %2340 = vmatmul.f32.gmra.mxu0 %v2339
      %v2341 = vpop.f32.mrf.mxu0
      %v2342 = vadd.f32 %v2276, %v2341
      %v2343 = vand.u32 %v1588, 4294901760
      %v2344 = vsub.f32 %v1588, %v2343
      %v2345 = vand.u32 %v2344, 4294901760
      %2346 = vmatmul.f32.gmra.mxu0 %v2345
      %v2347 = vpop.f32.mrf.mxu0
      %v2348 = vadd.f32 %v2281, %v2347
      %v2349 = vand.u32 %v1591, 4294901760
      %v2350 = vsub.f32 %v1591, %v2349
      %v2351 = vand.u32 %v2350, 4294901760
      %2352 = vmatmul.f32.gmra.mxu0 %v2351
      %v2353 = vpop.f32.mrf.mxu0
      %v2354 = vadd.f32 %v2286, %v2353
      %v2355 = vand.u32 %v1594, 4294901760
      %v2356 = vsub.f32 %v1594, %v2355
      %v2357 = vand.u32 %v2356, 4294901760
      %2358 = vmatmul.f32.gmra.mxu0 %v2357
      %v2359 = vpop.f32.mrf.mxu0
      %v2360 = vadd.f32 %v2291, %v2359
      %v2361 = vand.u32 %v1597, 4294901760
      %v2362 = vsub.f32 %v1597, %v2361
      %v2363 = vand.u32 %v2362, 4294901760
      %2364 = vmatmul.f32.gmra.mxu0 %v2363
      %v2365 = vpop.f32.mrf.mxu0
      %v2366 = vadd.f32 %v2296, %v2365
      %v2367 = vand.u32 %v1600, 4294901760
      %v2368 = vsub.f32 %v1600, %v2367
      %v2369 = vand.u32 %v2368, 4294901760
      %2370 = vmatmul.f32.gmra.mxu0 %v2369
      %v2371 = vpop.f32.mrf.mxu0
      %v2372 = vadd.f32 %v2301, %v2371
      %v2373 = vand.u32 %v1603, 4294901760
      %v2374 = vsub.f32 %v1603, %v2373
      %v2375 = vand.u32 %v2374, 4294901760
      %2376 = vmatmul.f32.gmra.mxu0 %v2375
      %v2377 = vpop.f32.mrf.mxu0
      %v2378 = vadd.f32 %v2306, %v2377
      %v2379 = vand.u32 %v1606, 4294901760
      %v2380 = vsub.f32 %v1606, %v2379
      %v2381 = vand.u32 %v2380, 4294901760
      %2382 = vmatmul.f32.gmra.mxu0 %v2381
      %v2383 = vpop.f32.mrf.mxu0
      %v2384 = vadd.f32 %v2311, %v2383
      %2385 = vdwg.mxu0
      %2386 = vmatpush.msra.mxu0 0.0
      %2387 = vmatpush.msra.mxu0 0.0
      %2388 = vmatpush.msra.mxu0 0.0
      %2389 = vmatpush.msra.mxu0 0.0
      %2390 = vmatpush.msra.mxu0 0.0
      %2391 = vmatpush.msra.mxu0 0.0
      %2392 = vmatpush.msra.mxu0 0.0
      %2393 = vmatpush.msra.mxu0 0.0
      %v2394 = vand.u32 %v1541, 4294901760
      %v2395 = vsub.f32 %v1541, %v2394
      %v2396 = vand.u32 %v2395, 4294901760
      %2397 = vmatpush.msra.mxu0 %v2396
      %v2398 = vand.u32 %v1539, 4294901760
      %v2399 = vsub.f32 %v1539, %v2398
      %v2400 = vand.u32 %v2399, 4294901760
      %2401 = vmatpush.msra.mxu0 %v2400
      %v2402 = vand.u32 %v1537, 4294901760
      %v2403 = vsub.f32 %v1537, %v2402
      %v2404 = vand.u32 %v2403, 4294901760
      %2405 = vmatpush.msra.mxu0 %v2404
      %v2406 = vand.u32 %v1535, 4294901760
      %v2407 = vsub.f32 %v1535, %v2406
      %v2408 = vand.u32 %v2407, 4294901760
      %2409 = vmatpush.msra.mxu0 %v2408
      %v2410 = vand.u32 %v1533, 4294901760
      %v2411 = vsub.f32 %v1533, %v2410
      %v2412 = vand.u32 %v2411, 4294901760
      %2413 = vmatpush.msra.mxu0 %v2412
      %v2414 = vand.u32 %v1531, 4294901760
      %v2415 = vsub.f32 %v1531, %v2414
      %v2416 = vand.u32 %v2415, 4294901760
      %2417 = vmatpush.msra.mxu0 %v2416
      %v2418 = vand.u32 %v1529, 4294901760
      %v2419 = vsub.f32 %v1529, %v2418
      %v2420 = vand.u32 %v2419, 4294901760
      %2421 = vmatpush.msra.mxu0 %v2420
      %v2422 = vand.u32 %v1527, 4294901760
      %v2423 = vsub.f32 %v1527, %v2422
      %v2424 = vand.u32 %v2423, 4294901760
      %2425 = vmatpush.msra.mxu0 %v2424
      %v2426 = vand.u32 %v1585, 4294901760
      %2427 = vmatmul.f32.gmra.mxu0 %v2426
      %v2428 = vpop.f32.mrf.mxu0
      %v2429 = vadd.f32 %v2342, %v2428
      %v2430 = vand.u32 %v1588, 4294901760
      %2431 = vmatmul.f32.gmra.mxu0 %v2430
      %v2432 = vpop.f32.mrf.mxu0
      %v2433 = vadd.f32 %v2348, %v2432
      %v2434 = vand.u32 %v1591, 4294901760
      %2435 = vmatmul.f32.gmra.mxu0 %v2434
      %v2436 = vpop.f32.mrf.mxu0
      %v2437 = vadd.f32 %v2354, %v2436
      %v2438 = vand.u32 %v1594, 4294901760
      %2439 = vmatmul.f32.gmra.mxu0 %v2438
      %v2440 = vpop.f32.mrf.mxu0
      %v2441 = vadd.f32 %v2360, %v2440
      %v2442 = vand.u32 %v1597, 4294901760
      %2443 = vmatmul.f32.gmra.mxu0 %v2442
      %v2444 = vpop.f32.mrf.mxu0
      %v2445 = vadd.f32 %v2366, %v2444
      %v2446 = vand.u32 %v1600, 4294901760
      %2447 = vmatmul.f32.gmra.mxu0 %v2446
      %v2448 = vpop.f32.mrf.mxu0
      %v2449 = vadd.f32 %v2372, %v2448
      %v2450 = vand.u32 %v1603, 4294901760
      %2451 = vmatmul.f32.gmra.mxu0 %v2450
      %v2452 = vpop.f32.mrf.mxu0
      %v2453 = vadd.f32 %v2378, %v2452
      %v2454 = vand.u32 %v1606, 4294901760
      %2455 = vmatmul.f32.gmra.mxu0 %v2454
      %v2456 = vpop.f32.mrf.mxu0
      %v2457 = vadd.f32 %v2384, %v2456
      %2458 = vdwg.mxu0
      %2459 = vmatpush.msra.mxu0 0.0
      %2460 = vmatpush.msra.mxu0 0.0
      %2461 = vmatpush.msra.mxu0 0.0
      %2462 = vmatpush.msra.mxu0 0.0
      %2463 = vmatpush.msra.mxu0 0.0
      %2464 = vmatpush.msra.mxu0 0.0
      %2465 = vmatpush.msra.mxu0 0.0
      %2466 = vmatpush.msra.mxu0 0.0
      %v2467 = vand.u32 %v1541, 4294901760
      %2468 = vmatpush.msra.mxu0 %v2467
      %v2469 = vand.u32 %v1539, 4294901760
      %2470 = vmatpush.msra.mxu0 %v2469
      %v2471 = vand.u32 %v1537, 4294901760
      %2472 = vmatpush.msra.mxu0 %v2471
      %v2473 = vand.u32 %v1535, 4294901760
      %2474 = vmatpush.msra.mxu0 %v2473
      %v2475 = vand.u32 %v1533, 4294901760
      %2476 = vmatpush.msra.mxu0 %v2475
      %v2477 = vand.u32 %v1531, 4294901760
      %2478 = vmatpush.msra.mxu0 %v2477
      %v2479 = vand.u32 %v1529, 4294901760
      %2480 = vmatpush.msra.mxu0 %v2479
      %v2481 = vand.u32 %v1527, 4294901760
      %2482 = vmatpush.msra.mxu0 %v2481
      %v2483 = vand.u32 %v1585, 4294901760
      %2484 = vmatmul.f32.gmra.mxu0 %v2483
      %v2485 = vpop.f32.mrf.mxu0
      %v2486 = vadd.f32 %v2429, %v2485
      %v2487 = vand.u32 %v1588, 4294901760
      %2488 = vmatmul.f32.gmra.mxu0 %v2487
      %v2489 = vpop.f32.mrf.mxu0
      %v2490 = vadd.f32 %v2433, %v2489
      %v2491 = vand.u32 %v1591, 4294901760
      %2492 = vmatmul.f32.gmra.mxu0 %v2491
      %v2493 = vpop.f32.mrf.mxu0
      %v2494 = vadd.f32 %v2437, %v2493
      %v2495 = vand.u32 %v1594, 4294901760
      %2496 = vmatmul.f32.gmra.mxu0 %v2495
      %v2497 = vpop.f32.mrf.mxu0
      %v2498 = vadd.f32 %v2441, %v2497
      %v2499 = vand.u32 %v1597, 4294901760
      %2500 = vmatmul.f32.gmra.mxu0 %v2499
      %v2501 = vpop.f32.mrf.mxu0
      %v2502 = vadd.f32 %v2445, %v2501
      %v2503 = vand.u32 %v1600, 4294901760
      %2504 = vmatmul.f32.gmra.mxu0 %v2503
      %v2505 = vpop.f32.mrf.mxu0
      %v2506 = vadd.f32 %v2449, %v2505
      %v2507 = vand.u32 %v1603, 4294901760
      %2508 = vmatmul.f32.gmra.mxu0 %v2507
      %v2509 = vpop.f32.mrf.mxu0
      %v2510 = vadd.f32 %v2453, %v2509
      %v2511 = vand.u32 %v1606, 4294901760
      %2512 = vmatmul.f32.gmra.mxu0 %v2511
      %v2513 = vpop.f32.mrf.mxu0
      %v2514 = vadd.f32 %v2457, %v2513
      %2515 = vdwg.mxu0
      %v2516 = vmax.f32 %v2032, 0.0
      %v2517 = vmax.f32 %v2486, 0.0
      %v2518 = vmax.f32 %v2036, 0.0
      %v2519 = vmax.f32 %v2490, 0.0
      %v2520 = vmax.f32 %v2040, 0.0
      %v2521 = vmax.f32 %v2494, 0.0
      %v2522 = vmax.f32 %v2044, 0.0
      %v2523 = vmax.f32 %v2498, 0.0
      %v2524 = vmax.f32 %v2048, 0.0
      %v2525 = vmax.f32 %v2502, 0.0
      %v2526 = vmax.f32 %v2052, 0.0
      %v2527 = vmax.f32 %v2506, 0.0
      %v2528 = vmax.f32 %v2056, 0.0
      %v2529 = vmax.f32 %v2510, 0.0
      %v2530 = vmax.f32 %v2060, 0.0
      %v2531 = vmax.f32 %v2514, 0.0
      %s2532 = scalar_lea.vmem %s1, 128
      %v2533 = vld [vmem:[%s2532] sm:$0xff]
      %v2534 = vld [vmem:[%s2532 + $0x8] sm:$0xff]
      %v2535 = vld [vmem:[%s2532 + $0x10] sm:$0xff]
      %v2536 = vld [vmem:[%s2532 + $0x18] sm:$0xff]
      %v2537 = vld [vmem:[%s2532 + $0x20] sm:$0xff]
      %v2538 = vld [vmem:[%s2532 + $0x28] sm:$0xff]
      %v2539 = vld [vmem:[%s2532 + $0x30] sm:$0xff]
      %v2540 = vld [vmem:[%s2532 + $0x38] sm:$0xff]
      %2541 = vset.pattern.permute.xlu0 2
      %2542 = vperm.xlu0 %2541, %v241
      %v2543 = vpop.permute.xlu0 %2542
      %2545 = vset.pattern.permute.xlu0 2
      %2546 = vperm.xlu0 %2545, %v242
      %v2547 = vpop.permute.xlu0 %2546
      %2549 = vset.pattern.permute.xlu0 2
      %2550 = vperm.xlu0 %2549, %v243
      %v2551 = vpop.permute.xlu0 %2550
      %2553 = vset.pattern.permute.xlu0 2
      %2554 = vperm.xlu0 %2553, %v244
      %v2555 = vpop.permute.xlu0 %2554
      %2557 = vset.pattern.permute.xlu0 2
      %2558 = vperm.xlu0 %2557, %v245
      %v2559 = vpop.permute.xlu0 %2558
      %2561 = vset.pattern.permute.xlu0 2
      %2562 = vperm.xlu0 %2561, %v246
      %v2563 = vpop.permute.xlu0 %2562
      %2565 = vset.pattern.permute.xlu0 2
      %2566 = vperm.xlu0 %2565, %v247
      %v2567 = vpop.permute.xlu0 %2566
      %2569 = vset.pattern.permute.xlu0 2
      %2570 = vperm.xlu0 %2569, %v248
      %v2571 = vpop.permute.xlu0 %2570
      %v2574 = vsel %vm1583, %v2533, 0
      %v2577 = vsel %vm1583, %v2534, 0
      %v2580 = vsel %vm1583, %v2535, 0
      %v2583 = vsel %vm1583, %v2536, 0
      %v2586 = vsel %vm1583, %v2537, 0
      %v2589 = vsel %vm1583, %v2538, 0
      %v2592 = vsel %vm1583, %v2539, 0
      %v2595 = vsel %vm1583, %v2540, 0
      %2597 = vmatpush.msra.mxu0 0.0
      %2598 = vmatpush.msra.mxu0 0.0
      %2599 = vmatpush.msra.mxu0 0.0
      %2600 = vmatpush.msra.mxu0 0.0
      %2601 = vmatpush.msra.mxu0 0.0
      %2602 = vmatpush.msra.mxu0 0.0
      %2603 = vmatpush.msra.mxu0 0.0
      %2604 = vmatpush.msra.mxu0 0.0
      %v2605 = vand.u32 %v2530, 4294901760
      %2606 = vmatpush.msra.mxu0 %v2605
      %v2607 = vand.u32 %v2528, 4294901760
      %2608 = vmatpush.msra.mxu0 %v2607
      %v2609 = vand.u32 %v2526, 4294901760
      %2610 = vmatpush.msra.mxu0 %v2609
      %v2611 = vand.u32 %v2524, 4294901760
      %2612 = vmatpush.msra.mxu0 %v2611
      %v2613 = vand.u32 %v2522, 4294901760
      %2614 = vmatpush.msra.mxu0 %v2613
      %v2615 = vand.u32 %v2520, 4294901760
      %2616 = vmatpush.msra.mxu0 %v2615
      %v2617 = vand.u32 %v2518, 4294901760
      %2618 = vmatpush.msra.mxu0 %v2617
      %v2619 = vand.u32 %v2516, 4294901760
      %2620 = vmatpush.msra.mxu0 %v2619
      %v2621 = vand.u32 %v2574, 4294901760
      %v2622 = vsub.f32 %v2574, %v2621
      %v2623 = vand.u32 %v2622, 4294901760
      %v2624 = vsub.f32 %v2622, %v2623
      %v2625 = vand.u32 %v2624, 4294901760
      %2626 = vmatmul.f32.gmra.mxu0 %v2625
      %v2627 = vpop.f32.mrf.mxu0
      %v2628 = vadd.f32 %v2543, %v2627
      %v2629 = vand.u32 %v2577, 4294901760
      %v2630 = vsub.f32 %v2577, %v2629
      %v2631 = vand.u32 %v2630, 4294901760
      %v2632 = vsub.f32 %v2630, %v2631
      %v2633 = vand.u32 %v2632, 4294901760
      %2634 = vmatmul.f32.gmra.mxu0 %v2633
      %v2635 = vpop.f32.mrf.mxu0
      %v2636 = vadd.f32 %v2547, %v2635
      %v2637 = vand.u32 %v2580, 4294901760
      %v2638 = vsub.f32 %v2580, %v2637
      %v2639 = vand.u32 %v2638, 4294901760
      %v2640 = vsub.f32 %v2638, %v2639
      %v2641 = vand.u32 %v2640, 4294901760
      %2642 = vmatmul.f32.gmra.mxu0 %v2641
      %v2643 = vpop.f32.mrf.mxu0
      %v2644 = vadd.f32 %v2551, %v2643
      %v2645 = vand.u32 %v2583, 4294901760
      %v2646 = vsub.f32 %v2583, %v2645
      %v2647 = vand.u32 %v2646, 4294901760
      %v2648 = vsub.f32 %v2646, %v2647
      %v2649 = vand.u32 %v2648, 4294901760
      %2650 = vmatmul.f32.gmra.mxu0 %v2649
      %v2651 = vpop.f32.mrf.mxu0
      %v2652 = vadd.f32 %v2555, %v2651
      %v2653 = vand.u32 %v2586, 4294901760
      %v2654 = vsub.f32 %v2586, %v2653
      %v2655 = vand.u32 %v2654, 4294901760
      %v2656 = vsub.f32 %v2654, %v2655
      %v2657 = vand.u32 %v2656, 4294901760
      %2658 = vmatmul.f32.gmra.mxu0 %v2657
      %v2659 = vpop.f32.mrf.mxu0
      %v2660 = vadd.f32 %v2559, %v2659
      %v2661 = vand.u32 %v2589, 4294901760
      %v2662 = vsub.f32 %v2589, %v2661
      %v2663 = vand.u32 %v2662, 4294901760
      %v2664 = vsub.f32 %v2662, %v2663
      %v2665 = vand.u32 %v2664, 4294901760
      %2666 = vmatmul.f32.gmra.mxu0 %v2665
      %v2667 = vpop.f32.mrf.mxu0
      %v2668 = vadd.f32 %v2563, %v2667
      %v2669 = vand.u32 %v2592, 4294901760
      %v2670 = vsub.f32 %v2592, %v2669
      %v2671 = vand.u32 %v2670, 4294901760
      %v2672 = vsub.f32 %v2670, %v2671
      %v2673 = vand.u32 %v2672, 4294901760
      %2674 = vmatmul.f32.gmra.mxu0 %v2673
      %v2675 = vpop.f32.mrf.mxu0
      %v2676 = vadd.f32 %v2567, %v2675
      %v2677 = vand.u32 %v2595, 4294901760
      %v2678 = vsub.f32 %v2595, %v2677
      %v2679 = vand.u32 %v2678, 4294901760
      %v2680 = vsub.f32 %v2678, %v2679
      %v2681 = vand.u32 %v2680, 4294901760
      %2682 = vmatmul.f32.gmra.mxu0 %v2681
      %v2683 = vpop.f32.mrf.mxu0
      %v2684 = vadd.f32 %v2571, %v2683
      %2685 = vdwg.mxu0
      %2686 = vmatpush.msra.mxu0 0.0
      %2687 = vmatpush.msra.mxu0 0.0
      %2688 = vmatpush.msra.mxu0 0.0
      %2689 = vmatpush.msra.mxu0 0.0
      %2690 = vmatpush.msra.mxu0 0.0
      %2691 = vmatpush.msra.mxu0 0.0
      %2692 = vmatpush.msra.mxu0 0.0
      %2693 = vmatpush.msra.mxu0 0.0
      %v2694 = vand.u32 %v2530, 4294901760
      %v2695 = vsub.f32 %v2530, %v2694
      %v2696 = vand.u32 %v2695, 4294901760
      %v2697 = vsub.f32 %v2695, %v2696
      %v2698 = vand.u32 %v2697, 4294901760
      %2699 = vmatpush.msra.mxu0 %v2698
      %v2700 = vand.u32 %v2528, 4294901760
      %v2701 = vsub.f32 %v2528, %v2700
      %v2702 = vand.u32 %v2701, 4294901760
      %v2703 = vsub.f32 %v2701, %v2702
      %v2704 = vand.u32 %v2703, 4294901760
      %2705 = vmatpush.msra.mxu0 %v2704
      %v2706 = vand.u32 %v2526, 4294901760
      %v2707 = vsub.f32 %v2526, %v2706
      %v2708 = vand.u32 %v2707, 4294901760
      %v2709 = vsub.f32 %v2707, %v2708
      %v2710 = vand.u32 %v2709, 4294901760
      %2711 = vmatpush.msra.mxu0 %v2710
      %v2712 = vand.u32 %v2524, 4294901760
      %v2713 = vsub.f32 %v2524, %v2712
      %v2714 = vand.u32 %v2713, 4294901760
      %v2715 = vsub.f32 %v2713, %v2714
      %v2716 = vand.u32 %v2715, 4294901760
      %2717 = vmatpush.msra.mxu0 %v2716
      %v2718 = vand.u32 %v2522, 4294901760
      %v2719 = vsub.f32 %v2522, %v2718
      %v2720 = vand.u32 %v2719, 4294901760
      %v2721 = vsub.f32 %v2719, %v2720
      %v2722 = vand.u32 %v2721, 4294901760
      %2723 = vmatpush.msra.mxu0 %v2722
      %v2724 = vand.u32 %v2520, 4294901760
      %v2725 = vsub.f32 %v2520, %v2724
      %v2726 = vand.u32 %v2725, 4294901760
      %v2727 = vsub.f32 %v2725, %v2726
      %v2728 = vand.u32 %v2727, 4294901760
      %2729 = vmatpush.msra.mxu0 %v2728
      %v2730 = vand.u32 %v2518, 4294901760
      %v2731 = vsub.f32 %v2518, %v2730
      %v2732 = vand.u32 %v2731, 4294901760
      %v2733 = vsub.f32 %v2731, %v2732
      %v2734 = vand.u32 %v2733, 4294901760
      %2735 = vmatpush.msra.mxu0 %v2734
      %v2736 = vand.u32 %v2516, 4294901760
      %v2737 = vsub.f32 %v2516, %v2736
      %v2738 = vand.u32 %v2737, 4294901760
      %v2739 = vsub.f32 %v2737, %v2738
      %v2740 = vand.u32 %v2739, 4294901760
      %2741 = vmatpush.msra.mxu0 %v2740
      %v2742 = vand.u32 %v2574, 4294901760
      %2743 = vmatmul.f32.gmra.mxu0 %v2742
      %v2744 = vpop.f32.mrf.mxu0
      %v2745 = vadd.f32 %v2628, %v2744
      %v2746 = vand.u32 %v2577, 4294901760
      %2747 = vmatmul.f32.gmra.mxu0 %v2746
      %v2748 = vpop.f32.mrf.mxu0
      %v2749 = vadd.f32 %v2636, %v2748
      %v2750 = vand.u32 %v2580, 4294901760
      %2751 = vmatmul.f32.gmra.mxu0 %v2750
      %v2752 = vpop.f32.mrf.mxu0
      %v2753 = vadd.f32 %v2644, %v2752
      %v2754 = vand.u32 %v2583, 4294901760
      %2755 = vmatmul.f32.gmra.mxu0 %v2754
      %v2756 = vpop.f32.mrf.mxu0
      %v2757 = vadd.f32 %v2652, %v2756
      %v2758 = vand.u32 %v2586, 4294901760
      %2759 = vmatmul.f32.gmra.mxu0 %v2758
      %v2760 = vpop.f32.mrf.mxu0
      %v2761 = vadd.f32 %v2660, %v2760
      %v2762 = vand.u32 %v2589, 4294901760
      %2763 = vmatmul.f32.gmra.mxu0 %v2762
      %v2764 = vpop.f32.mrf.mxu0
      %v2765 = vadd.f32 %v2668, %v2764
      %v2766 = vand.u32 %v2592, 4294901760
      %2767 = vmatmul.f32.gmra.mxu0 %v2766
      %v2768 = vpop.f32.mrf.mxu0
      %v2769 = vadd.f32 %v2676, %v2768
      %v2770 = vand.u32 %v2595, 4294901760
      %2771 = vmatmul.f32.gmra.mxu0 %v2770
      %v2772 = vpop.f32.mrf.mxu0
      %v2773 = vadd.f32 %v2684, %v2772
      %2774 = vdwg.mxu0
      %2775 = vmatpush.msra.mxu0 0.0
      %2776 = vmatpush.msra.mxu0 0.0
      %2777 = vmatpush.msra.mxu0 0.0
      %2778 = vmatpush.msra.mxu0 0.0
      %2779 = vmatpush.msra.mxu0 0.0
      %2780 = vmatpush.msra.mxu0 0.0
      %2781 = vmatpush.msra.mxu0 0.0
      %2782 = vmatpush.msra.mxu0 0.0
      %v2783 = vand.u32 %v2530, 4294901760
      %v2784 = vsub.f32 %v2530, %v2783
      %2785 = vmatpush.msra.mxu0 %v2784
      %v2786 = vand.u32 %v2528, 4294901760
      %v2787 = vsub.f32 %v2528, %v2786
      %2788 = vmatpush.msra.mxu0 %v2787
      %v2789 = vand.u32 %v2526, 4294901760
      %v2790 = vsub.f32 %v2526, %v2789
      %2791 = vmatpush.msra.mxu0 %v2790
      %v2792 = vand.u32 %v2524, 4294901760
      %v2793 = vsub.f32 %v2524, %v2792
      %2794 = vmatpush.msra.mxu0 %v2793
      %v2795 = vand.u32 %v2522, 4294901760
      %v2796 = vsub.f32 %v2522, %v2795
      %2797 = vmatpush.msra.mxu0 %v2796
      %v2798 = vand.u32 %v2520, 4294901760
      %v2799 = vsub.f32 %v2520, %v2798
      %2800 = vmatpush.msra.mxu0 %v2799
      %v2801 = vand.u32 %v2518, 4294901760
      %v2802 = vsub.f32 %v2518, %v2801
      %2803 = vmatpush.msra.mxu0 %v2802
      %v2804 = vand.u32 %v2516, 4294901760
      %v2805 = vsub.f32 %v2516, %v2804
      %2806 = vmatpush.msra.mxu0 %v2805
      %v2807 = vand.u32 %v2574, 4294901760
      %v2808 = vsub.f32 %v2574, %v2807
      %2809 = vmatmul.f32.gmra.mxu0 %v2808
      %v2810 = vpop.f32.mrf.mxu0
      %v2811 = vadd.f32 %v2745, %v2810
      %v2812 = vand.u32 %v2577, 4294901760
      %v2813 = vsub.f32 %v2577, %v2812
      %2814 = vmatmul.f32.gmra.mxu0 %v2813
      %v2815 = vpop.f32.mrf.mxu0
      %v2816 = vadd.f32 %v2749, %v2815
      %v2817 = vand.u32 %v2580, 4294901760
      %v2818 = vsub.f32 %v2580, %v2817
      %2819 = vmatmul.f32.gmra.mxu0 %v2818
      %v2820 = vpop.f32.mrf.mxu0
      %v2821 = vadd.f32 %v2753, %v2820
      %v2822 = vand.u32 %v2583, 4294901760
      %v2823 = vsub.f32 %v2583, %v2822
      %2824 = vmatmul.f32.gmra.mxu0 %v2823
      %v2825 = vpop.f32.mrf.mxu0
      %v2826 = vadd.f32 %v2757, %v2825
      %v2827 = vand.u32 %v2586, 4294901760
      %v2828 = vsub.f32 %v2586, %v2827
      %2829 = vmatmul.f32.gmra.mxu0 %v2828
      %v2830 = vpop.f32.mrf.mxu0
      %v2831 = vadd.f32 %v2761, %v2830
      %v2832 = vand.u32 %v2589, 4294901760
      %v2833 = vsub.f32 %v2589, %v2832
      %2834 = vmatmul.f32.gmra.mxu0 %v2833
      %v2835 = vpop.f32.mrf.mxu0
      %v2836 = vadd.f32 %v2765, %v2835
      %v2837 = vand.u32 %v2592, 4294901760
      %v2838 = vsub.f32 %v2592, %v2837
      %2839 = vmatmul.f32.gmra.mxu0 %v2838
      %v2840 = vpop.f32.mrf.mxu0
      %v2841 = vadd.f32 %v2769, %v2840
      %v2842 = vand.u32 %v2595, 4294901760
      %v2843 = vsub.f32 %v2595, %v2842
      %2844 = vmatmul.f32.gmra.mxu0 %v2843
      %v2845 = vpop.f32.mrf.mxu0
      %v2846 = vadd.f32 %v2773, %v2845
      %2847 = vdwg.mxu0
      %2848 = vmatpush.msra.mxu0 0.0
      %2849 = vmatpush.msra.mxu0 0.0
      %2850 = vmatpush.msra.mxu0 0.0
      %2851 = vmatpush.msra.mxu0 0.0
      %2852 = vmatpush.msra.mxu0 0.0
      %2853 = vmatpush.msra.mxu0 0.0
      %2854 = vmatpush.msra.mxu0 0.0
      %2855 = vmatpush.msra.mxu0 0.0
      %v2856 = vand.u32 %v2530, 4294901760
      %2857 = vmatpush.msra.mxu0 %v2856
      %v2858 = vand.u32 %v2528, 4294901760
      %2859 = vmatpush.msra.mxu0 %v2858
      %v2860 = vand.u32 %v2526, 4294901760
      %2861 = vmatpush.msra.mxu0 %v2860
      %v2862 = vand.u32 %v2524, 4294901760
      %2863 = vmatpush.msra.mxu0 %v2862
      %v2864 = vand.u32 %v2522, 4294901760
      %2865 = vmatpush.msra.mxu0 %v2864
      %v2866 = vand.u32 %v2520, 4294901760
      %2867 = vmatpush.msra.mxu0 %v2866
      %v2868 = vand.u32 %v2518, 4294901760
      %2869 = vmatpush.msra.mxu0 %v2868
      %v2870 = vand.u32 %v2516, 4294901760
      %2871 = vmatpush.msra.mxu0 %v2870
      %v2872 = vand.u32 %v2574, 4294901760
      %v2873 = vsub.f32 %v2574, %v2872
      %v2874 = vand.u32 %v2873, 4294901760
      %2875 = vmatmul.f32.gmra.mxu0 %v2874
      %v2876 = vpop.f32.mrf.mxu0
      %v2877 = vadd.f32 %v2811, %v2876
      %v2878 = vand.u32 %v2577, 4294901760
      %v2879 = vsub.f32 %v2577, %v2878
      %v2880 = vand.u32 %v2879, 4294901760
      %2881 = vmatmul.f32.gmra.mxu0 %v2880
      %v2882 = vpop.f32.mrf.mxu0
      %v2883 = vadd.f32 %v2816, %v2882
      %v2884 = vand.u32 %v2580, 4294901760
      %v2885 = vsub.f32 %v2580, %v2884
      %v2886 = vand.u32 %v2885, 4294901760
      %2887 = vmatmul.f32.gmra.mxu0 %v2886
      %v2888 = vpop.f32.mrf.mxu0
      %v2889 = vadd.f32 %v2821, %v2888
      %v2890 = vand.u32 %v2583, 4294901760
      %v2891 = vsub.f32 %v2583, %v2890
      %v2892 = vand.u32 %v2891, 4294901760
      %2893 = vmatmul.f32.gmra.mxu0 %v2892
      %v2894 = vpop.f32.mrf.mxu0
      %v2895 = vadd.f32 %v2826, %v2894
      %v2896 = vand.u32 %v2586, 4294901760
      %v2897 = vsub.f32 %v2586, %v2896
      %v2898 = vand.u32 %v2897, 4294901760
      %2899 = vmatmul.f32.gmra.mxu0 %v2898
      %v2900 = vpop.f32.mrf.mxu0
      %v2901 = vadd.f32 %v2831, %v2900
      %v2902 = vand.u32 %v2589, 4294901760
      %v2903 = vsub.f32 %v2589, %v2902
      %v2904 = vand.u32 %v2903, 4294901760
      %2905 = vmatmul.f32.gmra.mxu0 %v2904
      %v2906 = vpop.f32.mrf.mxu0
      %v2907 = vadd.f32 %v2836, %v2906
      %v2908 = vand.u32 %v2592, 4294901760
      %v2909 = vsub.f32 %v2592, %v2908
      %v2910 = vand.u32 %v2909, 4294901760
      %2911 = vmatmul.f32.gmra.mxu0 %v2910
      %v2912 = vpop.f32.mrf.mxu0
      %v2913 = vadd.f32 %v2841, %v2912
      %v2914 = vand.u32 %v2595, 4294901760
      %v2915 = vsub.f32 %v2595, %v2914
      %v2916 = vand.u32 %v2915, 4294901760
      %2917 = vmatmul.f32.gmra.mxu0 %v2916
      %v2918 = vpop.f32.mrf.mxu0
      %v2919 = vadd.f32 %v2846, %v2918
      %2920 = vdwg.mxu0
      %2921 = vmatpush.msra.mxu0 0.0
      %2922 = vmatpush.msra.mxu0 0.0
      %2923 = vmatpush.msra.mxu0 0.0
      %2924 = vmatpush.msra.mxu0 0.0
      %2925 = vmatpush.msra.mxu0 0.0
      %2926 = vmatpush.msra.mxu0 0.0
      %2927 = vmatpush.msra.mxu0 0.0
      %2928 = vmatpush.msra.mxu0 0.0
      %v2929 = vand.u32 %v2530, 4294901760
      %v2930 = vsub.f32 %v2530, %v2929
      %v2931 = vand.u32 %v2930, 4294901760
      %2932 = vmatpush.msra.mxu0 %v2931
      %v2933 = vand.u32 %v2528, 4294901760
      %v2934 = vsub.f32 %v2528, %v2933
      %v2935 = vand.u32 %v2934, 4294901760
      %2936 = vmatpush.msra.mxu0 %v2935
      %v2937 = vand.u32 %v2526, 4294901760
      %v2938 = vsub.f32 %v2526, %v2937
      %v2939 = vand.u32 %v2938, 4294901760
      %2940 = vmatpush.msra.mxu0 %v2939
      %v2941 = vand.u32 %v2524, 4294901760
      %v2942 = vsub.f32 %v2524, %v2941
      %v2943 = vand.u32 %v2942, 4294901760
      %2944 = vmatpush.msra.mxu0 %v2943
      %v2945 = vand.u32 %v2522, 4294901760
      %v2946 = vsub.f32 %v2522, %v2945
      %v2947 = vand.u32 %v2946, 4294901760
      %2948 = vmatpush.msra.mxu0 %v2947
      %v2949 = vand.u32 %v2520, 4294901760
      %v2950 = vsub.f32 %v2520, %v2949
      %v2951 = vand.u32 %v2950, 4294901760
      %2952 = vmatpush.msra.mxu0 %v2951
      %v2953 = vand.u32 %v2518, 4294901760
      %v2954 = vsub.f32 %v2518, %v2953
      %v2955 = vand.u32 %v2954, 4294901760
      %2956 = vmatpush.msra.mxu0 %v2955
      %v2957 = vand.u32 %v2516, 4294901760
      %v2958 = vsub.f32 %v2516, %v2957
      %v2959 = vand.u32 %v2958, 4294901760
      %2960 = vmatpush.msra.mxu0 %v2959
      %v2961 = vand.u32 %v2574, 4294901760
      %2962 = vmatmul.f32.gmra.mxu0 %v2961
      %v2963 = vpop.f32.mrf.mxu0
      %v2964 = vadd.f32 %v2877, %v2963
      %v2965 = vand.u32 %v2577, 4294901760
      %2966 = vmatmul.f32.gmra.mxu0 %v2965
      %v2967 = vpop.f32.mrf.mxu0
      %v2968 = vadd.f32 %v2883, %v2967
      %v2969 = vand.u32 %v2580, 4294901760
      %2970 = vmatmul.f32.gmra.mxu0 %v2969
      %v2971 = vpop.f32.mrf.mxu0
      %v2972 = vadd.f32 %v2889, %v2971
      %v2973 = vand.u32 %v2583, 4294901760
      %2974 = vmatmul.f32.gmra.mxu0 %v2973
      %v2975 = vpop.f32.mrf.mxu0
      %v2976 = vadd.f32 %v2895, %v2975
      %v2977 = vand.u32 %v2586, 4294901760
      %2978 = vmatmul.f32.gmra.mxu0 %v2977
      %v2979 = vpop.f32.mrf.mxu0
      %v2980 = vadd.f32 %v2901, %v2979
      %v2981 = vand.u32 %v2589, 4294901760
      %2982 = vmatmul.f32.gmra.mxu0 %v2981
      %v2983 = vpop.f32.mrf.mxu0
      %v2984 = vadd.f32 %v2907, %v2983
      %v2985 = vand.u32 %v2592, 4294901760
      %2986 = vmatmul.f32.gmra.mxu0 %v2985
      %v2987 = vpop.f32.mrf.mxu0
      %v2988 = vadd.f32 %v2913, %v2987
      %v2989 = vand.u32 %v2595, 4294901760
      %2990 = vmatmul.f32.gmra.mxu0 %v2989
      %v2991 = vpop.f32.mrf.mxu0
      %v2992 = vadd.f32 %v2919, %v2991
      %2993 = vdwg.mxu0
      %2994 = vmatpush.msra.mxu0 0.0
      %2995 = vmatpush.msra.mxu0 0.0
      %2996 = vmatpush.msra.mxu0 0.0
      %2997 = vmatpush.msra.mxu0 0.0
      %2998 = vmatpush.msra.mxu0 0.0
      %2999 = vmatpush.msra.mxu0 0.0
      %3000 = vmatpush.msra.mxu0 0.0
      %3001 = vmatpush.msra.mxu0 0.0
      %v3002 = vand.u32 %v2530, 4294901760
      %3003 = vmatpush.msra.mxu0 %v3002
      %v3004 = vand.u32 %v2528, 4294901760
      %3005 = vmatpush.msra.mxu0 %v3004
      %v3006 = vand.u32 %v2526, 4294901760
      %3007 = vmatpush.msra.mxu0 %v3006
      %v3008 = vand.u32 %v2524, 4294901760
      %3009 = vmatpush.msra.mxu0 %v3008
      %v3010 = vand.u32 %v2522, 4294901760
      %3011 = vmatpush.msra.mxu0 %v3010
      %v3012 = vand.u32 %v2520, 4294901760
      %3013 = vmatpush.msra.mxu0 %v3012
      %v3014 = vand.u32 %v2518, 4294901760
      %3015 = vmatpush.msra.mxu0 %v3014
      %v3016 = vand.u32 %v2516, 4294901760
      %3017 = vmatpush.msra.mxu0 %v3016
      %v3018 = vand.u32 %v2574, 4294901760
      %3019 = vmatmul.f32.gmra.mxu0 %v3018
      %v3020 = vpop.f32.mrf.mxu0
      %v3021 = vadd.f32 %v2964, %v3020
      %v3022 = vand.u32 %v2577, 4294901760
      %3023 = vmatmul.f32.gmra.mxu0 %v3022
      %v3024 = vpop.f32.mrf.mxu0
      %v3025 = vadd.f32 %v2968, %v3024
      %v3026 = vand.u32 %v2580, 4294901760
      %3027 = vmatmul.f32.gmra.mxu0 %v3026
      %v3028 = vpop.f32.mrf.mxu0
      %v3029 = vadd.f32 %v2972, %v3028
      %v3030 = vand.u32 %v2583, 4294901760
      %3031 = vmatmul.f32.gmra.mxu0 %v3030
      %v3032 = vpop.f32.mrf.mxu0
      %v3033 = vadd.f32 %v2976, %v3032
      %v3034 = vand.u32 %v2586, 4294901760
      %3035 = vmatmul.f32.gmra.mxu0 %v3034
      %v3036 = vpop.f32.mrf.mxu0
      %v3037 = vadd.f32 %v2980, %v3036
      %v3038 = vand.u32 %v2589, 4294901760
      %3039 = vmatmul.f32.gmra.mxu0 %v3038
      %v3040 = vpop.f32.mrf.mxu0
      %v3041 = vadd.f32 %v2984, %v3040
      %v3042 = vand.u32 %v2592, 4294901760
      %3043 = vmatmul.f32.gmra.mxu0 %v3042
      %v3044 = vpop.f32.mrf.mxu0
      %v3045 = vadd.f32 %v2988, %v3044
      %v3046 = vand.u32 %v2595, 4294901760
      %3047 = vmatmul.f32.gmra.mxu0 %v3046
      %v3048 = vpop.f32.mrf.mxu0
      %v3049 = vadd.f32 %v2992, %v3048
      %3050 = vdwg.mxu0
      %3051 = vmatpush.msra.mxu0 0.0
      %3052 = vmatpush.msra.mxu0 0.0
      %3053 = vmatpush.msra.mxu0 0.0
      %3054 = vmatpush.msra.mxu0 0.0
      %3055 = vmatpush.msra.mxu0 0.0
      %3056 = vmatpush.msra.mxu0 0.0
      %3057 = vmatpush.msra.mxu0 0.0
      %3058 = vmatpush.msra.mxu0 0.0
      %v3059 = vand.u32 %v2531, 4294901760
      %3060 = vmatpush.msra.mxu0 %v3059
      %v3061 = vand.u32 %v2529, 4294901760
      %3062 = vmatpush.msra.mxu0 %v3061
      %v3063 = vand.u32 %v2527, 4294901760
      %3064 = vmatpush.msra.mxu0 %v3063
      %v3065 = vand.u32 %v2525, 4294901760
      %3066 = vmatpush.msra.mxu0 %v3065
      %v3067 = vand.u32 %v2523, 4294901760
      %3068 = vmatpush.msra.mxu0 %v3067
      %v3069 = vand.u32 %v2521, 4294901760
      %3070 = vmatpush.msra.mxu0 %v3069
      %v3071 = vand.u32 %v2519, 4294901760
      %3072 = vmatpush.msra.mxu0 %v3071
      %v3073 = vand.u32 %v2517, 4294901760
      %3074 = vmatpush.msra.mxu0 %v3073
      %v3075 = vand.u32 %v2574, 4294901760
      %v3076 = vsub.f32 %v2574, %v3075
      %v3077 = vand.u32 %v3076, 4294901760
      %v3078 = vsub.f32 %v3076, %v3077
      %v3079 = vand.u32 %v3078, 4294901760
      %3080 = vmatmul.f32.gmra.mxu0 %v3079
      %v3081 = vpop.f32.mrf.mxu0
      %v3082 = vadd.f32 %v2543, %v3081
      %v3083 = vand.u32 %v2577, 4294901760
      %v3084 = vsub.f32 %v2577, %v3083
      %v3085 = vand.u32 %v3084, 4294901760
      %v3086 = vsub.f32 %v3084, %v3085
      %v3087 = vand.u32 %v3086, 4294901760
      %3088 = vmatmul.f32.gmra.mxu0 %v3087
      %v3089 = vpop.f32.mrf.mxu0
      %v3090 = vadd.f32 %v2547, %v3089
      %v3091 = vand.u32 %v2580, 4294901760
      %v3092 = vsub.f32 %v2580, %v3091
      %v3093 = vand.u32 %v3092, 4294901760
      %v3094 = vsub.f32 %v3092, %v3093
      %v3095 = vand.u32 %v3094, 4294901760
      %3096 = vmatmul.f32.gmra.mxu0 %v3095
      %v3097 = vpop.f32.mrf.mxu0
      %v3098 = vadd.f32 %v2551, %v3097
      %v3099 = vand.u32 %v2583, 4294901760
      %v3100 = vsub.f32 %v2583, %v3099
      %v3101 = vand.u32 %v3100, 4294901760
      %v3102 = vsub.f32 %v3100, %v3101
      %v3103 = vand.u32 %v3102, 4294901760
      %3104 = vmatmul.f32.gmra.mxu0 %v3103
      %v3105 = vpop.f32.mrf.mxu0
      %v3106 = vadd.f32 %v2555, %v3105
      %v3107 = vand.u32 %v2586, 4294901760
      %v3108 = vsub.f32 %v2586, %v3107
      %v3109 = vand.u32 %v3108, 4294901760
      %v3110 = vsub.f32 %v3108, %v3109
      %v3111 = vand.u32 %v3110, 4294901760
      %3112 = vmatmul.f32.gmra.mxu0 %v3111
      %v3113 = vpop.f32.mrf.mxu0
      %v3114 = vadd.f32 %v2559, %v3113
      %v3115 = vand.u32 %v2589, 4294901760
      %v3116 = vsub.f32 %v2589, %v3115
      %v3117 = vand.u32 %v3116, 4294901760
      %v3118 = vsub.f32 %v3116, %v3117
      %v3119 = vand.u32 %v3118, 4294901760
      %3120 = vmatmul.f32.gmra.mxu0 %v3119
      %v3121 = vpop.f32.mrf.mxu0
      %v3122 = vadd.f32 %v2563, %v3121
      %v3123 = vand.u32 %v2592, 4294901760
      %v3124 = vsub.f32 %v2592, %v3123
      %v3125 = vand.u32 %v3124, 4294901760
      %v3126 = vsub.f32 %v3124, %v3125
      %v3127 = vand.u32 %v3126, 4294901760
      %3128 = vmatmul.f32.gmra.mxu0 %v3127
      %v3129 = vpop.f32.mrf.mxu0
      %v3130 = vadd.f32 %v2567, %v3129
      %v3131 = vand.u32 %v2595, 4294901760
      %v3132 = vsub.f32 %v2595, %v3131
      %v3133 = vand.u32 %v3132, 4294901760
      %v3134 = vsub.f32 %v3132, %v3133
      %v3135 = vand.u32 %v3134, 4294901760
      %3136 = vmatmul.f32.gmra.mxu0 %v3135
      %v3137 = vpop.f32.mrf.mxu0
      %v3138 = vadd.f32 %v2571, %v3137
      %3139 = vdwg.mxu0
      %3140 = vmatpush.msra.mxu0 0.0
      %3141 = vmatpush.msra.mxu0 0.0
      %3142 = vmatpush.msra.mxu0 0.0
      %3143 = vmatpush.msra.mxu0 0.0
      %3144 = vmatpush.msra.mxu0 0.0
      %3145 = vmatpush.msra.mxu0 0.0
      %3146 = vmatpush.msra.mxu0 0.0
      %3147 = vmatpush.msra.mxu0 0.0
      %v3148 = vand.u32 %v2531, 4294901760
      %v3149 = vsub.f32 %v2531, %v3148
      %v3150 = vand.u32 %v3149, 4294901760
      %v3151 = vsub.f32 %v3149, %v3150
      %v3152 = vand.u32 %v3151, 4294901760
      %3153 = vmatpush.msra.mxu0 %v3152
      %v3154 = vand.u32 %v2529, 4294901760
      %v3155 = vsub.f32 %v2529, %v3154
      %v3156 = vand.u32 %v3155, 4294901760
      %v3157 = vsub.f32 %v3155, %v3156
      %v3158 = vand.u32 %v3157, 4294901760
      %3159 = vmatpush.msra.mxu0 %v3158
      %v3160 = vand.u32 %v2527, 4294901760
      %v3161 = vsub.f32 %v2527, %v3160
      %v3162 = vand.u32 %v3161, 4294901760
      %v3163 = vsub.f32 %v3161, %v3162
      %v3164 = vand.u32 %v3163, 4294901760
      %3165 = vmatpush.msra.mxu0 %v3164
      %v3166 = vand.u32 %v2525, 4294901760
      %v3167 = vsub.f32 %v2525, %v3166
      %v3168 = vand.u32 %v3167, 4294901760
      %v3169 = vsub.f32 %v3167, %v3168
      %v3170 = vand.u32 %v3169, 4294901760
      %3171 = vmatpush.msra.mxu0 %v3170
      %v3172 = vand.u32 %v2523, 4294901760
      %v3173 = vsub.f32 %v2523, %v3172
      %v3174 = vand.u32 %v3173, 4294901760
      %v3175 = vsub.f32 %v3173, %v3174
      %v3176 = vand.u32 %v3175, 4294901760
      %3177 = vmatpush.msra.mxu0 %v3176
      %v3178 = vand.u32 %v2521, 4294901760
      %v3179 = vsub.f32 %v2521, %v3178
      %v3180 = vand.u32 %v3179, 4294901760
      %v3181 = vsub.f32 %v3179, %v3180
      %v3182 = vand.u32 %v3181, 4294901760
      %3183 = vmatpush.msra.mxu0 %v3182
      %v3184 = vand.u32 %v2519, 4294901760
      %v3185 = vsub.f32 %v2519, %v3184
      %v3186 = vand.u32 %v3185, 4294901760
      %v3187 = vsub.f32 %v3185, %v3186
      %v3188 = vand.u32 %v3187, 4294901760
      %3189 = vmatpush.msra.mxu0 %v3188
      %v3190 = vand.u32 %v2517, 4294901760
      %v3191 = vsub.f32 %v2517, %v3190
      %v3192 = vand.u32 %v3191, 4294901760
      %v3193 = vsub.f32 %v3191, %v3192
      %v3194 = vand.u32 %v3193, 4294901760
      %3195 = vmatpush.msra.mxu0 %v3194
      %v3196 = vand.u32 %v2574, 4294901760
      %3197 = vmatmul.f32.gmra.mxu0 %v3196
      %v3198 = vpop.f32.mrf.mxu0
      %v3199 = vadd.f32 %v3082, %v3198
      %v3200 = vand.u32 %v2577, 4294901760
      %3201 = vmatmul.f32.gmra.mxu0 %v3200
      %v3202 = vpop.f32.mrf.mxu0
      %v3203 = vadd.f32 %v3090, %v3202
      %v3204 = vand.u32 %v2580, 4294901760
      %3205 = vmatmul.f32.gmra.mxu0 %v3204
      %v3206 = vpop.f32.mrf.mxu0
      %v3207 = vadd.f32 %v3098, %v3206
      %v3208 = vand.u32 %v2583, 4294901760
      %3209 = vmatmul.f32.gmra.mxu0 %v3208
      %v3210 = vpop.f32.mrf.mxu0
      %v3211 = vadd.f32 %v3106, %v3210
      %v3212 = vand.u32 %v2586, 4294901760
      %3213 = vmatmul.f32.gmra.mxu0 %v3212
      %v3214 = vpop.f32.mrf.mxu0
      %v3215 = vadd.f32 %v3114, %v3214
      %v3216 = vand.u32 %v2589, 4294901760
      %3217 = vmatmul.f32.gmra.mxu0 %v3216
      %v3218 = vpop.f32.mrf.mxu0
      %v3219 = vadd.f32 %v3122, %v3218
      %v3220 = vand.u32 %v2592, 4294901760
      %3221 = vmatmul.f32.gmra.mxu0 %v3220
      %v3222 = vpop.f32.mrf.mxu0
      %v3223 = vadd.f32 %v3130, %v3222
      %v3224 = vand.u32 %v2595, 4294901760
      %3225 = vmatmul.f32.gmra.mxu0 %v3224
      %v3226 = vpop.f32.mrf.mxu0
      %v3227 = vadd.f32 %v3138, %v3226
      %3228 = vdwg.mxu0
      %3229 = vmatpush.msra.mxu0 0.0
      %3230 = vmatpush.msra.mxu0 0.0
      %3231 = vmatpush.msra.mxu0 0.0
      %3232 = vmatpush.msra.mxu0 0.0
      %3233 = vmatpush.msra.mxu0 0.0
      %3234 = vmatpush.msra.mxu0 0.0
      %3235 = vmatpush.msra.mxu0 0.0
      %3236 = vmatpush.msra.mxu0 0.0
      %v3237 = vand.u32 %v2531, 4294901760
      %v3238 = vsub.f32 %v2531, %v3237
      %3239 = vmatpush.msra.mxu0 %v3238
      %v3240 = vand.u32 %v2529, 4294901760
      %v3241 = vsub.f32 %v2529, %v3240
      %3242 = vmatpush.msra.mxu0 %v3241
      %v3243 = vand.u32 %v2527, 4294901760
      %v3244 = vsub.f32 %v2527, %v3243
      %3245 = vmatpush.msra.mxu0 %v3244
      %v3246 = vand.u32 %v2525, 4294901760
      %v3247 = vsub.f32 %v2525, %v3246
      %3248 = vmatpush.msra.mxu0 %v3247
      %v3249 = vand.u32 %v2523, 4294901760
      %v3250 = vsub.f32 %v2523, %v3249
      %3251 = vmatpush.msra.mxu0 %v3250
      %v3252 = vand.u32 %v2521, 4294901760
      %v3253 = vsub.f32 %v2521, %v3252
      %3254 = vmatpush.msra.mxu0 %v3253
      %v3255 = vand.u32 %v2519, 4294901760
      %v3256 = vsub.f32 %v2519, %v3255
      %3257 = vmatpush.msra.mxu0 %v3256
      %v3258 = vand.u32 %v2517, 4294901760
      %v3259 = vsub.f32 %v2517, %v3258
      %3260 = vmatpush.msra.mxu0 %v3259
      %v3261 = vand.u32 %v2574, 4294901760
      %v3262 = vsub.f32 %v2574, %v3261
      %3263 = vmatmul.f32.gmra.mxu0 %v3262
      %v3264 = vpop.f32.mrf.mxu0
      %v3265 = vadd.f32 %v3199, %v3264
      %v3266 = vand.u32 %v2577, 4294901760
      %v3267 = vsub.f32 %v2577, %v3266
      %3268 = vmatmul.f32.gmra.mxu0 %v3267
      %v3269 = vpop.f32.mrf.mxu0
      %v3270 = vadd.f32 %v3203, %v3269
      %v3271 = vand.u32 %v2580, 4294901760
      %v3272 = vsub.f32 %v2580, %v3271
      %3273 = vmatmul.f32.gmra.mxu0 %v3272
      %v3274 = vpop.f32.mrf.mxu0
      %v3275 = vadd.f32 %v3207, %v3274
      %v3276 = vand.u32 %v2583, 4294901760
      %v3277 = vsub.f32 %v2583, %v3276
      %3278 = vmatmul.f32.gmra.mxu0 %v3277
      %v3279 = vpop.f32.mrf.mxu0
      %v3280 = vadd.f32 %v3211, %v3279
      %v3281 = vand.u32 %v2586, 4294901760
      %v3282 = vsub.f32 %v2586, %v3281
      %3283 = vmatmul.f32.gmra.mxu0 %v3282
      %v3284 = vpop.f32.mrf.mxu0
      %v3285 = vadd.f32 %v3215, %v3284
      %v3286 = vand.u32 %v2589, 4294901760
      %v3287 = vsub.f32 %v2589, %v3286
      %3288 = vmatmul.f32.gmra.mxu0 %v3287
      %v3289 = vpop.f32.mrf.mxu0
      %v3290 = vadd.f32 %v3219, %v3289
      %v3291 = vand.u32 %v2592, 4294901760
      %v3292 = vsub.f32 %v2592, %v3291
      %3293 = vmatmul.f32.gmra.mxu0 %v3292
      %v3294 = vpop.f32.mrf.mxu0
      %v3295 = vadd.f32 %v3223, %v3294
      %v3296 = vand.u32 %v2595, 4294901760
      %v3297 = vsub.f32 %v2595, %v3296
      %3298 = vmatmul.f32.gmra.mxu0 %v3297
      %v3299 = vpop.f32.mrf.mxu0
      %v3300 = vadd.f32 %v3227, %v3299
      %3301 = vdwg.mxu0
      %3302 = vmatpush.msra.mxu0 0.0
      %3303 = vmatpush.msra.mxu0 0.0
      %3304 = vmatpush.msra.mxu0 0.0
      %3305 = vmatpush.msra.mxu0 0.0
      %3306 = vmatpush.msra.mxu0 0.0
      %3307 = vmatpush.msra.mxu0 0.0
      %3308 = vmatpush.msra.mxu0 0.0
      %3309 = vmatpush.msra.mxu0 0.0
      %v3310 = vand.u32 %v2531, 4294901760
      %3311 = vmatpush.msra.mxu0 %v3310
      %v3312 = vand.u32 %v2529, 4294901760
      %3313 = vmatpush.msra.mxu0 %v3312
      %v3314 = vand.u32 %v2527, 4294901760
      %3315 = vmatpush.msra.mxu0 %v3314
      %v3316 = vand.u32 %v2525, 4294901760
      %3317 = vmatpush.msra.mxu0 %v3316
      %v3318 = vand.u32 %v2523, 4294901760
      %3319 = vmatpush.msra.mxu0 %v3318
      %v3320 = vand.u32 %v2521, 4294901760
      %3321 = vmatpush.msra.mxu0 %v3320
      %v3322 = vand.u32 %v2519, 4294901760
      %3323 = vmatpush.msra.mxu0 %v3322
      %v3324 = vand.u32 %v2517, 4294901760
      %3325 = vmatpush.msra.mxu0 %v3324
      %v3326 = vand.u32 %v2574, 4294901760
      %v3327 = vsub.f32 %v2574, %v3326
      %v3328 = vand.u32 %v3327, 4294901760
      %3329 = vmatmul.f32.gmra.mxu0 %v3328
      %v3330 = vpop.f32.mrf.mxu0
      %v3331 = vadd.f32 %v3265, %v3330
      %v3332 = vand.u32 %v2577, 4294901760
      %v3333 = vsub.f32 %v2577, %v3332
      %v3334 = vand.u32 %v3333, 4294901760
      %3335 = vmatmul.f32.gmra.mxu0 %v3334
      %v3336 = vpop.f32.mrf.mxu0
      %v3337 = vadd.f32 %v3270, %v3336
      %v3338 = vand.u32 %v2580, 4294901760
      %v3339 = vsub.f32 %v2580, %v3338
      %v3340 = vand.u32 %v3339, 4294901760
      %3341 = vmatmul.f32.gmra.mxu0 %v3340
      %v3342 = vpop.f32.mrf.mxu0
      %v3343 = vadd.f32 %v3275, %v3342
      %v3344 = vand.u32 %v2583, 4294901760
      %v3345 = vsub.f32 %v2583, %v3344
      %v3346 = vand.u32 %v3345, 4294901760
      %3347 = vmatmul.f32.gmra.mxu0 %v3346
      %v3348 = vpop.f32.mrf.mxu0
      %v3349 = vadd.f32 %v3280, %v3348
      %v3350 = vand.u32 %v2586, 4294901760
      %v3351 = vsub.f32 %v2586, %v3350
      %v3352 = vand.u32 %v3351, 4294901760
      %3353 = vmatmul.f32.gmra.mxu0 %v3352
      %v3354 = vpop.f32.mrf.mxu0
      %v3355 = vadd.f32 %v3285, %v3354
      %v3356 = vand.u32 %v2589, 4294901760
      %v3357 = vsub.f32 %v2589, %v3356
      %v3358 = vand.u32 %v3357, 4294901760
      %3359 = vmatmul.f32.gmra.mxu0 %v3358
      %v3360 = vpop.f32.mrf.mxu0
      %v3361 = vadd.f32 %v3290, %v3360
      %v3362 = vand.u32 %v2592, 4294901760
      %v3363 = vsub.f32 %v2592, %v3362
      %v3364 = vand.u32 %v3363, 4294901760
      %3365 = vmatmul.f32.gmra.mxu0 %v3364
      %v3366 = vpop.f32.mrf.mxu0
      %v3367 = vadd.f32 %v3295, %v3366
      %v3368 = vand.u32 %v2595, 4294901760
      %v3369 = vsub.f32 %v2595, %v3368
      %v3370 = vand.u32 %v3369, 4294901760
      %3371 = vmatmul.f32.gmra.mxu0 %v3370
      %v3372 = vpop.f32.mrf.mxu0
      %v3373 = vadd.f32 %v3300, %v3372
      %3374 = vdwg.mxu0
      %3375 = vmatpush.msra.mxu0 0.0
      %3376 = vmatpush.msra.mxu0 0.0
      %3377 = vmatpush.msra.mxu0 0.0
      %3378 = vmatpush.msra.mxu0 0.0
      %3379 = vmatpush.msra.mxu0 0.0
      %3380 = vmatpush.msra.mxu0 0.0
      %3381 = vmatpush.msra.mxu0 0.0
      %3382 = vmatpush.msra.mxu0 0.0
      %v3383 = vand.u32 %v2531, 4294901760
      %v3384 = vsub.f32 %v2531, %v3383
      %v3385 = vand.u32 %v3384, 4294901760
      %3386 = vmatpush.msra.mxu0 %v3385
      %v3387 = vand.u32 %v2529, 4294901760
      %v3388 = vsub.f32 %v2529, %v3387
      %v3389 = vand.u32 %v3388, 4294901760
      %3390 = vmatpush.msra.mxu0 %v3389
      %v3391 = vand.u32 %v2527, 4294901760
      %v3392 = vsub.f32 %v2527, %v3391
      %v3393 = vand.u32 %v3392, 4294901760
      %3394 = vmatpush.msra.mxu0 %v3393
      %v3395 = vand.u32 %v2525, 4294901760
      %v3396 = vsub.f32 %v2525, %v3395
      %v3397 = vand.u32 %v3396, 4294901760
      %3398 = vmatpush.msra.mxu0 %v3397
      %v3399 = vand.u32 %v2523, 4294901760
      %v3400 = vsub.f32 %v2523, %v3399
      %v3401 = vand.u32 %v3400, 4294901760
      %3402 = vmatpush.msra.mxu0 %v3401
      %v3403 = vand.u32 %v2521, 4294901760
      %v3404 = vsub.f32 %v2521, %v3403
      %v3405 = vand.u32 %v3404, 4294901760
      %3406 = vmatpush.msra.mxu0 %v3405
      %v3407 = vand.u32 %v2519, 4294901760
      %v3408 = vsub.f32 %v2519, %v3407
      %v3409 = vand.u32 %v3408, 4294901760
      %3410 = vmatpush.msra.mxu0 %v3409
      %v3411 = vand.u32 %v2517, 4294901760
      %v3412 = vsub.f32 %v2517, %v3411
      %v3413 = vand.u32 %v3412, 4294901760
      %3414 = vmatpush.msra.mxu0 %v3413
      %v3415 = vand.u32 %v2574, 4294901760
      %3416 = vmatmul.f32.gmra.mxu0 %v3415
      %v3417 = vpop.f32.mrf.mxu0
      %v3418 = vadd.f32 %v3331, %v3417
      %v3419 = vand.u32 %v2577, 4294901760
      %3420 = vmatmul.f32.gmra.mxu0 %v3419
      %v3421 = vpop.f32.mrf.mxu0
      %v3422 = vadd.f32 %v3337, %v3421
      %v3423 = vand.u32 %v2580, 4294901760
      %3424 = vmatmul.f32.gmra.mxu0 %v3423
      %v3425 = vpop.f32.mrf.mxu0
      %v3426 = vadd.f32 %v3343, %v3425
      %v3427 = vand.u32 %v2583, 4294901760
      %3428 = vmatmul.f32.gmra.mxu0 %v3427
      %v3429 = vpop.f32.mrf.mxu0
      %v3430 = vadd.f32 %v3349, %v3429
      %v3431 = vand.u32 %v2586, 4294901760
      %3432 = vmatmul.f32.gmra.mxu0 %v3431
      %v3433 = vpop.f32.mrf.mxu0
      %v3434 = vadd.f32 %v3355, %v3433
      %v3435 = vand.u32 %v2589, 4294901760
      %3436 = vmatmul.f32.gmra.mxu0 %v3435
      %v3437 = vpop.f32.mrf.mxu0
      %v3438 = vadd.f32 %v3361, %v3437
      %v3439 = vand.u32 %v2592, 4294901760
      %3440 = vmatmul.f32.gmra.mxu0 %v3439
      %v3441 = vpop.f32.mrf.mxu0
      %v3442 = vadd.f32 %v3367, %v3441
      %v3443 = vand.u32 %v2595, 4294901760
      %3444 = vmatmul.f32.gmra.mxu0 %v3443
      %v3445 = vpop.f32.mrf.mxu0
      %v3446 = vadd.f32 %v3373, %v3445
      %3447 = vdwg.mxu0
      %3448 = vmatpush.msra.mxu0 0.0
      %3449 = vmatpush.msra.mxu0 0.0
      %3450 = vmatpush.msra.mxu0 0.0
      %3451 = vmatpush.msra.mxu0 0.0
      %3452 = vmatpush.msra.mxu0 0.0
      %3453 = vmatpush.msra.mxu0 0.0
      %3454 = vmatpush.msra.mxu0 0.0
      %3455 = vmatpush.msra.mxu0 0.0
      %v3456 = vand.u32 %v2531, 4294901760
      %3457 = vmatpush.msra.mxu0 %v3456
      %v3458 = vand.u32 %v2529, 4294901760
      %3459 = vmatpush.msra.mxu0 %v3458
      %v3460 = vand.u32 %v2527, 4294901760
      %3461 = vmatpush.msra.mxu0 %v3460
      %v3462 = vand.u32 %v2525, 4294901760
      %3463 = vmatpush.msra.mxu0 %v3462
      %v3464 = vand.u32 %v2523, 4294901760
      %3465 = vmatpush.msra.mxu0 %v3464
      %v3466 = vand.u32 %v2521, 4294901760
      %3467 = vmatpush.msra.mxu0 %v3466
      %v3468 = vand.u32 %v2519, 4294901760
      %3469 = vmatpush.msra.mxu0 %v3468
      %v3470 = vand.u32 %v2517, 4294901760
      %3471 = vmatpush.msra.mxu0 %v3470
      %v3472 = vand.u32 %v2574, 4294901760
      %3473 = vmatmul.f32.gmra.mxu0 %v3472
      %v3474 = vpop.f32.mrf.mxu0
      %v3475 = vadd.f32 %v3418, %v3474
      %v3476 = vand.u32 %v2577, 4294901760
      %3477 = vmatmul.f32.gmra.mxu0 %v3476
      %v3478 = vpop.f32.mrf.mxu0
      %v3479 = vadd.f32 %v3422, %v3478
      %v3480 = vand.u32 %v2580, 4294901760
      %3481 = vmatmul.f32.gmra.mxu0 %v3480
      %v3482 = vpop.f32.mrf.mxu0
      %v3483 = vadd.f32 %v3426, %v3482
      %v3484 = vand.u32 %v2583, 4294901760
      %3485 = vmatmul.f32.gmra.mxu0 %v3484
      %v3486 = vpop.f32.mrf.mxu0
      %v3487 = vadd.f32 %v3430, %v3486
      %v3488 = vand.u32 %v2586, 4294901760
      %3489 = vmatmul.f32.gmra.mxu0 %v3488
      %v3490 = vpop.f32.mrf.mxu0
      %v3491 = vadd.f32 %v3434, %v3490
      %v3492 = vand.u32 %v2589, 4294901760
      %3493 = vmatmul.f32.gmra.mxu0 %v3492
      %v3494 = vpop.f32.mrf.mxu0
      %v3495 = vadd.f32 %v3438, %v3494
      %v3496 = vand.u32 %v2592, 4294901760
      %3497 = vmatmul.f32.gmra.mxu0 %v3496
      %v3498 = vpop.f32.mrf.mxu0
      %v3499 = vadd.f32 %v3442, %v3498
      %v3500 = vand.u32 %v2595, 4294901760
      %3501 = vmatmul.f32.gmra.mxu0 %v3500
      %v3502 = vpop.f32.mrf.mxu0
      %v3503 = vadd.f32 %v3446, %v3502
      %3504 = vdwg.mxu0
      %v3505 = vmax.f32 %v3021, 0.0
      %v3506 = vmax.f32 %v3475, 0.0
      %v3507 = vmax.f32 %v3025, 0.0
      %v3508 = vmax.f32 %v3479, 0.0
      %v3509 = vmax.f32 %v3029, 0.0
      %v3510 = vmax.f32 %v3483, 0.0
      %v3511 = vmax.f32 %v3033, 0.0
      %v3512 = vmax.f32 %v3487, 0.0
      %v3513 = vmax.f32 %v3037, 0.0
      %v3514 = vmax.f32 %v3491, 0.0
      %v3515 = vmax.f32 %v3041, 0.0
      %v3516 = vmax.f32 %v3495, 0.0
      %v3517 = vmax.f32 %v3045, 0.0
      %v3518 = vmax.f32 %v3499, 0.0
      %v3519 = vmax.f32 %v3049, 0.0
      %v3520 = vmax.f32 %v3503, 0.0
      %s3521 = scalar_lea.vmem %s1, 192
      %v3522 = vld [vmem:[%s3521] sm:$0xff]
      %v3523 = vld [vmem:[%s3521 + $0x8] sm:$0xff]
      %v3524 = vld [vmem:[%s3521 + $0x10] sm:$0xff]
      %v3525 = vld [vmem:[%s3521 + $0x18] sm:$0xff]
      %v3526 = vld [vmem:[%s3521 + $0x20] sm:$0xff]
      %v3527 = vld [vmem:[%s3521 + $0x28] sm:$0xff]
      %v3528 = vld [vmem:[%s3521 + $0x30] sm:$0xff]
      %v3529 = vld [vmem:[%s3521 + $0x38] sm:$0xff]
      %3530 = vset.pattern.permute.xlu0 3
      %3531 = vperm.xlu0 %3530, %v241
      %v3532 = vpop.permute.xlu0 %3531
      %3534 = vset.pattern.permute.xlu0 3
      %3535 = vperm.xlu0 %3534, %v242
      %v3536 = vpop.permute.xlu0 %3535
      %3538 = vset.pattern.permute.xlu0 3
      %3539 = vperm.xlu0 %3538, %v243
      %v3540 = vpop.permute.xlu0 %3539
      %3542 = vset.pattern.permute.xlu0 3
      %3543 = vperm.xlu0 %3542, %v244
      %v3544 = vpop.permute.xlu0 %3543
      %3546 = vset.pattern.permute.xlu0 3
      %3547 = vperm.xlu0 %3546, %v245
      %v3548 = vpop.permute.xlu0 %3547
      %3550 = vset.pattern.permute.xlu0 3
      %3551 = vperm.xlu0 %3550, %v246
      %v3552 = vpop.permute.xlu0 %3551
      %3554 = vset.pattern.permute.xlu0 3
      %3555 = vperm.xlu0 %3554, %v247
      %v3556 = vpop.permute.xlu0 %3555
      %3558 = vset.pattern.permute.xlu0 3
      %3559 = vperm.xlu0 %3558, %v248
      %v3560 = vpop.permute.xlu0 %3559
      %v3563 = vsel %vm1583, %v3522, 0
      %v3566 = vsel %vm1583, %v3523, 0
      %v3569 = vsel %vm1583, %v3524, 0
      %v3572 = vsel %vm1583, %v3525, 0
      %v3575 = vsel %vm1583, %v3526, 0
      %v3578 = vsel %vm1583, %v3527, 0
      %v3581 = vsel %vm1583, %v3528, 0
      %v3584 = vsel %vm1583, %v3529, 0
      %3586 = vmatpush.msra.mxu0 0.0
      %3587 = vmatpush.msra.mxu0 0.0
      %3588 = vmatpush.msra.mxu0 0.0
      %3589 = vmatpush.msra.mxu0 0.0
      %3590 = vmatpush.msra.mxu0 0.0
      %3591 = vmatpush.msra.mxu0 0.0
      %3592 = vmatpush.msra.mxu0 0.0
      %3593 = vmatpush.msra.mxu0 0.0
      %v3594 = vand.u32 %v3519, 4294901760
      %3595 = vmatpush.msra.mxu0 %v3594
      %v3596 = vand.u32 %v3517, 4294901760
      %3597 = vmatpush.msra.mxu0 %v3596
      %v3598 = vand.u32 %v3515, 4294901760
      %3599 = vmatpush.msra.mxu0 %v3598
      %v3600 = vand.u32 %v3513, 4294901760
      %3601 = vmatpush.msra.mxu0 %v3600
      %v3602 = vand.u32 %v3511, 4294901760
      %3603 = vmatpush.msra.mxu0 %v3602
      %v3604 = vand.u32 %v3509, 4294901760
      %3605 = vmatpush.msra.mxu0 %v3604
      %v3606 = vand.u32 %v3507, 4294901760
      %3607 = vmatpush.msra.mxu0 %v3606
      %v3608 = vand.u32 %v3505, 4294901760
      %3609 = vmatpush.msra.mxu0 %v3608
      %v3610 = vand.u32 %v3563, 4294901760
      %v3611 = vsub.f32 %v3563, %v3610
      %v3612 = vand.u32 %v3611, 4294901760
      %v3613 = vsub.f32 %v3611, %v3612
      %v3614 = vand.u32 %v3613, 4294901760
      %3615 = vmatmul.f32.gmra.mxu0 %v3614
      %v3616 = vpop.f32.mrf.mxu0
      %v3617 = vadd.f32 %v3532, %v3616
      %v3618 = vand.u32 %v3566, 4294901760
      %v3619 = vsub.f32 %v3566, %v3618
      %v3620 = vand.u32 %v3619, 4294901760
      %v3621 = vsub.f32 %v3619, %v3620
      %v3622 = vand.u32 %v3621, 4294901760
      %3623 = vmatmul.f32.gmra.mxu0 %v3622
      %v3624 = vpop.f32.mrf.mxu0
      %v3625 = vadd.f32 %v3536, %v3624
      %v3626 = vand.u32 %v3569, 4294901760
      %v3627 = vsub.f32 %v3569, %v3626
      %v3628 = vand.u32 %v3627, 4294901760
      %v3629 = vsub.f32 %v3627, %v3628
      %v3630 = vand.u32 %v3629, 4294901760
      %3631 = vmatmul.f32.gmra.mxu0 %v3630
      %v3632 = vpop.f32.mrf.mxu0
      %v3633 = vadd.f32 %v3540, %v3632
      %v3634 = vand.u32 %v3572, 4294901760
      %v3635 = vsub.f32 %v3572, %v3634
      %v3636 = vand.u32 %v3635, 4294901760
      %v3637 = vsub.f32 %v3635, %v3636
      %v3638 = vand.u32 %v3637, 4294901760
      %3639 = vmatmul.f32.gmra.mxu0 %v3638
      %v3640 = vpop.f32.mrf.mxu0
      %v3641 = vadd.f32 %v3544, %v3640
      %v3642 = vand.u32 %v3575, 4294901760
      %v3643 = vsub.f32 %v3575, %v3642
      %v3644 = vand.u32 %v3643, 4294901760
      %v3645 = vsub.f32 %v3643, %v3644
      %v3646 = vand.u32 %v3645, 4294901760
      %3647 = vmatmul.f32.gmra.mxu0 %v3646
      %v3648 = vpop.f32.mrf.mxu0
      %v3649 = vadd.f32 %v3548, %v3648
      %v3650 = vand.u32 %v3578, 4294901760
      %v3651 = vsub.f32 %v3578, %v3650
      %v3652 = vand.u32 %v3651, 4294901760
      %v3653 = vsub.f32 %v3651, %v3652
      %v3654 = vand.u32 %v3653, 4294901760
      %3655 = vmatmul.f32.gmra.mxu0 %v3654
      %v3656 = vpop.f32.mrf.mxu0
      %v3657 = vadd.f32 %v3552, %v3656
      %v3658 = vand.u32 %v3581, 4294901760
      %v3659 = vsub.f32 %v3581, %v3658
      %v3660 = vand.u32 %v3659, 4294901760
      %v3661 = vsub.f32 %v3659, %v3660
      %v3662 = vand.u32 %v3661, 4294901760
      %3663 = vmatmul.f32.gmra.mxu0 %v3662
      %v3664 = vpop.f32.mrf.mxu0
      %v3665 = vadd.f32 %v3556, %v3664
      %v3666 = vand.u32 %v3584, 4294901760
      %v3667 = vsub.f32 %v3584, %v3666
      %v3668 = vand.u32 %v3667, 4294901760
      %v3669 = vsub.f32 %v3667, %v3668
      %v3670 = vand.u32 %v3669, 4294901760
      %3671 = vmatmul.f32.gmra.mxu0 %v3670
      %v3672 = vpop.f32.mrf.mxu0
      %v3673 = vadd.f32 %v3560, %v3672
      %3674 = vdwg.mxu0
      %3675 = vmatpush.msra.mxu0 0.0
      %3676 = vmatpush.msra.mxu0 0.0
      %3677 = vmatpush.msra.mxu0 0.0
      %3678 = vmatpush.msra.mxu0 0.0
      %3679 = vmatpush.msra.mxu0 0.0
      %3680 = vmatpush.msra.mxu0 0.0
      %3681 = vmatpush.msra.mxu0 0.0
      %3682 = vmatpush.msra.mxu0 0.0
      %v3683 = vand.u32 %v3519, 4294901760
      %v3684 = vsub.f32 %v3519, %v3683
      %v3685 = vand.u32 %v3684, 4294901760
      %v3686 = vsub.f32 %v3684, %v3685
      %v3687 = vand.u32 %v3686, 4294901760
      %3688 = vmatpush.msra.mxu0 %v3687
      %v3689 = vand.u32 %v3517, 4294901760
      %v3690 = vsub.f32 %v3517, %v3689
      %v3691 = vand.u32 %v3690, 4294901760
      %v3692 = vsub.f32 %v3690, %v3691
      %v3693 = vand.u32 %v3692, 4294901760
      %3694 = vmatpush.msra.mxu0 %v3693
      %v3695 = vand.u32 %v3515, 4294901760
      %v3696 = vsub.f32 %v3515, %v3695
      %v3697 = vand.u32 %v3696, 4294901760
      %v3698 = vsub.f32 %v3696, %v3697
      %v3699 = vand.u32 %v3698, 4294901760
      %3700 = vmatpush.msra.mxu0 %v3699
      %v3701 = vand.u32 %v3513, 4294901760
      %v3702 = vsub.f32 %v3513, %v3701
      %v3703 = vand.u32 %v3702, 4294901760
      %v3704 = vsub.f32 %v3702, %v3703
      %v3705 = vand.u32 %v3704, 4294901760
      %3706 = vmatpush.msra.mxu0 %v3705
      %v3707 = vand.u32 %v3511, 4294901760
      %v3708 = vsub.f32 %v3511, %v3707
      %v3709 = vand.u32 %v3708, 4294901760
      %v3710 = vsub.f32 %v3708, %v3709
      %v3711 = vand.u32 %v3710, 4294901760
      %3712 = vmatpush.msra.mxu0 %v3711
      %v3713 = vand.u32 %v3509, 4294901760
      %v3714 = vsub.f32 %v3509, %v3713
      %v3715 = vand.u32 %v3714, 4294901760
      %v3716 = vsub.f32 %v3714, %v3715
      %v3717 = vand.u32 %v3716, 4294901760
      %3718 = vmatpush.msra.mxu0 %v3717
      %v3719 = vand.u32 %v3507, 4294901760
      %v3720 = vsub.f32 %v3507, %v3719
      %v3721 = vand.u32 %v3720, 4294901760
      %v3722 = vsub.f32 %v3720, %v3721
      %v3723 = vand.u32 %v3722, 4294901760
      %3724 = vmatpush.msra.mxu0 %v3723
      %v3725 = vand.u32 %v3505, 4294901760
      %v3726 = vsub.f32 %v3505, %v3725
      %v3727 = vand.u32 %v3726, 4294901760
      %v3728 = vsub.f32 %v3726, %v3727
      %v3729 = vand.u32 %v3728, 4294901760
      %3730 = vmatpush.msra.mxu0 %v3729
      %v3731 = vand.u32 %v3563, 4294901760
      %3732 = vmatmul.f32.gmra.mxu0 %v3731
      %v3733 = vpop.f32.mrf.mxu0
      %v3734 = vadd.f32 %v3617, %v3733
      %v3735 = vand.u32 %v3566, 4294901760
      %3736 = vmatmul.f32.gmra.mxu0 %v3735
      %v3737 = vpop.f32.mrf.mxu0
      %v3738 = vadd.f32 %v3625, %v3737
      %v3739 = vand.u32 %v3569, 4294901760
      %3740 = vmatmul.f32.gmra.mxu0 %v3739
      %v3741 = vpop.f32.mrf.mxu0
      %v3742 = vadd.f32 %v3633, %v3741
      %v3743 = vand.u32 %v3572, 4294901760
      %3744 = vmatmul.f32.gmra.mxu0 %v3743
      %v3745 = vpop.f32.mrf.mxu0
      %v3746 = vadd.f32 %v3641, %v3745
      %v3747 = vand.u32 %v3575, 4294901760
      %3748 = vmatmul.f32.gmra.mxu0 %v3747
      %v3749 = vpop.f32.mrf.mxu0
      %v3750 = vadd.f32 %v3649, %v3749
      %v3751 = vand.u32 %v3578, 4294901760
      %3752 = vmatmul.f32.gmra.mxu0 %v3751
      %v3753 = vpop.f32.mrf.mxu0
      %v3754 = vadd.f32 %v3657, %v3753
      %v3755 = vand.u32 %v3581, 4294901760
      %3756 = vmatmul.f32.gmra.mxu0 %v3755
      %v3757 = vpop.f32.mrf.mxu0
      %v3758 = vadd.f32 %v3665, %v3757
      %v3759 = vand.u32 %v3584, 4294901760
      %3760 = vmatmul.f32.gmra.mxu0 %v3759
      %v3761 = vpop.f32.mrf.mxu0
      %v3762 = vadd.f32 %v3673, %v3761
      %3763 = vdwg.mxu0
      %3764 = vmatpush.msra.mxu0 0.0
      %3765 = vmatpush.msra.mxu0 0.0
      %3766 = vmatpush.msra.mxu0 0.0
      %3767 = vmatpush.msra.mxu0 0.0
      %3768 = vmatpush.msra.mxu0 0.0
      %3769 = vmatpush.msra.mxu0 0.0
      %3770 = vmatpush.msra.mxu0 0.0
      %3771 = vmatpush.msra.mxu0 0.0
      %v3772 = vand.u32 %v3519, 4294901760
      %v3773 = vsub.f32 %v3519, %v3772
      %3774 = vmatpush.msra.mxu0 %v3773
      %v3775 = vand.u32 %v3517, 4294901760
      %v3776 = vsub.f32 %v3517, %v3775
      %3777 = vmatpush.msra.mxu0 %v3776
      %v3778 = vand.u32 %v3515, 4294901760
      %v3779 = vsub.f32 %v3515, %v3778
      %3780 = vmatpush.msra.mxu0 %v3779
      %v3781 = vand.u32 %v3513, 4294901760
      %v3782 = vsub.f32 %v3513, %v3781
      %3783 = vmatpush.msra.mxu0 %v3782
      %v3784 = vand.u32 %v3511, 4294901760
      %v3785 = vsub.f32 %v3511, %v3784
      %3786 = vmatpush.msra.mxu0 %v3785
      %v3787 = vand.u32 %v3509, 4294901760
      %v3788 = vsub.f32 %v3509, %v3787
      %3789 = vmatpush.msra.mxu0 %v3788
      %v3790 = vand.u32 %v3507, 4294901760
      %v3791 = vsub.f32 %v3507, %v3790
      %3792 = vmatpush.msra.mxu0 %v3791
      %v3793 = vand.u32 %v3505, 4294901760
      %v3794 = vsub.f32 %v3505, %v3793
      %3795 = vmatpush.msra.mxu0 %v3794
      %v3796 = vand.u32 %v3563, 4294901760
      %v3797 = vsub.f32 %v3563, %v3796
      %3798 = vmatmul.f32.gmra.mxu0 %v3797
      %v3799 = vpop.f32.mrf.mxu0
      %v3800 = vadd.f32 %v3734, %v3799
      %v3801 = vand.u32 %v3566, 4294901760
      %v3802 = vsub.f32 %v3566, %v3801
      %3803 = vmatmul.f32.gmra.mxu0 %v3802
      %v3804 = vpop.f32.mrf.mxu0
      %v3805 = vadd.f32 %v3738, %v3804
      %v3806 = vand.u32 %v3569, 4294901760
      %v3807 = vsub.f32 %v3569, %v3806
      %3808 = vmatmul.f32.gmra.mxu0 %v3807
      %v3809 = vpop.f32.mrf.mxu0
      %v3810 = vadd.f32 %v3742, %v3809
      %v3811 = vand.u32 %v3572, 4294901760
      %v3812 = vsub.f32 %v3572, %v3811
      %3813 = vmatmul.f32.gmra.mxu0 %v3812
      %v3814 = vpop.f32.mrf.mxu0
      %v3815 = vadd.f32 %v3746, %v3814
      %v3816 = vand.u32 %v3575, 4294901760
      %v3817 = vsub.f32 %v3575, %v3816
      %3818 = vmatmul.f32.gmra.mxu0 %v3817
      %v3819 = vpop.f32.mrf.mxu0
      %v3820 = vadd.f32 %v3750, %v3819
      %v3821 = vand.u32 %v3578, 4294901760
      %v3822 = vsub.f32 %v3578, %v3821
      %3823 = vmatmul.f32.gmra.mxu0 %v3822
      %v3824 = vpop.f32.mrf.mxu0
      %v3825 = vadd.f32 %v3754, %v3824
      %v3826 = vand.u32 %v3581, 4294901760
      %v3827 = vsub.f32 %v3581, %v3826
      %3828 = vmatmul.f32.gmra.mxu0 %v3827
      %v3829 = vpop.f32.mrf.mxu0
      %v3830 = vadd.f32 %v3758, %v3829
      %v3831 = vand.u32 %v3584, 4294901760
      %v3832 = vsub.f32 %v3584, %v3831
      %3833 = vmatmul.f32.gmra.mxu0 %v3832
      %v3834 = vpop.f32.mrf.mxu0
      %v3835 = vadd.f32 %v3762, %v3834
      %3836 = vdwg.mxu0
      %3837 = vmatpush.msra.mxu0 0.0
      %3838 = vmatpush.msra.mxu0 0.0
      %3839 = vmatpush.msra.mxu0 0.0
      %3840 = vmatpush.msra.mxu0 0.0
      %3841 = vmatpush.msra.mxu0 0.0
      %3842 = vmatpush.msra.mxu0 0.0
      %3843 = vmatpush.msra.mxu0 0.0
      %3844 = vmatpush.msra.mxu0 0.0
      %v3845 = vand.u32 %v3519, 4294901760
      %3846 = vmatpush.msra.mxu0 %v3845
      %v3847 = vand.u32 %v3517, 4294901760
      %3848 = vmatpush.msra.mxu0 %v3847
      %v3849 = vand.u32 %v3515, 4294901760
      %3850 = vmatpush.msra.mxu0 %v3849
      %v3851 = vand.u32 %v3513, 4294901760
      %3852 = vmatpush.msra.mxu0 %v3851
      %v3853 = vand.u32 %v3511, 4294901760
      %3854 = vmatpush.msra.mxu0 %v3853
      %v3855 = vand.u32 %v3509, 4294901760
      %3856 = vmatpush.msra.mxu0 %v3855
      %v3857 = vand.u32 %v3507, 4294901760
      %3858 = vmatpush.msra.mxu0 %v3857
      %v3859 = vand.u32 %v3505, 4294901760
      %3860 = vmatpush.msra.mxu0 %v3859
      %v3861 = vand.u32 %v3563, 4294901760
      %v3862 = vsub.f32 %v3563, %v3861
      %v3863 = vand.u32 %v3862, 4294901760
      %3864 = vmatmul.f32.gmra.mxu0 %v3863
      %v3865 = vpop.f32.mrf.mxu0
      %v3866 = vadd.f32 %v3800, %v3865
      %v3867 = vand.u32 %v3566, 4294901760
      %v3868 = vsub.f32 %v3566, %v3867
      %v3869 = vand.u32 %v3868, 4294901760
      %3870 = vmatmul.f32.gmra.mxu0 %v3869
      %v3871 = vpop.f32.mrf.mxu0
      %v3872 = vadd.f32 %v3805, %v3871
      %v3873 = vand.u32 %v3569, 4294901760
      %v3874 = vsub.f32 %v3569, %v3873
      %v3875 = vand.u32 %v3874, 4294901760
      %3876 = vmatmul.f32.gmra.mxu0 %v3875
      %v3877 = vpop.f32.mrf.mxu0
      %v3878 = vadd.f32 %v3810, %v3877
      %v3879 = vand.u32 %v3572, 4294901760
      %v3880 = vsub.f32 %v3572, %v3879
      %v3881 = vand.u32 %v3880, 4294901760
      %3882 = vmatmul.f32.gmra.mxu0 %v3881
      %v3883 = vpop.f32.mrf.mxu0
      %v3884 = vadd.f32 %v3815, %v3883
      %v3885 = vand.u32 %v3575, 4294901760
      %v3886 = vsub.f32 %v3575, %v3885
      %v3887 = vand.u32 %v3886, 4294901760
      %3888 = vmatmul.f32.gmra.mxu0 %v3887
      %v3889 = vpop.f32.mrf.mxu0
      %v3890 = vadd.f32 %v3820, %v3889
      %v3891 = vand.u32 %v3578, 4294901760
      %v3892 = vsub.f32 %v3578, %v3891
      %v3893 = vand.u32 %v3892, 4294901760
      %3894 = vmatmul.f32.gmra.mxu0 %v3893
      %v3895 = vpop.f32.mrf.mxu0
      %v3896 = vadd.f32 %v3825, %v3895
      %v3897 = vand.u32 %v3581, 4294901760
      %v3898 = vsub.f32 %v3581, %v3897
      %v3899 = vand.u32 %v3898, 4294901760
      %3900 = vmatmul.f32.gmra.mxu0 %v3899
      %v3901 = vpop.f32.mrf.mxu0
      %v3902 = vadd.f32 %v3830, %v3901
      %v3903 = vand.u32 %v3584, 4294901760
      %v3904 = vsub.f32 %v3584, %v3903
      %v3905 = vand.u32 %v3904, 4294901760
      %3906 = vmatmul.f32.gmra.mxu0 %v3905
      %v3907 = vpop.f32.mrf.mxu0
      %v3908 = vadd.f32 %v3835, %v3907
      %3909 = vdwg.mxu0
      %3910 = vmatpush.msra.mxu0 0.0
      %3911 = vmatpush.msra.mxu0 0.0
      %3912 = vmatpush.msra.mxu0 0.0
      %3913 = vmatpush.msra.mxu0 0.0
      %3914 = vmatpush.msra.mxu0 0.0
      %3915 = vmatpush.msra.mxu0 0.0
      %3916 = vmatpush.msra.mxu0 0.0
      %3917 = vmatpush.msra.mxu0 0.0
      %v3918 = vand.u32 %v3519, 4294901760
      %v3919 = vsub.f32 %v3519, %v3918
      %v3920 = vand.u32 %v3919, 4294901760
      %3921 = vmatpush.msra.mxu0 %v3920
      %v3922 = vand.u32 %v3517, 4294901760
      %v3923 = vsub.f32 %v3517, %v3922
      %v3924 = vand.u32 %v3923, 4294901760
      %3925 = vmatpush.msra.mxu0 %v3924
      %v3926 = vand.u32 %v3515, 4294901760
      %v3927 = vsub.f32 %v3515, %v3926
      %v3928 = vand.u32 %v3927, 4294901760
      %3929 = vmatpush.msra.mxu0 %v3928
      %v3930 = vand.u32 %v3513, 4294901760
      %v3931 = vsub.f32 %v3513, %v3930
      %v3932 = vand.u32 %v3931, 4294901760
      %3933 = vmatpush.msra.mxu0 %v3932
      %v3934 = vand.u32 %v3511, 4294901760
      %v3935 = vsub.f32 %v3511, %v3934
      %v3936 = vand.u32 %v3935, 4294901760
      %3937 = vmatpush.msra.mxu0 %v3936
      %v3938 = vand.u32 %v3509, 4294901760
      %v3939 = vsub.f32 %v3509, %v3938
      %v3940 = vand.u32 %v3939, 4294901760
      %3941 = vmatpush.msra.mxu0 %v3940
      %v3942 = vand.u32 %v3507, 4294901760
      %v3943 = vsub.f32 %v3507, %v3942
      %v3944 = vand.u32 %v3943, 4294901760
      %3945 = vmatpush.msra.mxu0 %v3944
      %v3946 = vand.u32 %v3505, 4294901760
      %v3947 = vsub.f32 %v3505, %v3946
      %v3948 = vand.u32 %v3947, 4294901760
      %3949 = vmatpush.msra.mxu0 %v3948
      %v3950 = vand.u32 %v3563, 4294901760
      %3951 = vmatmul.f32.gmra.mxu0 %v3950
      %v3952 = vpop.f32.mrf.mxu0
      %v3953 = vadd.f32 %v3866, %v3952
      %v3954 = vand.u32 %v3566, 4294901760
      %3955 = vmatmul.f32.gmra.mxu0 %v3954
      %v3956 = vpop.f32.mrf.mxu0
      %v3957 = vadd.f32 %v3872, %v3956
      %v3958 = vand.u32 %v3569, 4294901760
      %3959 = vmatmul.f32.gmra.mxu0 %v3958
      %v3960 = vpop.f32.mrf.mxu0
      %v3961 = vadd.f32 %v3878, %v3960
      %v3962 = vand.u32 %v3572, 4294901760
      %3963 = vmatmul.f32.gmra.mxu0 %v3962
      %v3964 = vpop.f32.mrf.mxu0
      %v3965 = vadd.f32 %v3884, %v3964
      %v3966 = vand.u32 %v3575, 4294901760
      %3967 = vmatmul.f32.gmra.mxu0 %v3966
      %v3968 = vpop.f32.mrf.mxu0
      %v3969 = vadd.f32 %v3890, %v3968
      %v3970 = vand.u32 %v3578, 4294901760
      %3971 = vmatmul.f32.gmra.mxu0 %v3970
      %v3972 = vpop.f32.mrf.mxu0
      %v3973 = vadd.f32 %v3896, %v3972
      %v3974 = vand.u32 %v3581, 4294901760
      %3975 = vmatmul.f32.gmra.mxu0 %v3974
      %v3976 = vpop.f32.mrf.mxu0
      %v3977 = vadd.f32 %v3902, %v3976
      %v3978 = vand.u32 %v3584, 4294901760
      %3979 = vmatmul.f32.gmra.mxu0 %v3978
      %v3980 = vpop.f32.mrf.mxu0
      %v3981 = vadd.f32 %v3908, %v3980
      %3982 = vdwg.mxu0
      %3983 = vmatpush.msra.mxu0 0.0
      %3984 = vmatpush.msra.mxu0 0.0
      %3985 = vmatpush.msra.mxu0 0.0
      %3986 = vmatpush.msra.mxu0 0.0
      %3987 = vmatpush.msra.mxu0 0.0
      %3988 = vmatpush.msra.mxu0 0.0
      %3989 = vmatpush.msra.mxu0 0.0
      %3990 = vmatpush.msra.mxu0 0.0
      %v3991 = vand.u32 %v3519, 4294901760
      %3992 = vmatpush.msra.mxu0 %v3991
      %v3993 = vand.u32 %v3517, 4294901760
      %3994 = vmatpush.msra.mxu0 %v3993
      %v3995 = vand.u32 %v3515, 4294901760
      %3996 = vmatpush.msra.mxu0 %v3995
      %v3997 = vand.u32 %v3513, 4294901760
      %3998 = vmatpush.msra.mxu0 %v3997
      %v3999 = vand.u32 %v3511, 4294901760
      %4000 = vmatpush.msra.mxu0 %v3999
      %v4001 = vand.u32 %v3509, 4294901760
      %4002 = vmatpush.msra.mxu0 %v4001
      %v4003 = vand.u32 %v3507, 4294901760
      %4004 = vmatpush.msra.mxu0 %v4003
      %v4005 = vand.u32 %v3505, 4294901760
      %4006 = vmatpush.msra.mxu0 %v4005
      %v4007 = vand.u32 %v3563, 4294901760
      %4008 = vmatmul.f32.gmra.mxu0 %v4007
      %v4009 = vpop.f32.mrf.mxu0
      %v4010 = vadd.f32 %v3953, %v4009
      %v4011 = vand.u32 %v3566, 4294901760
      %4012 = vmatmul.f32.gmra.mxu0 %v4011
      %v4013 = vpop.f32.mrf.mxu0
      %v4014 = vadd.f32 %v3957, %v4013
      %v4015 = vand.u32 %v3569, 4294901760
      %4016 = vmatmul.f32.gmra.mxu0 %v4015
      %v4017 = vpop.f32.mrf.mxu0
      %v4018 = vadd.f32 %v3961, %v4017
      %v4019 = vand.u32 %v3572, 4294901760
      %4020 = vmatmul.f32.gmra.mxu0 %v4019
      %v4021 = vpop.f32.mrf.mxu0
      %v4022 = vadd.f32 %v3965, %v4021
      %v4023 = vand.u32 %v3575, 4294901760
      %4024 = vmatmul.f32.gmra.mxu0 %v4023
      %v4025 = vpop.f32.mrf.mxu0
      %v4026 = vadd.f32 %v3969, %v4025
      %v4027 = vand.u32 %v3578, 4294901760
      %4028 = vmatmul.f32.gmra.mxu0 %v4027
      %v4029 = vpop.f32.mrf.mxu0
      %v4030 = vadd.f32 %v3973, %v4029
      %v4031 = vand.u32 %v3581, 4294901760
      %4032 = vmatmul.f32.gmra.mxu0 %v4031
      %v4033 = vpop.f32.mrf.mxu0
      %v4034 = vadd.f32 %v3977, %v4033
      %v4035 = vand.u32 %v3584, 4294901760
      %4036 = vmatmul.f32.gmra.mxu0 %v4035
      %v4037 = vpop.f32.mrf.mxu0
      %v4038 = vadd.f32 %v3981, %v4037
      %4039 = vdwg.mxu0
      %4040 = vmatpush.msra.mxu0 0.0
      %4041 = vmatpush.msra.mxu0 0.0
      %4042 = vmatpush.msra.mxu0 0.0
      %4043 = vmatpush.msra.mxu0 0.0
      %4044 = vmatpush.msra.mxu0 0.0
      %4045 = vmatpush.msra.mxu0 0.0
      %4046 = vmatpush.msra.mxu0 0.0
      %4047 = vmatpush.msra.mxu0 0.0
      %v4048 = vand.u32 %v3520, 4294901760
      %4049 = vmatpush.msra.mxu0 %v4048
      %v4050 = vand.u32 %v3518, 4294901760
      %4051 = vmatpush.msra.mxu0 %v4050
      %v4052 = vand.u32 %v3516, 4294901760
      %4053 = vmatpush.msra.mxu0 %v4052
      %v4054 = vand.u32 %v3514, 4294901760
      %4055 = vmatpush.msra.mxu0 %v4054
      %v4056 = vand.u32 %v3512, 4294901760
      %4057 = vmatpush.msra.mxu0 %v4056
      %v4058 = vand.u32 %v3510, 4294901760
      %4059 = vmatpush.msra.mxu0 %v4058
      %v4060 = vand.u32 %v3508, 4294901760
      %4061 = vmatpush.msra.mxu0 %v4060
      %v4062 = vand.u32 %v3506, 4294901760
      %4063 = vmatpush.msra.mxu0 %v4062
      %v4064 = vand.u32 %v3563, 4294901760
      %v4065 = vsub.f32 %v3563, %v4064
      %v4066 = vand.u32 %v4065, 4294901760
      %v4067 = vsub.f32 %v4065, %v4066
      %v4068 = vand.u32 %v4067, 4294901760
      %4069 = vmatmul.f32.gmra.mxu0 %v4068
      %v4070 = vpop.f32.mrf.mxu0
      %v4071 = vadd.f32 %v3532, %v4070
      %v4072 = vand.u32 %v3566, 4294901760
      %v4073 = vsub.f32 %v3566, %v4072
      %v4074 = vand.u32 %v4073, 4294901760
      %v4075 = vsub.f32 %v4073, %v4074
      %v4076 = vand.u32 %v4075, 4294901760
      %4077 = vmatmul.f32.gmra.mxu0 %v4076
      %v4078 = vpop.f32.mrf.mxu0
      %v4079 = vadd.f32 %v3536, %v4078
      %v4080 = vand.u32 %v3569, 4294901760
      %v4081 = vsub.f32 %v3569, %v4080
      %v4082 = vand.u32 %v4081, 4294901760
      %v4083 = vsub.f32 %v4081, %v4082
      %v4084 = vand.u32 %v4083, 4294901760
      %4085 = vmatmul.f32.gmra.mxu0 %v4084
      %v4086 = vpop.f32.mrf.mxu0
      %v4087 = vadd.f32 %v3540, %v4086
      %v4088 = vand.u32 %v3572, 4294901760
      %v4089 = vsub.f32 %v3572, %v4088
      %v4090 = vand.u32 %v4089, 4294901760
      %v4091 = vsub.f32 %v4089, %v4090
      %v4092 = vand.u32 %v4091, 4294901760
      %4093 = vmatmul.f32.gmra.mxu0 %v4092
      %v4094 = vpop.f32.mrf.mxu0
      %v4095 = vadd.f32 %v3544, %v4094
      %v4096 = vand.u32 %v3575, 4294901760
      %v4097 = vsub.f32 %v3575, %v4096
      %v4098 = vand.u32 %v4097, 4294901760
      %v4099 = vsub.f32 %v4097, %v4098
      %v4100 = vand.u32 %v4099, 4294901760
      %4101 = vmatmul.f32.gmra.mxu0 %v4100
      %v4102 = vpop.f32.mrf.mxu0
      %v4103 = vadd.f32 %v3548, %v4102
      %v4104 = vand.u32 %v3578, 4294901760
      %v4105 = vsub.f32 %v3578, %v4104
      %v4106 = vand.u32 %v4105, 4294901760
      %v4107 = vsub.f32 %v4105, %v4106
      %v4108 = vand.u32 %v4107, 4294901760
      %4109 = vmatmul.f32.gmra.mxu0 %v4108
      %v4110 = vpop.f32.mrf.mxu0
      %v4111 = vadd.f32 %v3552, %v4110
      %v4112 = vand.u32 %v3581, 4294901760
      %v4113 = vsub.f32 %v3581, %v4112
      %v4114 = vand.u32 %v4113, 4294901760
      %v4115 = vsub.f32 %v4113, %v4114
      %v4116 = vand.u32 %v4115, 4294901760
      %4117 = vmatmul.f32.gmra.mxu0 %v4116
      %v4118 = vpop.f32.mrf.mxu0
      %v4119 = vadd.f32 %v3556, %v4118
      %v4120 = vand.u32 %v3584, 4294901760
      %v4121 = vsub.f32 %v3584, %v4120
      %v4122 = vand.u32 %v4121, 4294901760
      %v4123 = vsub.f32 %v4121, %v4122
      %v4124 = vand.u32 %v4123, 4294901760
      %4125 = vmatmul.f32.gmra.mxu0 %v4124
      %v4126 = vpop.f32.mrf.mxu0
      %v4127 = vadd.f32 %v3560, %v4126
      %4128 = vdwg.mxu0
      %4129 = vmatpush.msra.mxu0 0.0
      %4130 = vmatpush.msra.mxu0 0.0
      %4131 = vmatpush.msra.mxu0 0.0
      %4132 = vmatpush.msra.mxu0 0.0
      %4133 = vmatpush.msra.mxu0 0.0
      %4134 = vmatpush.msra.mxu0 0.0
      %4135 = vmatpush.msra.mxu0 0.0
      %4136 = vmatpush.msra.mxu0 0.0
      %v4137 = vand.u32 %v3520, 4294901760
      %v4138 = vsub.f32 %v3520, %v4137
      %v4139 = vand.u32 %v4138, 4294901760
      %v4140 = vsub.f32 %v4138, %v4139
      %v4141 = vand.u32 %v4140, 4294901760
      %4142 = vmatpush.msra.mxu0 %v4141
      %v4143 = vand.u32 %v3518, 4294901760
      %v4144 = vsub.f32 %v3518, %v4143
      %v4145 = vand.u32 %v4144, 4294901760
      %v4146 = vsub.f32 %v4144, %v4145
      %v4147 = vand.u32 %v4146, 4294901760
      %4148 = vmatpush.msra.mxu0 %v4147
      %v4149 = vand.u32 %v3516, 4294901760
      %v4150 = vsub.f32 %v3516, %v4149
      %v4151 = vand.u32 %v4150, 4294901760
      %v4152 = vsub.f32 %v4150, %v4151
      %v4153 = vand.u32 %v4152, 4294901760
      %4154 = vmatpush.msra.mxu0 %v4153
      %v4155 = vand.u32 %v3514, 4294901760
      %v4156 = vsub.f32 %v3514, %v4155
      %v4157 = vand.u32 %v4156, 4294901760
      %v4158 = vsub.f32 %v4156, %v4157
      %v4159 = vand.u32 %v4158, 4294901760
      %4160 = vmatpush.msra.mxu0 %v4159
      %v4161 = vand.u32 %v3512, 4294901760
      %v4162 = vsub.f32 %v3512, %v4161
      %v4163 = vand.u32 %v4162, 4294901760
      %v4164 = vsub.f32 %v4162, %v4163
      %v4165 = vand.u32 %v4164, 4294901760
      %4166 = vmatpush.msra.mxu0 %v4165
      %v4167 = vand.u32 %v3510, 4294901760
      %v4168 = vsub.f32 %v3510, %v4167
      %v4169 = vand.u32 %v4168, 4294901760
      %v4170 = vsub.f32 %v4168, %v4169
      %v4171 = vand.u32 %v4170, 4294901760
      %4172 = vmatpush.msra.mxu0 %v4171
      %v4173 = vand.u32 %v3508, 4294901760
      %v4174 = vsub.f32 %v3508, %v4173
      %v4175 = vand.u32 %v4174, 4294901760
      %v4176 = vsub.f32 %v4174, %v4175
      %v4177 = vand.u32 %v4176, 4294901760
      %4178 = vmatpush.msra.mxu0 %v4177
      %v4179 = vand.u32 %v3506, 4294901760
      %v4180 = vsub.f32 %v3506, %v4179
      %v4181 = vand.u32 %v4180, 4294901760
      %v4182 = vsub.f32 %v4180, %v4181
      %v4183 = vand.u32 %v4182, 4294901760
      %4184 = vmatpush.msra.mxu0 %v4183
      %v4185 = vand.u32 %v3563, 4294901760
      %4186 = vmatmul.f32.gmra.mxu0 %v4185
      %v4187 = vpop.f32.mrf.mxu0
      %v4188 = vadd.f32 %v4071, %v4187
      %v4189 = vand.u32 %v3566, 4294901760
      %4190 = vmatmul.f32.gmra.mxu0 %v4189
      %v4191 = vpop.f32.mrf.mxu0
      %v4192 = vadd.f32 %v4079, %v4191
      %v4193 = vand.u32 %v3569, 4294901760
      %4194 = vmatmul.f32.gmra.mxu0 %v4193
      %v4195 = vpop.f32.mrf.mxu0
      %v4196 = vadd.f32 %v4087, %v4195
      %v4197 = vand.u32 %v3572, 4294901760
      %4198 = vmatmul.f32.gmra.mxu0 %v4197
      %v4199 = vpop.f32.mrf.mxu0
      %v4200 = vadd.f32 %v4095, %v4199
      %v4201 = vand.u32 %v3575, 4294901760
      %4202 = vmatmul.f32.gmra.mxu0 %v4201
      %v4203 = vpop.f32.mrf.mxu0
      %v4204 = vadd.f32 %v4103, %v4203
      %v4205 = vand.u32 %v3578, 4294901760
      %4206 = vmatmul.f32.gmra.mxu0 %v4205
      %v4207 = vpop.f32.mrf.mxu0
      %v4208 = vadd.f32 %v4111, %v4207
      %v4209 = vand.u32 %v3581, 4294901760
      %4210 = vmatmul.f32.gmra.mxu0 %v4209
      %v4211 = vpop.f32.mrf.mxu0
      %v4212 = vadd.f32 %v4119, %v4211
      %v4213 = vand.u32 %v3584, 4294901760
      %4214 = vmatmul.f32.gmra.mxu0 %v4213
      %v4215 = vpop.f32.mrf.mxu0
      %v4216 = vadd.f32 %v4127, %v4215
      %4217 = vdwg.mxu0
      %4218 = vmatpush.msra.mxu0 0.0
      %4219 = vmatpush.msra.mxu0 0.0
      %4220 = vmatpush.msra.mxu0 0.0
      %4221 = vmatpush.msra.mxu0 0.0
      %4222 = vmatpush.msra.mxu0 0.0
      %4223 = vmatpush.msra.mxu0 0.0
      %4224 = vmatpush.msra.mxu0 0.0
      %4225 = vmatpush.msra.mxu0 0.0
      %v4226 = vand.u32 %v3520, 4294901760
      %v4227 = vsub.f32 %v3520, %v4226
      %4228 = vmatpush.msra.mxu0 %v4227
      %v4229 = vand.u32 %v3518, 4294901760
      %v4230 = vsub.f32 %v3518, %v4229
      %4231 = vmatpush.msra.mxu0 %v4230
      %v4232 = vand.u32 %v3516, 4294901760
      %v4233 = vsub.f32 %v3516, %v4232
      %4234 = vmatpush.msra.mxu0 %v4233
      %v4235 = vand.u32 %v3514, 4294901760
      %v4236 = vsub.f32 %v3514, %v4235
      %4237 = vmatpush.msra.mxu0 %v4236
      %v4238 = vand.u32 %v3512, 4294901760
      %v4239 = vsub.f32 %v3512, %v4238
      %4240 = vmatpush.msra.mxu0 %v4239
      %v4241 = vand.u32 %v3510, 4294901760
      %v4242 = vsub.f32 %v3510, %v4241
      %4243 = vmatpush.msra.mxu0 %v4242
      %v4244 = vand.u32 %v3508, 4294901760
      %v4245 = vsub.f32 %v3508, %v4244
      %4246 = vmatpush.msra.mxu0 %v4245
      %v4247 = vand.u32 %v3506, 4294901760
      %v4248 = vsub.f32 %v3506, %v4247
      %4249 = vmatpush.msra.mxu0 %v4248
      %v4250 = vand.u32 %v3563, 4294901760
      %v4251 = vsub.f32 %v3563, %v4250
      %4252 = vmatmul.f32.gmra.mxu0 %v4251
      %v4253 = vpop.f32.mrf.mxu0
      %v4254 = vadd.f32 %v4188, %v4253
      %v4255 = vand.u32 %v3566, 4294901760
      %v4256 = vsub.f32 %v3566, %v4255
      %4257 = vmatmul.f32.gmra.mxu0 %v4256
      %v4258 = vpop.f32.mrf.mxu0
      %v4259 = vadd.f32 %v4192, %v4258
      %v4260 = vand.u32 %v3569, 4294901760
      %v4261 = vsub.f32 %v3569, %v4260
      %4262 = vmatmul.f32.gmra.mxu0 %v4261
      %v4263 = vpop.f32.mrf.mxu0
      %v4264 = vadd.f32 %v4196, %v4263
      %v4265 = vand.u32 %v3572, 4294901760
      %v4266 = vsub.f32 %v3572, %v4265
      %4267 = vmatmul.f32.gmra.mxu0 %v4266
      %v4268 = vpop.f32.mrf.mxu0
      %v4269 = vadd.f32 %v4200, %v4268
      %v4270 = vand.u32 %v3575, 4294901760
      %v4271 = vsub.f32 %v3575, %v4270
      %4272 = vmatmul.f32.gmra.mxu0 %v4271
      %v4273 = vpop.f32.mrf.mxu0
      %v4274 = vadd.f32 %v4204, %v4273
      %v4275 = vand.u32 %v3578, 4294901760
      %v4276 = vsub.f32 %v3578, %v4275
      %4277 = vmatmul.f32.gmra.mxu0 %v4276
      %v4278 = vpop.f32.mrf.mxu0
      %v4279 = vadd.f32 %v4208, %v4278
      %v4280 = vand.u32 %v3581, 4294901760
      %v4281 = vsub.f32 %v3581, %v4280
      %4282 = vmatmul.f32.gmra.mxu0 %v4281
      %v4283 = vpop.f32.mrf.mxu0
      %v4284 = vadd.f32 %v4212, %v4283
      %v4285 = vand.u32 %v3584, 4294901760
      %v4286 = vsub.f32 %v3584, %v4285
      %4287 = vmatmul.f32.gmra.mxu0 %v4286
      %v4288 = vpop.f32.mrf.mxu0
      %v4289 = vadd.f32 %v4216, %v4288
      %4290 = vdwg.mxu0
      %4291 = vmatpush.msra.mxu0 0.0
      %4292 = vmatpush.msra.mxu0 0.0
      %4293 = vmatpush.msra.mxu0 0.0
      %4294 = vmatpush.msra.mxu0 0.0
      %4295 = vmatpush.msra.mxu0 0.0
      %4296 = vmatpush.msra.mxu0 0.0
      %4297 = vmatpush.msra.mxu0 0.0
      %4298 = vmatpush.msra.mxu0 0.0
      %v4299 = vand.u32 %v3520, 4294901760
      %4300 = vmatpush.msra.mxu0 %v4299
      %v4301 = vand.u32 %v3518, 4294901760
      %4302 = vmatpush.msra.mxu0 %v4301
      %v4303 = vand.u32 %v3516, 4294901760
      %4304 = vmatpush.msra.mxu0 %v4303
      %v4305 = vand.u32 %v3514, 4294901760
      %4306 = vmatpush.msra.mxu0 %v4305
      %v4307 = vand.u32 %v3512, 4294901760
      %4308 = vmatpush.msra.mxu0 %v4307
      %v4309 = vand.u32 %v3510, 4294901760
      %4310 = vmatpush.msra.mxu0 %v4309
      %v4311 = vand.u32 %v3508, 4294901760
      %4312 = vmatpush.msra.mxu0 %v4311
      %v4313 = vand.u32 %v3506, 4294901760
      %4314 = vmatpush.msra.mxu0 %v4313
      %v4315 = vand.u32 %v3563, 4294901760
      %v4316 = vsub.f32 %v3563, %v4315
      %v4317 = vand.u32 %v4316, 4294901760
      %4318 = vmatmul.f32.gmra.mxu0 %v4317
      %v4319 = vpop.f32.mrf.mxu0
      %v4320 = vadd.f32 %v4254, %v4319
      %v4321 = vand.u32 %v3566, 4294901760
      %v4322 = vsub.f32 %v3566, %v4321
      %v4323 = vand.u32 %v4322, 4294901760
      %4324 = vmatmul.f32.gmra.mxu0 %v4323
      %v4325 = vpop.f32.mrf.mxu0
      %v4326 = vadd.f32 %v4259, %v4325
      %v4327 = vand.u32 %v3569, 4294901760
      %v4328 = vsub.f32 %v3569, %v4327
      %v4329 = vand.u32 %v4328, 4294901760
      %4330 = vmatmul.f32.gmra.mxu0 %v4329
      %v4331 = vpop.f32.mrf.mxu0
      %v4332 = vadd.f32 %v4264, %v4331
      %v4333 = vand.u32 %v3572, 4294901760
      %v4334 = vsub.f32 %v3572, %v4333
      %v4335 = vand.u32 %v4334, 4294901760
      %4336 = vmatmul.f32.gmra.mxu0 %v4335
      %v4337 = vpop.f32.mrf.mxu0
      %v4338 = vadd.f32 %v4269, %v4337
      %v4339 = vand.u32 %v3575, 4294901760
      %v4340 = vsub.f32 %v3575, %v4339
      %v4341 = vand.u32 %v4340, 4294901760
      %4342 = vmatmul.f32.gmra.mxu0 %v4341
      %v4343 = vpop.f32.mrf.mxu0
      %v4344 = vadd.f32 %v4274, %v4343
      %v4345 = vand.u32 %v3578, 4294901760
      %v4346 = vsub.f32 %v3578, %v4345
      %v4347 = vand.u32 %v4346, 4294901760
      %4348 = vmatmul.f32.gmra.mxu0 %v4347
      %v4349 = vpop.f32.mrf.mxu0
      %v4350 = vadd.f32 %v4279, %v4349
      %v4351 = vand.u32 %v3581, 4294901760
      %v4352 = vsub.f32 %v3581, %v4351
      %v4353 = vand.u32 %v4352, 4294901760
      %4354 = vmatmul.f32.gmra.mxu0 %v4353
      %v4355 = vpop.f32.mrf.mxu0
      %v4356 = vadd.f32 %v4284, %v4355
      %v4357 = vand.u32 %v3584, 4294901760
      %v4358 = vsub.f32 %v3584, %v4357
      %v4359 = vand.u32 %v4358, 4294901760
      %4360 = vmatmul.f32.gmra.mxu0 %v4359
      %v4361 = vpop.f32.mrf.mxu0
      %v4362 = vadd.f32 %v4289, %v4361
      %4363 = vdwg.mxu0
      %4364 = vmatpush.msra.mxu0 0.0
      %4365 = vmatpush.msra.mxu0 0.0
      %4366 = vmatpush.msra.mxu0 0.0
      %4367 = vmatpush.msra.mxu0 0.0
      %4368 = vmatpush.msra.mxu0 0.0
      %4369 = vmatpush.msra.mxu0 0.0
      %4370 = vmatpush.msra.mxu0 0.0
      %4371 = vmatpush.msra.mxu0 0.0
      %v4372 = vand.u32 %v3520, 4294901760
      %v4373 = vsub.f32 %v3520, %v4372
      %v4374 = vand.u32 %v4373, 4294901760
      %4375 = vmatpush.msra.mxu0 %v4374
      %v4376 = vand.u32 %v3518, 4294901760
      %v4377 = vsub.f32 %v3518, %v4376
      %v4378 = vand.u32 %v4377, 4294901760
      %4379 = vmatpush.msra.mxu0 %v4378
      %v4380 = vand.u32 %v3516, 4294901760
      %v4381 = vsub.f32 %v3516, %v4380
      %v4382 = vand.u32 %v4381, 4294901760
      %4383 = vmatpush.msra.mxu0 %v4382
      %v4384 = vand.u32 %v3514, 4294901760
      %v4385 = vsub.f32 %v3514, %v4384
      %v4386 = vand.u32 %v4385, 4294901760
      %4387 = vmatpush.msra.mxu0 %v4386
      %v4388 = vand.u32 %v3512, 4294901760
      %v4389 = vsub.f32 %v3512, %v4388
      %v4390 = vand.u32 %v4389, 4294901760
      %4391 = vmatpush.msra.mxu0 %v4390
      %v4392 = vand.u32 %v3510, 4294901760
      %v4393 = vsub.f32 %v3510, %v4392
      %v4394 = vand.u32 %v4393, 4294901760
      %4395 = vmatpush.msra.mxu0 %v4394
      %v4396 = vand.u32 %v3508, 4294901760
      %v4397 = vsub.f32 %v3508, %v4396
      %v4398 = vand.u32 %v4397, 4294901760
      %4399 = vmatpush.msra.mxu0 %v4398
      %v4400 = vand.u32 %v3506, 4294901760
      %v4401 = vsub.f32 %v3506, %v4400
      %v4402 = vand.u32 %v4401, 4294901760
      %4403 = vmatpush.msra.mxu0 %v4402
      %v4404 = vand.u32 %v3563, 4294901760
      %4405 = vmatmul.f32.gmra.mxu0 %v4404
      %v4406 = vpop.f32.mrf.mxu0
      %v4407 = vadd.f32 %v4320, %v4406
      %v4408 = vand.u32 %v3566, 4294901760
      %4409 = vmatmul.f32.gmra.mxu0 %v4408
      %v4410 = vpop.f32.mrf.mxu0
      %v4411 = vadd.f32 %v4326, %v4410
      %v4412 = vand.u32 %v3569, 4294901760
      %4413 = vmatmul.f32.gmra.mxu0 %v4412
      %v4414 = vpop.f32.mrf.mxu0
      %v4415 = vadd.f32 %v4332, %v4414
      %v4416 = vand.u32 %v3572, 4294901760
      %4417 = vmatmul.f32.gmra.mxu0 %v4416
      %v4418 = vpop.f32.mrf.mxu0
      %v4419 = vadd.f32 %v4338, %v4418
      %v4420 = vand.u32 %v3575, 4294901760
      %4421 = vmatmul.f32.gmra.mxu0 %v4420
      %v4422 = vpop.f32.mrf.mxu0
      %v4423 = vadd.f32 %v4344, %v4422
      %v4424 = vand.u32 %v3578, 4294901760
      %4425 = vmatmul.f32.gmra.mxu0 %v4424
      %v4426 = vpop.f32.mrf.mxu0
      %v4427 = vadd.f32 %v4350, %v4426
      %v4428 = vand.u32 %v3581, 4294901760
      %4429 = vmatmul.f32.gmra.mxu0 %v4428
      %v4430 = vpop.f32.mrf.mxu0
      %v4431 = vadd.f32 %v4356, %v4430
      %v4432 = vand.u32 %v3584, 4294901760
      %4433 = vmatmul.f32.gmra.mxu0 %v4432
      %v4434 = vpop.f32.mrf.mxu0
      %v4435 = vadd.f32 %v4362, %v4434
      %4436 = vdwg.mxu0
      %4437 = vmatpush.msra.mxu0 0.0
      %4438 = vmatpush.msra.mxu0 0.0
      %4439 = vmatpush.msra.mxu0 0.0
      %4440 = vmatpush.msra.mxu0 0.0
      %4441 = vmatpush.msra.mxu0 0.0
      %4442 = vmatpush.msra.mxu0 0.0
      %4443 = vmatpush.msra.mxu0 0.0
      %4444 = vmatpush.msra.mxu0 0.0
      %v4445 = vand.u32 %v3520, 4294901760
      %4446 = vmatpush.msra.mxu0 %v4445
      %v4447 = vand.u32 %v3518, 4294901760
      %4448 = vmatpush.msra.mxu0 %v4447
      %v4449 = vand.u32 %v3516, 4294901760
      %4450 = vmatpush.msra.mxu0 %v4449
      %v4451 = vand.u32 %v3514, 4294901760
      %4452 = vmatpush.msra.mxu0 %v4451
      %v4453 = vand.u32 %v3512, 4294901760
      %4454 = vmatpush.msra.mxu0 %v4453
      %v4455 = vand.u32 %v3510, 4294901760
      %4456 = vmatpush.msra.mxu0 %v4455
      %v4457 = vand.u32 %v3508, 4294901760
      %4458 = vmatpush.msra.mxu0 %v4457
      %v4459 = vand.u32 %v3506, 4294901760
      %4460 = vmatpush.msra.mxu0 %v4459
      %v4461 = vand.u32 %v3563, 4294901760
      %4462 = vmatmul.f32.gmra.mxu0 %v4461
      %v4463 = vpop.f32.mrf.mxu0
      %v4464 = vadd.f32 %v4407, %v4463
      %v4465 = vand.u32 %v3566, 4294901760
      %4466 = vmatmul.f32.gmra.mxu0 %v4465
      %v4467 = vpop.f32.mrf.mxu0
      %v4468 = vadd.f32 %v4411, %v4467
      %v4469 = vand.u32 %v3569, 4294901760
      %4470 = vmatmul.f32.gmra.mxu0 %v4469
      %v4471 = vpop.f32.mrf.mxu0
      %v4472 = vadd.f32 %v4415, %v4471
      %v4473 = vand.u32 %v3572, 4294901760
      %4474 = vmatmul.f32.gmra.mxu0 %v4473
      %v4475 = vpop.f32.mrf.mxu0
      %v4476 = vadd.f32 %v4419, %v4475
      %v4477 = vand.u32 %v3575, 4294901760
      %4478 = vmatmul.f32.gmra.mxu0 %v4477
      %v4479 = vpop.f32.mrf.mxu0
      %v4480 = vadd.f32 %v4423, %v4479
      %v4481 = vand.u32 %v3578, 4294901760
      %4482 = vmatmul.f32.gmra.mxu0 %v4481
      %v4483 = vpop.f32.mrf.mxu0
      %v4484 = vadd.f32 %v4427, %v4483
      %v4485 = vand.u32 %v3581, 4294901760
      %4486 = vmatmul.f32.gmra.mxu0 %v4485
      %v4487 = vpop.f32.mrf.mxu0
      %v4488 = vadd.f32 %v4431, %v4487
      %v4489 = vand.u32 %v3584, 4294901760
      %4490 = vmatmul.f32.gmra.mxu0 %v4489
      %v4491 = vpop.f32.mrf.mxu0
      %v4492 = vadd.f32 %v4435, %v4491
      %4493 = vdwg.mxu0
      %v4494 = vmax.f32 %v4010, 0.0
      %v4495 = vmax.f32 %v4464, 0.0
      %v4496 = vmax.f32 %v4014, 0.0
      %v4497 = vmax.f32 %v4468, 0.0
      %v4498 = vmax.f32 %v4018, 0.0
      %v4499 = vmax.f32 %v4472, 0.0
      %v4500 = vmax.f32 %v4022, 0.0
      %v4501 = vmax.f32 %v4476, 0.0
      %v4502 = vmax.f32 %v4026, 0.0
      %v4503 = vmax.f32 %v4480, 0.0
      %v4504 = vmax.f32 %v4030, 0.0
      %v4505 = vmax.f32 %v4484, 0.0
      %v4506 = vmax.f32 %v4034, 0.0
      %v4507 = vmax.f32 %v4488, 0.0
      %v4508 = vmax.f32 %v4038, 0.0
      %v4509 = vmax.f32 %v4492, 0.0
      %s4510 = scalar_lea.vmem %s1, 256
      %v4511 = vld [vmem:[%s4510] sm:$0xff]
      %v4512 = vld [vmem:[%s4510 + $0x8] sm:$0xff]
      %v4513 = vld [vmem:[%s4510 + $0x10] sm:$0xff]
      %v4514 = vld [vmem:[%s4510 + $0x18] sm:$0xff]
      %v4515 = vld [vmem:[%s4510 + $0x20] sm:$0xff]
      %v4516 = vld [vmem:[%s4510 + $0x28] sm:$0xff]
      %v4517 = vld [vmem:[%s4510 + $0x30] sm:$0xff]
      %v4518 = vld [vmem:[%s4510 + $0x38] sm:$0xff]
      %4519 = vset.pattern.permute.xlu0 4
      %4520 = vperm.xlu0 %4519, %v241
      %v4521 = vpop.permute.xlu0 %4520
      %4523 = vset.pattern.permute.xlu0 4
      %4524 = vperm.xlu0 %4523, %v242
      %v4525 = vpop.permute.xlu0 %4524
      %4527 = vset.pattern.permute.xlu0 4
      %4528 = vperm.xlu0 %4527, %v243
      %v4529 = vpop.permute.xlu0 %4528
      %4531 = vset.pattern.permute.xlu0 4
      %4532 = vperm.xlu0 %4531, %v244
      %v4533 = vpop.permute.xlu0 %4532
      %4535 = vset.pattern.permute.xlu0 4
      %4536 = vperm.xlu0 %4535, %v245
      %v4537 = vpop.permute.xlu0 %4536
      %4539 = vset.pattern.permute.xlu0 4
      %4540 = vperm.xlu0 %4539, %v246
      %v4541 = vpop.permute.xlu0 %4540
      %4543 = vset.pattern.permute.xlu0 4
      %4544 = vperm.xlu0 %4543, %v247
      %v4545 = vpop.permute.xlu0 %4544
      %4547 = vset.pattern.permute.xlu0 4
      %4548 = vperm.xlu0 %4547, %v248
      %v4549 = vpop.permute.xlu0 %4548
      %v4552 = vsel %vm1583, %v4511, 0
      %v4555 = vsel %vm1583, %v4512, 0
      %v4558 = vsel %vm1583, %v4513, 0
      %v4561 = vsel %vm1583, %v4514, 0
      %v4564 = vsel %vm1583, %v4515, 0
      %v4567 = vsel %vm1583, %v4516, 0
      %v4570 = vsel %vm1583, %v4517, 0
      %v4573 = vsel %vm1583, %v4518, 0
      %4575 = vmatpush.msra.mxu0 0.0
      %4576 = vmatpush.msra.mxu0 0.0
      %4577 = vmatpush.msra.mxu0 0.0
      %4578 = vmatpush.msra.mxu0 0.0
      %4579 = vmatpush.msra.mxu0 0.0
      %4580 = vmatpush.msra.mxu0 0.0
      %4581 = vmatpush.msra.mxu0 0.0
      %4582 = vmatpush.msra.mxu0 0.0
      %v4583 = vand.u32 %v4508, 4294901760
      %4584 = vmatpush.msra.mxu0 %v4583
      %v4585 = vand.u32 %v4506, 4294901760
      %4586 = vmatpush.msra.mxu0 %v4585
      %v4587 = vand.u32 %v4504, 4294901760
      %4588 = vmatpush.msra.mxu0 %v4587
      %v4589 = vand.u32 %v4502, 4294901760
      %4590 = vmatpush.msra.mxu0 %v4589
      %v4591 = vand.u32 %v4500, 4294901760
      %4592 = vmatpush.msra.mxu0 %v4591
      %v4593 = vand.u32 %v4498, 4294901760
      %4594 = vmatpush.msra.mxu0 %v4593
      %v4595 = vand.u32 %v4496, 4294901760
      %4596 = vmatpush.msra.mxu0 %v4595
      %v4597 = vand.u32 %v4494, 4294901760
      %4598 = vmatpush.msra.mxu0 %v4597
      %v4599 = vand.u32 %v4552, 4294901760
      %v4600 = vsub.f32 %v4552, %v4599
      %v4601 = vand.u32 %v4600, 4294901760
      %v4602 = vsub.f32 %v4600, %v4601
      %v4603 = vand.u32 %v4602, 4294901760
      %4604 = vmatmul.f32.gmra.mxu0 %v4603
      %v4605 = vpop.f32.mrf.mxu0
      %v4606 = vadd.f32 %v4521, %v4605
      %v4607 = vand.u32 %v4555, 4294901760
      %v4608 = vsub.f32 %v4555, %v4607
      %v4609 = vand.u32 %v4608, 4294901760
      %v4610 = vsub.f32 %v4608, %v4609
      %v4611 = vand.u32 %v4610, 4294901760
      %4612 = vmatmul.f32.gmra.mxu0 %v4611
      %v4613 = vpop.f32.mrf.mxu0
      %v4614 = vadd.f32 %v4525, %v4613
      %v4615 = vand.u32 %v4558, 4294901760
      %v4616 = vsub.f32 %v4558, %v4615
      %v4617 = vand.u32 %v4616, 4294901760
      %v4618 = vsub.f32 %v4616, %v4617
      %v4619 = vand.u32 %v4618, 4294901760
      %4620 = vmatmul.f32.gmra.mxu0 %v4619
      %v4621 = vpop.f32.mrf.mxu0
      %v4622 = vadd.f32 %v4529, %v4621
      %v4623 = vand.u32 %v4561, 4294901760
      %v4624 = vsub.f32 %v4561, %v4623
      %v4625 = vand.u32 %v4624, 4294901760
      %v4626 = vsub.f32 %v4624, %v4625
      %v4627 = vand.u32 %v4626, 4294901760
      %4628 = vmatmul.f32.gmra.mxu0 %v4627
      %v4629 = vpop.f32.mrf.mxu0
      %v4630 = vadd.f32 %v4533, %v4629
      %v4631 = vand.u32 %v4564, 4294901760
      %v4632 = vsub.f32 %v4564, %v4631
      %v4633 = vand.u32 %v4632, 4294901760
      %v4634 = vsub.f32 %v4632, %v4633
      %v4635 = vand.u32 %v4634, 4294901760
      %4636 = vmatmul.f32.gmra.mxu0 %v4635
      %v4637 = vpop.f32.mrf.mxu0
      %v4638 = vadd.f32 %v4537, %v4637
      %v4639 = vand.u32 %v4567, 4294901760
      %v4640 = vsub.f32 %v4567, %v4639
      %v4641 = vand.u32 %v4640, 4294901760
      %v4642 = vsub.f32 %v4640, %v4641
      %v4643 = vand.u32 %v4642, 4294901760
      %4644 = vmatmul.f32.gmra.mxu0 %v4643
      %v4645 = vpop.f32.mrf.mxu0
      %v4646 = vadd.f32 %v4541, %v4645
      %v4647 = vand.u32 %v4570, 4294901760
      %v4648 = vsub.f32 %v4570, %v4647
      %v4649 = vand.u32 %v4648, 4294901760
      %v4650 = vsub.f32 %v4648, %v4649
      %v4651 = vand.u32 %v4650, 4294901760
      %4652 = vmatmul.f32.gmra.mxu0 %v4651
      %v4653 = vpop.f32.mrf.mxu0
      %v4654 = vadd.f32 %v4545, %v4653
      %v4655 = vand.u32 %v4573, 4294901760
      %v4656 = vsub.f32 %v4573, %v4655
      %v4657 = vand.u32 %v4656, 4294901760
      %v4658 = vsub.f32 %v4656, %v4657
      %v4659 = vand.u32 %v4658, 4294901760
      %4660 = vmatmul.f32.gmra.mxu0 %v4659
      %v4661 = vpop.f32.mrf.mxu0
      %v4662 = vadd.f32 %v4549, %v4661
      %4663 = vdwg.mxu0
      %4664 = vmatpush.msra.mxu0 0.0
      %4665 = vmatpush.msra.mxu0 0.0
      %4666 = vmatpush.msra.mxu0 0.0
      %4667 = vmatpush.msra.mxu0 0.0
      %4668 = vmatpush.msra.mxu0 0.0
      %4669 = vmatpush.msra.mxu0 0.0
      %4670 = vmatpush.msra.mxu0 0.0
      %4671 = vmatpush.msra.mxu0 0.0
      %v4672 = vand.u32 %v4508, 4294901760
      %v4673 = vsub.f32 %v4508, %v4672
      %v4674 = vand.u32 %v4673, 4294901760
      %v4675 = vsub.f32 %v4673, %v4674
      %v4676 = vand.u32 %v4675, 4294901760
      %4677 = vmatpush.msra.mxu0 %v4676
      %v4678 = vand.u32 %v4506, 4294901760
      %v4679 = vsub.f32 %v4506, %v4678
      %v4680 = vand.u32 %v4679, 4294901760
      %v4681 = vsub.f32 %v4679, %v4680
      %v4682 = vand.u32 %v4681, 4294901760
      %4683 = vmatpush.msra.mxu0 %v4682
      %v4684 = vand.u32 %v4504, 4294901760
      %v4685 = vsub.f32 %v4504, %v4684
      %v4686 = vand.u32 %v4685, 4294901760
      %v4687 = vsub.f32 %v4685, %v4686
      %v4688 = vand.u32 %v4687, 4294901760
      %4689 = vmatpush.msra.mxu0 %v4688
      %v4690 = vand.u32 %v4502, 4294901760
      %v4691 = vsub.f32 %v4502, %v4690
      %v4692 = vand.u32 %v4691, 4294901760
      %v4693 = vsub.f32 %v4691, %v4692
      %v4694 = vand.u32 %v4693, 4294901760
      %4695 = vmatpush.msra.mxu0 %v4694
      %v4696 = vand.u32 %v4500, 4294901760
      %v4697 = vsub.f32 %v4500, %v4696
      %v4698 = vand.u32 %v4697, 4294901760
      %v4699 = vsub.f32 %v4697, %v4698
      %v4700 = vand.u32 %v4699, 4294901760
      %4701 = vmatpush.msra.mxu0 %v4700
      %v4702 = vand.u32 %v4498, 4294901760
      %v4703 = vsub.f32 %v4498, %v4702
      %v4704 = vand.u32 %v4703, 4294901760
      %v4705 = vsub.f32 %v4703, %v4704
      %v4706 = vand.u32 %v4705, 4294901760
      %4707 = vmatpush.msra.mxu0 %v4706
      %v4708 = vand.u32 %v4496, 4294901760
      %v4709 = vsub.f32 %v4496, %v4708
      %v4710 = vand.u32 %v4709, 4294901760
      %v4711 = vsub.f32 %v4709, %v4710
      %v4712 = vand.u32 %v4711, 4294901760
      %4713 = vmatpush.msra.mxu0 %v4712
      %v4714 = vand.u32 %v4494, 4294901760
      %v4715 = vsub.f32 %v4494, %v4714
      %v4716 = vand.u32 %v4715, 4294901760
      %v4717 = vsub.f32 %v4715, %v4716
      %v4718 = vand.u32 %v4717, 4294901760
      %4719 = vmatpush.msra.mxu0 %v4718
      %v4720 = vand.u32 %v4552, 4294901760
      %4721 = vmatmul.f32.gmra.mxu0 %v4720
      %v4722 = vpop.f32.mrf.mxu0
      %v4723 = vadd.f32 %v4606, %v4722
      %v4724 = vand.u32 %v4555, 4294901760
      %4725 = vmatmul.f32.gmra.mxu0 %v4724
      %v4726 = vpop.f32.mrf.mxu0
      %v4727 = vadd.f32 %v4614, %v4726
      %v4728 = vand.u32 %v4558, 4294901760
      %4729 = vmatmul.f32.gmra.mxu0 %v4728
      %v4730 = vpop.f32.mrf.mxu0
      %v4731 = vadd.f32 %v4622, %v4730
      %v4732 = vand.u32 %v4561, 4294901760
      %4733 = vmatmul.f32.gmra.mxu0 %v4732
      %v4734 = vpop.f32.mrf.mxu0
      %v4735 = vadd.f32 %v4630, %v4734
      %v4736 = vand.u32 %v4564, 4294901760
      %4737 = vmatmul.f32.gmra.mxu0 %v4736
      %v4738 = vpop.f32.mrf.mxu0
      %v4739 = vadd.f32 %v4638, %v4738
      %v4740 = vand.u32 %v4567, 4294901760
      %4741 = vmatmul.f32.gmra.mxu0 %v4740
      %v4742 = vpop.f32.mrf.mxu0
      %v4743 = vadd.f32 %v4646, %v4742
      %v4744 = vand.u32 %v4570, 4294901760
      %4745 = vmatmul.f32.gmra.mxu0 %v4744
      %v4746 = vpop.f32.mrf.mxu0
      %v4747 = vadd.f32 %v4654, %v4746
      %v4748 = vand.u32 %v4573, 4294901760
      %4749 = vmatmul.f32.gmra.mxu0 %v4748
      %v4750 = vpop.f32.mrf.mxu0
      %v4751 = vadd.f32 %v4662, %v4750
      %4752 = vdwg.mxu0
      %4753 = vmatpush.msra.mxu0 0.0
      %4754 = vmatpush.msra.mxu0 0.0
      %4755 = vmatpush.msra.mxu0 0.0
      %4756 = vmatpush.msra.mxu0 0.0
      %4757 = vmatpush.msra.mxu0 0.0
      %4758 = vmatpush.msra.mxu0 0.0
      %4759 = vmatpush.msra.mxu0 0.0
      %4760 = vmatpush.msra.mxu0 0.0
      %v4761 = vand.u32 %v4508, 4294901760
      %v4762 = vsub.f32 %v4508, %v4761
      %4763 = vmatpush.msra.mxu0 %v4762
      %v4764 = vand.u32 %v4506, 4294901760
      %v4765 = vsub.f32 %v4506, %v4764
      %4766 = vmatpush.msra.mxu0 %v4765
      %v4767 = vand.u32 %v4504, 4294901760
      %v4768 = vsub.f32 %v4504, %v4767
      %4769 = vmatpush.msra.mxu0 %v4768
      %v4770 = vand.u32 %v4502, 4294901760
      %v4771 = vsub.f32 %v4502, %v4770
      %4772 = vmatpush.msra.mxu0 %v4771
      %v4773 = vand.u32 %v4500, 4294901760
      %v4774 = vsub.f32 %v4500, %v4773
      %4775 = vmatpush.msra.mxu0 %v4774
      %v4776 = vand.u32 %v4498, 4294901760
      %v4777 = vsub.f32 %v4498, %v4776
      %4778 = vmatpush.msra.mxu0 %v4777
      %v4779 = vand.u32 %v4496, 4294901760
      %v4780 = vsub.f32 %v4496, %v4779
      %4781 = vmatpush.msra.mxu0 %v4780
      %v4782 = vand.u32 %v4494, 4294901760
      %v4783 = vsub.f32 %v4494, %v4782
      %4784 = vmatpush.msra.mxu0 %v4783
      %v4785 = vand.u32 %v4552, 4294901760
      %v4786 = vsub.f32 %v4552, %v4785
      %4787 = vmatmul.f32.gmra.mxu0 %v4786
      %v4788 = vpop.f32.mrf.mxu0
      %v4789 = vadd.f32 %v4723, %v4788
      %v4790 = vand.u32 %v4555, 4294901760
      %v4791 = vsub.f32 %v4555, %v4790
      %4792 = vmatmul.f32.gmra.mxu0 %v4791
      %v4793 = vpop.f32.mrf.mxu0
      %v4794 = vadd.f32 %v4727, %v4793
      %v4795 = vand.u32 %v4558, 4294901760
      %v4796 = vsub.f32 %v4558, %v4795
      %4797 = vmatmul.f32.gmra.mxu0 %v4796
      %v4798 = vpop.f32.mrf.mxu0
      %v4799 = vadd.f32 %v4731, %v4798
      %v4800 = vand.u32 %v4561, 4294901760
      %v4801 = vsub.f32 %v4561, %v4800
      %4802 = vmatmul.f32.gmra.mxu0 %v4801
      %v4803 = vpop.f32.mrf.mxu0
      %v4804 = vadd.f32 %v4735, %v4803
      %v4805 = vand.u32 %v4564, 4294901760
      %v4806 = vsub.f32 %v4564, %v4805
      %4807 = vmatmul.f32.gmra.mxu0 %v4806
      %v4808 = vpop.f32.mrf.mxu0
      %v4809 = vadd.f32 %v4739, %v4808
      %v4810 = vand.u32 %v4567, 4294901760
      %v4811 = vsub.f32 %v4567, %v4810
      %4812 = vmatmul.f32.gmra.mxu0 %v4811
      %v4813 = vpop.f32.mrf.mxu0
      %v4814 = vadd.f32 %v4743, %v4813
      %v4815 = vand.u32 %v4570, 4294901760
      %v4816 = vsub.f32 %v4570, %v4815
      %4817 = vmatmul.f32.gmra.mxu0 %v4816
      %v4818 = vpop.f32.mrf.mxu0
      %v4819 = vadd.f32 %v4747, %v4818
      %v4820 = vand.u32 %v4573, 4294901760
      %v4821 = vsub.f32 %v4573, %v4820
      %4822 = vmatmul.f32.gmra.mxu0 %v4821
      %v4823 = vpop.f32.mrf.mxu0
      %v4824 = vadd.f32 %v4751, %v4823
      %4825 = vdwg.mxu0
      %4826 = vmatpush.msra.mxu0 0.0
      %4827 = vmatpush.msra.mxu0 0.0
      %4828 = vmatpush.msra.mxu0 0.0
      %4829 = vmatpush.msra.mxu0 0.0
      %4830 = vmatpush.msra.mxu0 0.0
      %4831 = vmatpush.msra.mxu0 0.0
      %4832 = vmatpush.msra.mxu0 0.0
      %4833 = vmatpush.msra.mxu0 0.0
      %v4834 = vand.u32 %v4508, 4294901760
      %4835 = vmatpush.msra.mxu0 %v4834
      %v4836 = vand.u32 %v4506, 4294901760
      %4837 = vmatpush.msra.mxu0 %v4836
      %v4838 = vand.u32 %v4504, 4294901760
      %4839 = vmatpush.msra.mxu0 %v4838
      %v4840 = vand.u32 %v4502, 4294901760
      %4841 = vmatpush.msra.mxu0 %v4840
      %v4842 = vand.u32 %v4500, 4294901760
      %4843 = vmatpush.msra.mxu0 %v4842
      %v4844 = vand.u32 %v4498, 4294901760
      %4845 = vmatpush.msra.mxu0 %v4844
      %v4846 = vand.u32 %v4496, 4294901760
      %4847 = vmatpush.msra.mxu0 %v4846
      %v4848 = vand.u32 %v4494, 4294901760
      %4849 = vmatpush.msra.mxu0 %v4848
      %v4850 = vand.u32 %v4552, 4294901760
      %v4851 = vsub.f32 %v4552, %v4850
      %v4852 = vand.u32 %v4851, 4294901760
      %4853 = vmatmul.f32.gmra.mxu0 %v4852
      %v4854 = vpop.f32.mrf.mxu0
      %v4855 = vadd.f32 %v4789, %v4854
      %v4856 = vand.u32 %v4555, 4294901760
      %v4857 = vsub.f32 %v4555, %v4856
      %v4858 = vand.u32 %v4857, 4294901760
      %4859 = vmatmul.f32.gmra.mxu0 %v4858
      %v4860 = vpop.f32.mrf.mxu0
      %v4861 = vadd.f32 %v4794, %v4860
      %v4862 = vand.u32 %v4558, 4294901760
      %v4863 = vsub.f32 %v4558, %v4862
      %v4864 = vand.u32 %v4863, 4294901760
      %4865 = vmatmul.f32.gmra.mxu0 %v4864
      %v4866 = vpop.f32.mrf.mxu0
      %v4867 = vadd.f32 %v4799, %v4866
      %v4868 = vand.u32 %v4561, 4294901760
      %v4869 = vsub.f32 %v4561, %v4868
      %v4870 = vand.u32 %v4869, 4294901760
      %4871 = vmatmul.f32.gmra.mxu0 %v4870
      %v4872 = vpop.f32.mrf.mxu0
      %v4873 = vadd.f32 %v4804, %v4872
      %v4874 = vand.u32 %v4564, 4294901760
      %v4875 = vsub.f32 %v4564, %v4874
      %v4876 = vand.u32 %v4875, 4294901760
      %4877 = vmatmul.f32.gmra.mxu0 %v4876
      %v4878 = vpop.f32.mrf.mxu0
      %v4879 = vadd.f32 %v4809, %v4878
      %v4880 = vand.u32 %v4567, 4294901760
      %v4881 = vsub.f32 %v4567, %v4880
      %v4882 = vand.u32 %v4881, 4294901760
      %4883 = vmatmul.f32.gmra.mxu0 %v4882
      %v4884 = vpop.f32.mrf.mxu0
      %v4885 = vadd.f32 %v4814, %v4884
      %v4886 = vand.u32 %v4570, 4294901760
      %v4887 = vsub.f32 %v4570, %v4886
      %v4888 = vand.u32 %v4887, 4294901760
      %4889 = vmatmul.f32.gmra.mxu0 %v4888
      %v4890 = vpop.f32.mrf.mxu0
      %v4891 = vadd.f32 %v4819, %v4890
      %v4892 = vand.u32 %v4573, 4294901760
      %v4893 = vsub.f32 %v4573, %v4892
      %v4894 = vand.u32 %v4893, 4294901760
      %4895 = vmatmul.f32.gmra.mxu0 %v4894
      %v4896 = vpop.f32.mrf.mxu0
      %v4897 = vadd.f32 %v4824, %v4896
      %4898 = vdwg.mxu0
      %4899 = vmatpush.msra.mxu0 0.0
      %4900 = vmatpush.msra.mxu0 0.0
      %4901 = vmatpush.msra.mxu0 0.0
      %4902 = vmatpush.msra.mxu0 0.0
      %4903 = vmatpush.msra.mxu0 0.0
      %4904 = vmatpush.msra.mxu0 0.0
      %4905 = vmatpush.msra.mxu0 0.0
      %4906 = vmatpush.msra.mxu0 0.0
      %v4907 = vand.u32 %v4508, 4294901760
      %v4908 = vsub.f32 %v4508, %v4907
      %v4909 = vand.u32 %v4908, 4294901760
      %4910 = vmatpush.msra.mxu0 %v4909
      %v4911 = vand.u32 %v4506, 4294901760
      %v4912 = vsub.f32 %v4506, %v4911
      %v4913 = vand.u32 %v4912, 4294901760
      %4914 = vmatpush.msra.mxu0 %v4913
      %v4915 = vand.u32 %v4504, 4294901760
      %v4916 = vsub.f32 %v4504, %v4915
      %v4917 = vand.u32 %v4916, 4294901760
      %4918 = vmatpush.msra.mxu0 %v4917
      %v4919 = vand.u32 %v4502, 4294901760
      %v4920 = vsub.f32 %v4502, %v4919
      %v4921 = vand.u32 %v4920, 4294901760
      %4922 = vmatpush.msra.mxu0 %v4921
      %v4923 = vand.u32 %v4500, 4294901760
      %v4924 = vsub.f32 %v4500, %v4923
      %v4925 = vand.u32 %v4924, 4294901760
      %4926 = vmatpush.msra.mxu0 %v4925
      %v4927 = vand.u32 %v4498, 4294901760
      %v4928 = vsub.f32 %v4498, %v4927
      %v4929 = vand.u32 %v4928, 4294901760
      %4930 = vmatpush.msra.mxu0 %v4929
      %v4931 = vand.u32 %v4496, 4294901760
      %v4932 = vsub.f32 %v4496, %v4931
      %v4933 = vand.u32 %v4932, 4294901760
      %4934 = vmatpush.msra.mxu0 %v4933
      %v4935 = vand.u32 %v4494, 4294901760
      %v4936 = vsub.f32 %v4494, %v4935
      %v4937 = vand.u32 %v4936, 4294901760
      %4938 = vmatpush.msra.mxu0 %v4937
      %v4939 = vand.u32 %v4552, 4294901760
      %4940 = vmatmul.f32.gmra.mxu0 %v4939
      %v4941 = vpop.f32.mrf.mxu0
      %v4942 = vadd.f32 %v4855, %v4941
      %v4943 = vand.u32 %v4555, 4294901760
      %4944 = vmatmul.f32.gmra.mxu0 %v4943
      %v4945 = vpop.f32.mrf.mxu0
      %v4946 = vadd.f32 %v4861, %v4945
      %v4947 = vand.u32 %v4558, 4294901760
      %4948 = vmatmul.f32.gmra.mxu0 %v4947
      %v4949 = vpop.f32.mrf.mxu0
      %v4950 = vadd.f32 %v4867, %v4949
      %v4951 = vand.u32 %v4561, 4294901760
      %4952 = vmatmul.f32.gmra.mxu0 %v4951
      %v4953 = vpop.f32.mrf.mxu0
      %v4954 = vadd.f32 %v4873, %v4953
      %v4955 = vand.u32 %v4564, 4294901760
      %4956 = vmatmul.f32.gmra.mxu0 %v4955
      %v4957 = vpop.f32.mrf.mxu0
      %v4958 = vadd.f32 %v4879, %v4957
      %v4959 = vand.u32 %v4567, 4294901760
      %4960 = vmatmul.f32.gmra.mxu0 %v4959
      %v4961 = vpop.f32.mrf.mxu0
      %v4962 = vadd.f32 %v4885, %v4961
      %v4963 = vand.u32 %v4570, 4294901760
      %4964 = vmatmul.f32.gmra.mxu0 %v4963
      %v4965 = vpop.f32.mrf.mxu0
      %v4966 = vadd.f32 %v4891, %v4965
      %v4967 = vand.u32 %v4573, 4294901760
      %4968 = vmatmul.f32.gmra.mxu0 %v4967
      %v4969 = vpop.f32.mrf.mxu0
      %v4970 = vadd.f32 %v4897, %v4969
      %4971 = vdwg.mxu0
      %4972 = vmatpush.msra.mxu0 0.0
      %4973 = vmatpush.msra.mxu0 0.0
      %4974 = vmatpush.msra.mxu0 0.0
      %4975 = vmatpush.msra.mxu0 0.0
      %4976 = vmatpush.msra.mxu0 0.0
      %4977 = vmatpush.msra.mxu0 0.0
      %4978 = vmatpush.msra.mxu0 0.0
      %4979 = vmatpush.msra.mxu0 0.0
      %v4980 = vand.u32 %v4508, 4294901760
      %4981 = vmatpush.msra.mxu0 %v4980
      %v4982 = vand.u32 %v4506, 4294901760
      %4983 = vmatpush.msra.mxu0 %v4982
      %v4984 = vand.u32 %v4504, 4294901760
      %4985 = vmatpush.msra.mxu0 %v4984
      %v4986 = vand.u32 %v4502, 4294901760
      %4987 = vmatpush.msra.mxu0 %v4986
      %v4988 = vand.u32 %v4500, 4294901760
      %4989 = vmatpush.msra.mxu0 %v4988
      %v4990 = vand.u32 %v4498, 4294901760
      %4991 = vmatpush.msra.mxu0 %v4990
      %v4992 = vand.u32 %v4496, 4294901760
      %4993 = vmatpush.msra.mxu0 %v4992
      %v4994 = vand.u32 %v4494, 4294901760
      %4995 = vmatpush.msra.mxu0 %v4994
      %v4996 = vand.u32 %v4552, 4294901760
      %4997 = vmatmul.f32.gmra.mxu0 %v4996
      %v4998 = vpop.f32.mrf.mxu0
      %v4999 = vadd.f32 %v4942, %v4998
      %v5000 = vand.u32 %v4555, 4294901760
      %5001 = vmatmul.f32.gmra.mxu0 %v5000
      %v5002 = vpop.f32.mrf.mxu0
      %v5003 = vadd.f32 %v4946, %v5002
      %v5004 = vand.u32 %v4558, 4294901760
      %5005 = vmatmul.f32.gmra.mxu0 %v5004
      %v5006 = vpop.f32.mrf.mxu0
      %v5007 = vadd.f32 %v4950, %v5006
      %v5008 = vand.u32 %v4561, 4294901760
      %5009 = vmatmul.f32.gmra.mxu0 %v5008
      %v5010 = vpop.f32.mrf.mxu0
      %v5011 = vadd.f32 %v4954, %v5010
      %v5012 = vand.u32 %v4564, 4294901760
      %5013 = vmatmul.f32.gmra.mxu0 %v5012
      %v5014 = vpop.f32.mrf.mxu0
      %v5015 = vadd.f32 %v4958, %v5014
      %v5016 = vand.u32 %v4567, 4294901760
      %5017 = vmatmul.f32.gmra.mxu0 %v5016
      %v5018 = vpop.f32.mrf.mxu0
      %v5019 = vadd.f32 %v4962, %v5018
      %v5020 = vand.u32 %v4570, 4294901760
      %5021 = vmatmul.f32.gmra.mxu0 %v5020
      %v5022 = vpop.f32.mrf.mxu0
      %v5023 = vadd.f32 %v4966, %v5022
      %v5024 = vand.u32 %v4573, 4294901760
      %5025 = vmatmul.f32.gmra.mxu0 %v5024
      %v5026 = vpop.f32.mrf.mxu0
      %v5027 = vadd.f32 %v4970, %v5026
      %5028 = vdwg.mxu0
      %5029 = vmatpush.msra.mxu0 0.0
      %5030 = vmatpush.msra.mxu0 0.0
      %5031 = vmatpush.msra.mxu0 0.0
      %5032 = vmatpush.msra.mxu0 0.0
      %5033 = vmatpush.msra.mxu0 0.0
      %5034 = vmatpush.msra.mxu0 0.0
      %5035 = vmatpush.msra.mxu0 0.0
      %5036 = vmatpush.msra.mxu0 0.0
      %v5037 = vand.u32 %v4509, 4294901760
      %5038 = vmatpush.msra.mxu0 %v5037
      %v5039 = vand.u32 %v4507, 4294901760
      %5040 = vmatpush.msra.mxu0 %v5039
      %v5041 = vand.u32 %v4505, 4294901760
      %5042 = vmatpush.msra.mxu0 %v5041
      %v5043 = vand.u32 %v4503, 4294901760
      %5044 = vmatpush.msra.mxu0 %v5043
      %v5045 = vand.u32 %v4501, 4294901760
      %5046 = vmatpush.msra.mxu0 %v5045
      %v5047 = vand.u32 %v4499, 4294901760
      %5048 = vmatpush.msra.mxu0 %v5047
      %v5049 = vand.u32 %v4497, 4294901760
      %5050 = vmatpush.msra.mxu0 %v5049
      %v5051 = vand.u32 %v4495, 4294901760
      %5052 = vmatpush.msra.mxu0 %v5051
      %v5053 = vand.u32 %v4552, 4294901760
      %v5054 = vsub.f32 %v4552, %v5053
      %v5055 = vand.u32 %v5054, 4294901760
      %v5056 = vsub.f32 %v5054, %v5055
      %v5057 = vand.u32 %v5056, 4294901760
      %5058 = vmatmul.f32.gmra.mxu0 %v5057
      %v5059 = vpop.f32.mrf.mxu0
      %v5060 = vadd.f32 %v4521, %v5059
      %v5061 = vand.u32 %v4555, 4294901760
      %v5062 = vsub.f32 %v4555, %v5061
      %v5063 = vand.u32 %v5062, 4294901760
      %v5064 = vsub.f32 %v5062, %v5063
      %v5065 = vand.u32 %v5064, 4294901760
      %5066 = vmatmul.f32.gmra.mxu0 %v5065
      %v5067 = vpop.f32.mrf.mxu0
      %v5068 = vadd.f32 %v4525, %v5067
      %v5069 = vand.u32 %v4558, 4294901760
      %v5070 = vsub.f32 %v4558, %v5069
      %v5071 = vand.u32 %v5070, 4294901760
      %v5072 = vsub.f32 %v5070, %v5071
      %v5073 = vand.u32 %v5072, 4294901760
      %5074 = vmatmul.f32.gmra.mxu0 %v5073
      %v5075 = vpop.f32.mrf.mxu0
      %v5076 = vadd.f32 %v4529, %v5075
      %v5077 = vand.u32 %v4561, 4294901760
      %v5078 = vsub.f32 %v4561, %v5077
      %v5079 = vand.u32 %v5078, 4294901760
      %v5080 = vsub.f32 %v5078, %v5079
      %v5081 = vand.u32 %v5080, 4294901760
      %5082 = vmatmul.f32.gmra.mxu0 %v5081
      %v5083 = vpop.f32.mrf.mxu0
      %v5084 = vadd.f32 %v4533, %v5083
      %v5085 = vand.u32 %v4564, 4294901760
      %v5086 = vsub.f32 %v4564, %v5085
      %v5087 = vand.u32 %v5086, 4294901760
      %v5088 = vsub.f32 %v5086, %v5087
      %v5089 = vand.u32 %v5088, 4294901760
      %5090 = vmatmul.f32.gmra.mxu0 %v5089
      %v5091 = vpop.f32.mrf.mxu0
      %v5092 = vadd.f32 %v4537, %v5091
      %v5093 = vand.u32 %v4567, 4294901760
      %v5094 = vsub.f32 %v4567, %v5093
      %v5095 = vand.u32 %v5094, 4294901760
      %v5096 = vsub.f32 %v5094, %v5095
      %v5097 = vand.u32 %v5096, 4294901760
      %5098 = vmatmul.f32.gmra.mxu0 %v5097
      %v5099 = vpop.f32.mrf.mxu0
      %v5100 = vadd.f32 %v4541, %v5099
      %v5101 = vand.u32 %v4570, 4294901760
      %v5102 = vsub.f32 %v4570, %v5101
      %v5103 = vand.u32 %v5102, 4294901760
      %v5104 = vsub.f32 %v5102, %v5103
      %v5105 = vand.u32 %v5104, 4294901760
      %5106 = vmatmul.f32.gmra.mxu0 %v5105
      %v5107 = vpop.f32.mrf.mxu0
      %v5108 = vadd.f32 %v4545, %v5107
      %v5109 = vand.u32 %v4573, 4294901760
      %v5110 = vsub.f32 %v4573, %v5109
      %v5111 = vand.u32 %v5110, 4294901760
      %v5112 = vsub.f32 %v5110, %v5111
      %v5113 = vand.u32 %v5112, 4294901760
      %5114 = vmatmul.f32.gmra.mxu0 %v5113
      %v5115 = vpop.f32.mrf.mxu0
      %v5116 = vadd.f32 %v4549, %v5115
      %5117 = vdwg.mxu0
      %5118 = vmatpush.msra.mxu0 0.0
      %5119 = vmatpush.msra.mxu0 0.0
      %5120 = vmatpush.msra.mxu0 0.0
      %5121 = vmatpush.msra.mxu0 0.0
      %5122 = vmatpush.msra.mxu0 0.0
      %5123 = vmatpush.msra.mxu0 0.0
      %5124 = vmatpush.msra.mxu0 0.0
      %5125 = vmatpush.msra.mxu0 0.0
      %v5126 = vand.u32 %v4509, 4294901760
      %v5127 = vsub.f32 %v4509, %v5126
      %v5128 = vand.u32 %v5127, 4294901760
      %v5129 = vsub.f32 %v5127, %v5128
      %v5130 = vand.u32 %v5129, 4294901760
      %5131 = vmatpush.msra.mxu0 %v5130
      %v5132 = vand.u32 %v4507, 4294901760
      %v5133 = vsub.f32 %v4507, %v5132
      %v5134 = vand.u32 %v5133, 4294901760
      %v5135 = vsub.f32 %v5133, %v5134
      %v5136 = vand.u32 %v5135, 4294901760
      %5137 = vmatpush.msra.mxu0 %v5136
      %v5138 = vand.u32 %v4505, 4294901760
      %v5139 = vsub.f32 %v4505, %v5138
      %v5140 = vand.u32 %v5139, 4294901760
      %v5141 = vsub.f32 %v5139, %v5140
      %v5142 = vand.u32 %v5141, 4294901760
      %5143 = vmatpush.msra.mxu0 %v5142
      %v5144 = vand.u32 %v4503, 4294901760
      %v5145 = vsub.f32 %v4503, %v5144
      %v5146 = vand.u32 %v5145, 4294901760
      %v5147 = vsub.f32 %v5145, %v5146
      %v5148 = vand.u32 %v5147, 4294901760
      %5149 = vmatpush.msra.mxu0 %v5148
      %v5150 = vand.u32 %v4501, 4294901760
      %v5151 = vsub.f32 %v4501, %v5150
      %v5152 = vand.u32 %v5151, 4294901760
      %v5153 = vsub.f32 %v5151, %v5152
      %v5154 = vand.u32 %v5153, 4294901760
      %5155 = vmatpush.msra.mxu0 %v5154
      %v5156 = vand.u32 %v4499, 4294901760
      %v5157 = vsub.f32 %v4499, %v5156
      %v5158 = vand.u32 %v5157, 4294901760
      %v5159 = vsub.f32 %v5157, %v5158
      %v5160 = vand.u32 %v5159, 4294901760
      %5161 = vmatpush.msra.mxu0 %v5160
      %v5162 = vand.u32 %v4497, 4294901760
      %v5163 = vsub.f32 %v4497, %v5162
      %v5164 = vand.u32 %v5163, 4294901760
      %v5165 = vsub.f32 %v5163, %v5164
      %v5166 = vand.u32 %v5165, 4294901760
      %5167 = vmatpush.msra.mxu0 %v5166
      %v5168 = vand.u32 %v4495, 4294901760
      %v5169 = vsub.f32 %v4495, %v5168
      %v5170 = vand.u32 %v5169, 4294901760
      %v5171 = vsub.f32 %v5169, %v5170
      %v5172 = vand.u32 %v5171, 4294901760
      %5173 = vmatpush.msra.mxu0 %v5172
      %v5174 = vand.u32 %v4552, 4294901760
      %5175 = vmatmul.f32.gmra.mxu0 %v5174
      %v5176 = vpop.f32.mrf.mxu0
      %v5177 = vadd.f32 %v5060, %v5176
      %v5178 = vand.u32 %v4555, 4294901760
      %5179 = vmatmul.f32.gmra.mxu0 %v5178
      %v5180 = vpop.f32.mrf.mxu0
      %v5181 = vadd.f32 %v5068, %v5180
      %v5182 = vand.u32 %v4558, 4294901760
      %5183 = vmatmul.f32.gmra.mxu0 %v5182
      %v5184 = vpop.f32.mrf.mxu0
      %v5185 = vadd.f32 %v5076, %v5184
      %v5186 = vand.u32 %v4561, 4294901760
      %5187 = vmatmul.f32.gmra.mxu0 %v5186
      %v5188 = vpop.f32.mrf.mxu0
      %v5189 = vadd.f32 %v5084, %v5188
      %v5190 = vand.u32 %v4564, 4294901760
      %5191 = vmatmul.f32.gmra.mxu0 %v5190
      %v5192 = vpop.f32.mrf.mxu0
      %v5193 = vadd.f32 %v5092, %v5192
      %v5194 = vand.u32 %v4567, 4294901760
      %5195 = vmatmul.f32.gmra.mxu0 %v5194
      %v5196 = vpop.f32.mrf.mxu0
      %v5197 = vadd.f32 %v5100, %v5196
      %v5198 = vand.u32 %v4570, 4294901760
      %5199 = vmatmul.f32.gmra.mxu0 %v5198
      %v5200 = vpop.f32.mrf.mxu0
      %v5201 = vadd.f32 %v5108, %v5200
      %v5202 = vand.u32 %v4573, 4294901760
      %5203 = vmatmul.f32.gmra.mxu0 %v5202
      %v5204 = vpop.f32.mrf.mxu0
      %v5205 = vadd.f32 %v5116, %v5204
      %5206 = vdwg.mxu0
      %5207 = vmatpush.msra.mxu0 0.0
      %5208 = vmatpush.msra.mxu0 0.0
      %5209 = vmatpush.msra.mxu0 0.0
      %5210 = vmatpush.msra.mxu0 0.0
      %5211 = vmatpush.msra.mxu0 0.0
      %5212 = vmatpush.msra.mxu0 0.0
      %5213 = vmatpush.msra.mxu0 0.0
      %5214 = vmatpush.msra.mxu0 0.0
      %v5215 = vand.u32 %v4509, 4294901760
      %v5216 = vsub.f32 %v4509, %v5215
      %5217 = vmatpush.msra.mxu0 %v5216
      %v5218 = vand.u32 %v4507, 4294901760
      %v5219 = vsub.f32 %v4507, %v5218
      %5220 = vmatpush.msra.mxu0 %v5219
      %v5221 = vand.u32 %v4505, 4294901760
      %v5222 = vsub.f32 %v4505, %v5221
      %5223 = vmatpush.msra.mxu0 %v5222
      %v5224 = vand.u32 %v4503, 4294901760
      %v5225 = vsub.f32 %v4503, %v5224
      %5226 = vmatpush.msra.mxu0 %v5225
      %v5227 = vand.u32 %v4501, 4294901760
      %v5228 = vsub.f32 %v4501, %v5227
      %5229 = vmatpush.msra.mxu0 %v5228
      %v5230 = vand.u32 %v4499, 4294901760
      %v5231 = vsub.f32 %v4499, %v5230
      %5232 = vmatpush.msra.mxu0 %v5231
      %v5233 = vand.u32 %v4497, 4294901760
      %v5234 = vsub.f32 %v4497, %v5233
      %5235 = vmatpush.msra.mxu0 %v5234
      %v5236 = vand.u32 %v4495, 4294901760
      %v5237 = vsub.f32 %v4495, %v5236
      %5238 = vmatpush.msra.mxu0 %v5237
      %v5239 = vand.u32 %v4552, 4294901760
      %v5240 = vsub.f32 %v4552, %v5239
      %5241 = vmatmul.f32.gmra.mxu0 %v5240
      %v5242 = vpop.f32.mrf.mxu0
      %v5243 = vadd.f32 %v5177, %v5242
      %v5244 = vand.u32 %v4555, 4294901760
      %v5245 = vsub.f32 %v4555, %v5244
      %5246 = vmatmul.f32.gmra.mxu0 %v5245
      %v5247 = vpop.f32.mrf.mxu0
      %v5248 = vadd.f32 %v5181, %v5247
      %v5249 = vand.u32 %v4558, 4294901760
      %v5250 = vsub.f32 %v4558, %v5249
      %5251 = vmatmul.f32.gmra.mxu0 %v5250
      %v5252 = vpop.f32.mrf.mxu0
      %v5253 = vadd.f32 %v5185, %v5252
      %v5254 = vand.u32 %v4561, 4294901760
      %v5255 = vsub.f32 %v4561, %v5254
      %5256 = vmatmul.f32.gmra.mxu0 %v5255
      %v5257 = vpop.f32.mrf.mxu0
      %v5258 = vadd.f32 %v5189, %v5257
      %v5259 = vand.u32 %v4564, 4294901760
      %v5260 = vsub.f32 %v4564, %v5259
      %5261 = vmatmul.f32.gmra.mxu0 %v5260
      %v5262 = vpop.f32.mrf.mxu0
      %v5263 = vadd.f32 %v5193, %v5262
      %v5264 = vand.u32 %v4567, 4294901760
      %v5265 = vsub.f32 %v4567, %v5264
      %5266 = vmatmul.f32.gmra.mxu0 %v5265
      %v5267 = vpop.f32.mrf.mxu0
      %v5268 = vadd.f32 %v5197, %v5267
      %v5269 = vand.u32 %v4570, 4294901760
      %v5270 = vsub.f32 %v4570, %v5269
      %5271 = vmatmul.f32.gmra.mxu0 %v5270
      %v5272 = vpop.f32.mrf.mxu0
      %v5273 = vadd.f32 %v5201, %v5272
      %v5274 = vand.u32 %v4573, 4294901760
      %v5275 = vsub.f32 %v4573, %v5274
      %5276 = vmatmul.f32.gmra.mxu0 %v5275
      %v5277 = vpop.f32.mrf.mxu0
      %v5278 = vadd.f32 %v5205, %v5277
      %5279 = vdwg.mxu0
      %5280 = vmatpush.msra.mxu0 0.0
      %5281 = vmatpush.msra.mxu0 0.0
      %5282 = vmatpush.msra.mxu0 0.0
      %5283 = vmatpush.msra.mxu0 0.0
      %5284 = vmatpush.msra.mxu0 0.0
      %5285 = vmatpush.msra.mxu0 0.0
      %5286 = vmatpush.msra.mxu0 0.0
      %5287 = vmatpush.msra.mxu0 0.0
      %v5288 = vand.u32 %v4509, 4294901760
      %5289 = vmatpush.msra.mxu0 %v5288
      %v5290 = vand.u32 %v4507, 4294901760
      %5291 = vmatpush.msra.mxu0 %v5290
      %v5292 = vand.u32 %v4505, 4294901760
      %5293 = vmatpush.msra.mxu0 %v5292
      %v5294 = vand.u32 %v4503, 4294901760
      %5295 = vmatpush.msra.mxu0 %v5294
      %v5296 = vand.u32 %v4501, 4294901760
      %5297 = vmatpush.msra.mxu0 %v5296
      %v5298 = vand.u32 %v4499, 4294901760
      %5299 = vmatpush.msra.mxu0 %v5298
      %v5300 = vand.u32 %v4497, 4294901760
      %5301 = vmatpush.msra.mxu0 %v5300
      %v5302 = vand.u32 %v4495, 4294901760
      %5303 = vmatpush.msra.mxu0 %v5302
      %v5304 = vand.u32 %v4552, 4294901760
      %v5305 = vsub.f32 %v4552, %v5304
      %v5306 = vand.u32 %v5305, 4294901760
      %5307 = vmatmul.f32.gmra.mxu0 %v5306
      %v5308 = vpop.f32.mrf.mxu0
      %v5309 = vadd.f32 %v5243, %v5308
      %v5310 = vand.u32 %v4555, 4294901760
      %v5311 = vsub.f32 %v4555, %v5310
      %v5312 = vand.u32 %v5311, 4294901760
      %5313 = vmatmul.f32.gmra.mxu0 %v5312
      %v5314 = vpop.f32.mrf.mxu0
      %v5315 = vadd.f32 %v5248, %v5314
      %v5316 = vand.u32 %v4558, 4294901760
      %v5317 = vsub.f32 %v4558, %v5316
      %v5318 = vand.u32 %v5317, 4294901760
      %5319 = vmatmul.f32.gmra.mxu0 %v5318
      %v5320 = vpop.f32.mrf.mxu0
      %v5321 = vadd.f32 %v5253, %v5320
      %v5322 = vand.u32 %v4561, 4294901760
      %v5323 = vsub.f32 %v4561, %v5322
      %v5324 = vand.u32 %v5323, 4294901760
      %5325 = vmatmul.f32.gmra.mxu0 %v5324
      %v5326 = vpop.f32.mrf.mxu0
      %v5327 = vadd.f32 %v5258, %v5326
      %v5328 = vand.u32 %v4564, 4294901760
      %v5329 = vsub.f32 %v4564, %v5328
      %v5330 = vand.u32 %v5329, 4294901760
      %5331 = vmatmul.f32.gmra.mxu0 %v5330
      %v5332 = vpop.f32.mrf.mxu0
      %v5333 = vadd.f32 %v5263, %v5332
      %v5334 = vand.u32 %v4567, 4294901760
      %v5335 = vsub.f32 %v4567, %v5334
      %v5336 = vand.u32 %v5335, 4294901760
      %5337 = vmatmul.f32.gmra.mxu0 %v5336
      %v5338 = vpop.f32.mrf.mxu0
      %v5339 = vadd.f32 %v5268, %v5338
      %v5340 = vand.u32 %v4570, 4294901760
      %v5341 = vsub.f32 %v4570, %v5340
      %v5342 = vand.u32 %v5341, 4294901760
      %5343 = vmatmul.f32.gmra.mxu0 %v5342
      %v5344 = vpop.f32.mrf.mxu0
      %v5345 = vadd.f32 %v5273, %v5344
      %v5346 = vand.u32 %v4573, 4294901760
      %v5347 = vsub.f32 %v4573, %v5346
      %v5348 = vand.u32 %v5347, 4294901760
      %5349 = vmatmul.f32.gmra.mxu0 %v5348
      %v5350 = vpop.f32.mrf.mxu0
      %v5351 = vadd.f32 %v5278, %v5350
      %5352 = vdwg.mxu0
      %5353 = vmatpush.msra.mxu0 0.0
      %5354 = vmatpush.msra.mxu0 0.0
      %5355 = vmatpush.msra.mxu0 0.0
      %5356 = vmatpush.msra.mxu0 0.0
      %5357 = vmatpush.msra.mxu0 0.0
      %5358 = vmatpush.msra.mxu0 0.0
      %5359 = vmatpush.msra.mxu0 0.0
      %5360 = vmatpush.msra.mxu0 0.0
      %v5361 = vand.u32 %v4509, 4294901760
      %v5362 = vsub.f32 %v4509, %v5361
      %v5363 = vand.u32 %v5362, 4294901760
      %5364 = vmatpush.msra.mxu0 %v5363
      %v5365 = vand.u32 %v4507, 4294901760
      %v5366 = vsub.f32 %v4507, %v5365
      %v5367 = vand.u32 %v5366, 4294901760
      %5368 = vmatpush.msra.mxu0 %v5367
      %v5369 = vand.u32 %v4505, 4294901760
      %v5370 = vsub.f32 %v4505, %v5369
      %v5371 = vand.u32 %v5370, 4294901760
      %5372 = vmatpush.msra.mxu0 %v5371
      %v5373 = vand.u32 %v4503, 4294901760
      %v5374 = vsub.f32 %v4503, %v5373
      %v5375 = vand.u32 %v5374, 4294901760
      %5376 = vmatpush.msra.mxu0 %v5375
      %v5377 = vand.u32 %v4501, 4294901760
      %v5378 = vsub.f32 %v4501, %v5377
      %v5379 = vand.u32 %v5378, 4294901760
      %5380 = vmatpush.msra.mxu0 %v5379
      %v5381 = vand.u32 %v4499, 4294901760
      %v5382 = vsub.f32 %v4499, %v5381
      %v5383 = vand.u32 %v5382, 4294901760
      %5384 = vmatpush.msra.mxu0 %v5383
      %v5385 = vand.u32 %v4497, 4294901760
      %v5386 = vsub.f32 %v4497, %v5385
      %v5387 = vand.u32 %v5386, 4294901760
      %5388 = vmatpush.msra.mxu0 %v5387
      %v5389 = vand.u32 %v4495, 4294901760
      %v5390 = vsub.f32 %v4495, %v5389
      %v5391 = vand.u32 %v5390, 4294901760
      %5392 = vmatpush.msra.mxu0 %v5391
      %v5393 = vand.u32 %v4552, 4294901760
      %5394 = vmatmul.f32.gmra.mxu0 %v5393
      %v5395 = vpop.f32.mrf.mxu0
      %v5396 = vadd.f32 %v5309, %v5395
      %v5397 = vand.u32 %v4555, 4294901760
      %5398 = vmatmul.f32.gmra.mxu0 %v5397
      %v5399 = vpop.f32.mrf.mxu0
      %v5400 = vadd.f32 %v5315, %v5399
      %v5401 = vand.u32 %v4558, 4294901760
      %5402 = vmatmul.f32.gmra.mxu0 %v5401
      %v5403 = vpop.f32.mrf.mxu0
      %v5404 = vadd.f32 %v5321, %v5403
      %v5405 = vand.u32 %v4561, 4294901760
      %5406 = vmatmul.f32.gmra.mxu0 %v5405
      %v5407 = vpop.f32.mrf.mxu0
      %v5408 = vadd.f32 %v5327, %v5407
      %v5409 = vand.u32 %v4564, 4294901760
      %5410 = vmatmul.f32.gmra.mxu0 %v5409
      %v5411 = vpop.f32.mrf.mxu0
      %v5412 = vadd.f32 %v5333, %v5411
      %v5413 = vand.u32 %v4567, 4294901760
      %5414 = vmatmul.f32.gmra.mxu0 %v5413
      %v5415 = vpop.f32.mrf.mxu0
      %v5416 = vadd.f32 %v5339, %v5415
      %v5417 = vand.u32 %v4570, 4294901760
      %5418 = vmatmul.f32.gmra.mxu0 %v5417
      %v5419 = vpop.f32.mrf.mxu0
      %v5420 = vadd.f32 %v5345, %v5419
      %v5421 = vand.u32 %v4573, 4294901760
      %5422 = vmatmul.f32.gmra.mxu0 %v5421
      %v5423 = vpop.f32.mrf.mxu0
      %v5424 = vadd.f32 %v5351, %v5423
      %5425 = vdwg.mxu0
      %5426 = vmatpush.msra.mxu0 0.0
      %5427 = vmatpush.msra.mxu0 0.0
      %5428 = vmatpush.msra.mxu0 0.0
      %5429 = vmatpush.msra.mxu0 0.0
      %5430 = vmatpush.msra.mxu0 0.0
      %5431 = vmatpush.msra.mxu0 0.0
      %5432 = vmatpush.msra.mxu0 0.0
      %5433 = vmatpush.msra.mxu0 0.0
      %v5434 = vand.u32 %v4509, 4294901760
      %5435 = vmatpush.msra.mxu0 %v5434
      %v5436 = vand.u32 %v4507, 4294901760
      %5437 = vmatpush.msra.mxu0 %v5436
      %v5438 = vand.u32 %v4505, 4294901760
      %5439 = vmatpush.msra.mxu0 %v5438
      %v5440 = vand.u32 %v4503, 4294901760
      %5441 = vmatpush.msra.mxu0 %v5440
      %v5442 = vand.u32 %v4501, 4294901760
      %5443 = vmatpush.msra.mxu0 %v5442
      %v5444 = vand.u32 %v4499, 4294901760
      %5445 = vmatpush.msra.mxu0 %v5444
      %v5446 = vand.u32 %v4497, 4294901760
      %5447 = vmatpush.msra.mxu0 %v5446
      %v5448 = vand.u32 %v4495, 4294901760
      %5449 = vmatpush.msra.mxu0 %v5448
      %v5450 = vand.u32 %v4552, 4294901760
      %5451 = vmatmul.f32.gmra.mxu0 %v5450
      %v5452 = vpop.f32.mrf.mxu0
      %v5453 = vadd.f32 %v5396, %v5452
      %v5454 = vand.u32 %v4555, 4294901760
      %5455 = vmatmul.f32.gmra.mxu0 %v5454
      %v5456 = vpop.f32.mrf.mxu0
      %v5457 = vadd.f32 %v5400, %v5456
      %v5458 = vand.u32 %v4558, 4294901760
      %5459 = vmatmul.f32.gmra.mxu0 %v5458
      %v5460 = vpop.f32.mrf.mxu0
      %v5461 = vadd.f32 %v5404, %v5460
      %v5462 = vand.u32 %v4561, 4294901760
      %5463 = vmatmul.f32.gmra.mxu0 %v5462
      %v5464 = vpop.f32.mrf.mxu0
      %v5465 = vadd.f32 %v5408, %v5464
      %v5466 = vand.u32 %v4564, 4294901760
      %5467 = vmatmul.f32.gmra.mxu0 %v5466
      %v5468 = vpop.f32.mrf.mxu0
      %v5469 = vadd.f32 %v5412, %v5468
      %v5470 = vand.u32 %v4567, 4294901760
      %5471 = vmatmul.f32.gmra.mxu0 %v5470
      %v5472 = vpop.f32.mrf.mxu0
      %v5473 = vadd.f32 %v5416, %v5472
      %v5474 = vand.u32 %v4570, 4294901760
      %5475 = vmatmul.f32.gmra.mxu0 %v5474
      %v5476 = vpop.f32.mrf.mxu0
      %v5477 = vadd.f32 %v5420, %v5476
      %v5478 = vand.u32 %v4573, 4294901760
      %5479 = vmatmul.f32.gmra.mxu0 %v5478
      %v5480 = vpop.f32.mrf.mxu0
      %v5481 = vadd.f32 %v5424, %v5480
      %5482 = vdwg.mxu0
      %v5483 = vmax.f32 %v4999, 0.0
      %v5484 = vmax.f32 %v5453, 0.0
      %v5485 = vmax.f32 %v5003, 0.0
      %v5486 = vmax.f32 %v5457, 0.0
      %v5487 = vmax.f32 %v5007, 0.0
      %v5488 = vmax.f32 %v5461, 0.0
      %v5489 = vmax.f32 %v5011, 0.0
      %v5490 = vmax.f32 %v5465, 0.0
      %v5491 = vmax.f32 %v5015, 0.0
      %v5492 = vmax.f32 %v5469, 0.0
      %v5493 = vmax.f32 %v5019, 0.0
      %v5494 = vmax.f32 %v5473, 0.0
      %v5495 = vmax.f32 %v5023, 0.0
      %v5496 = vmax.f32 %v5477, 0.0
      %v5497 = vmax.f32 %v5027, 0.0
      %v5498 = vmax.f32 %v5481, 0.0
      %s5499 = scalar_lea.vmem %s1, 320
      %v5500 = vld [vmem:[%s5499] sm:$0xff]
      %v5502 = vsel %vm1583, %v5500, 0
      %5504 = vmatpush.msra.mxu0 0.0
      %5505 = vmatpush.msra.mxu0 0.0
      %5506 = vmatpush.msra.mxu0 0.0
      %5507 = vmatpush.msra.mxu0 0.0
      %5508 = vmatpush.msra.mxu0 0.0
      %5509 = vmatpush.msra.mxu0 0.0
      %5510 = vmatpush.msra.mxu0 0.0
      %5511 = vmatpush.msra.mxu0 0.0
      %v5512 = vand.u32 %v5497, 4294901760
      %5513 = vmatpush.msra.mxu0 %v5512
      %v5514 = vand.u32 %v5495, 4294901760
      %5515 = vmatpush.msra.mxu0 %v5514
      %v5516 = vand.u32 %v5493, 4294901760
      %5517 = vmatpush.msra.mxu0 %v5516
      %v5518 = vand.u32 %v5491, 4294901760
      %5519 = vmatpush.msra.mxu0 %v5518
      %v5520 = vand.u32 %v5489, 4294901760
      %5521 = vmatpush.msra.mxu0 %v5520
      %v5522 = vand.u32 %v5487, 4294901760
      %5523 = vmatpush.msra.mxu0 %v5522
      %v5524 = vand.u32 %v5485, 4294901760
      %5525 = vmatpush.msra.mxu0 %v5524
      %v5526 = vand.u32 %v5483, 4294901760
      %5527 = vmatpush.msra.mxu0 %v5526
      %v5528 = vand.u32 %v5502, 4294901760
      %v5529 = vsub.f32 %v5502, %v5528
      %v5530 = vand.u32 %v5529, 4294901760
      %v5531 = vsub.f32 %v5529, %v5530
      %v5532 = vand.u32 %v5531, 4294901760
      %5533 = vmatmul.f32.gmra.mxu0 %v5532
      %v5534 = vpop.f32.mrf.mxu0
      %v5535 = vadd.f32 0.0, %v5534
      %5536 = vdwg.mxu0
      %5537 = vmatpush.msra.mxu0 0.0
      %5538 = vmatpush.msra.mxu0 0.0
      %5539 = vmatpush.msra.mxu0 0.0
      %5540 = vmatpush.msra.mxu0 0.0
      %5541 = vmatpush.msra.mxu0 0.0
      %5542 = vmatpush.msra.mxu0 0.0
      %5543 = vmatpush.msra.mxu0 0.0
      %5544 = vmatpush.msra.mxu0 0.0
      %v5545 = vand.u32 %v5497, 4294901760
      %v5546 = vsub.f32 %v5497, %v5545
      %v5547 = vand.u32 %v5546, 4294901760
      %v5548 = vsub.f32 %v5546, %v5547
      %v5549 = vand.u32 %v5548, 4294901760
      %5550 = vmatpush.msra.mxu0 %v5549
      %v5551 = vand.u32 %v5495, 4294901760
      %v5552 = vsub.f32 %v5495, %v5551
      %v5553 = vand.u32 %v5552, 4294901760
      %v5554 = vsub.f32 %v5552, %v5553
      %v5555 = vand.u32 %v5554, 4294901760
      %5556 = vmatpush.msra.mxu0 %v5555
      %v5557 = vand.u32 %v5493, 4294901760
      %v5558 = vsub.f32 %v5493, %v5557
      %v5559 = vand.u32 %v5558, 4294901760
      %v5560 = vsub.f32 %v5558, %v5559
      %v5561 = vand.u32 %v5560, 4294901760
      %5562 = vmatpush.msra.mxu0 %v5561
      %v5563 = vand.u32 %v5491, 4294901760
      %v5564 = vsub.f32 %v5491, %v5563
      %v5565 = vand.u32 %v5564, 4294901760
      %v5566 = vsub.f32 %v5564, %v5565
      %v5567 = vand.u32 %v5566, 4294901760
      %5568 = vmatpush.msra.mxu0 %v5567
      %v5569 = vand.u32 %v5489, 4294901760
      %v5570 = vsub.f32 %v5489, %v5569
      %v5571 = vand.u32 %v5570, 4294901760
      %v5572 = vsub.f32 %v5570, %v5571
      %v5573 = vand.u32 %v5572, 4294901760
      %5574 = vmatpush.msra.mxu0 %v5573
      %v5575 = vand.u32 %v5487, 4294901760
      %v5576 = vsub.f32 %v5487, %v5575
      %v5577 = vand.u32 %v5576, 4294901760
      %v5578 = vsub.f32 %v5576, %v5577
      %v5579 = vand.u32 %v5578, 4294901760
      %5580 = vmatpush.msra.mxu0 %v5579
      %v5581 = vand.u32 %v5485, 4294901760
      %v5582 = vsub.f32 %v5485, %v5581
      %v5583 = vand.u32 %v5582, 4294901760
      %v5584 = vsub.f32 %v5582, %v5583
      %v5585 = vand.u32 %v5584, 4294901760
      %5586 = vmatpush.msra.mxu0 %v5585
      %v5587 = vand.u32 %v5483, 4294901760
      %v5588 = vsub.f32 %v5483, %v5587
      %v5589 = vand.u32 %v5588, 4294901760
      %v5590 = vsub.f32 %v5588, %v5589
      %v5591 = vand.u32 %v5590, 4294901760
      %5592 = vmatpush.msra.mxu0 %v5591
      %v5593 = vand.u32 %v5502, 4294901760
      %5594 = vmatmul.f32.gmra.mxu0 %v5593
      %v5595 = vpop.f32.mrf.mxu0
      %v5596 = vadd.f32 %v5535, %v5595
      %5597 = vdwg.mxu0
      %5598 = vmatpush.msra.mxu0 0.0
      %5599 = vmatpush.msra.mxu0 0.0
      %5600 = vmatpush.msra.mxu0 0.0
      %5601 = vmatpush.msra.mxu0 0.0
      %5602 = vmatpush.msra.mxu0 0.0
      %5603 = vmatpush.msra.mxu0 0.0
      %5604 = vmatpush.msra.mxu0 0.0
      %5605 = vmatpush.msra.mxu0 0.0
      %v5606 = vand.u32 %v5497, 4294901760
      %v5607 = vsub.f32 %v5497, %v5606
      %5608 = vmatpush.msra.mxu0 %v5607
      %v5609 = vand.u32 %v5495, 4294901760
      %v5610 = vsub.f32 %v5495, %v5609
      %5611 = vmatpush.msra.mxu0 %v5610
      %v5612 = vand.u32 %v5493, 4294901760
      %v5613 = vsub.f32 %v5493, %v5612
      %5614 = vmatpush.msra.mxu0 %v5613
      %v5615 = vand.u32 %v5491, 4294901760
      %v5616 = vsub.f32 %v5491, %v5615
      %5617 = vmatpush.msra.mxu0 %v5616
      %v5618 = vand.u32 %v5489, 4294901760
      %v5619 = vsub.f32 %v5489, %v5618
      %5620 = vmatpush.msra.mxu0 %v5619
      %v5621 = vand.u32 %v5487, 4294901760
      %v5622 = vsub.f32 %v5487, %v5621
      %5623 = vmatpush.msra.mxu0 %v5622
      %v5624 = vand.u32 %v5485, 4294901760
      %v5625 = vsub.f32 %v5485, %v5624
      %5626 = vmatpush.msra.mxu0 %v5625
      %v5627 = vand.u32 %v5483, 4294901760
      %v5628 = vsub.f32 %v5483, %v5627
      %5629 = vmatpush.msra.mxu0 %v5628
      %v5630 = vand.u32 %v5502, 4294901760
      %v5631 = vsub.f32 %v5502, %v5630
      %5632 = vmatmul.f32.gmra.mxu0 %v5631
      %v5633 = vpop.f32.mrf.mxu0
      %v5634 = vadd.f32 %v5596, %v5633
      %5635 = vdwg.mxu0
      %5636 = vmatpush.msra.mxu0 0.0
      %5637 = vmatpush.msra.mxu0 0.0
      %5638 = vmatpush.msra.mxu0 0.0
      %5639 = vmatpush.msra.mxu0 0.0
      %5640 = vmatpush.msra.mxu0 0.0
      %5641 = vmatpush.msra.mxu0 0.0
      %5642 = vmatpush.msra.mxu0 0.0
      %5643 = vmatpush.msra.mxu0 0.0
      %v5644 = vand.u32 %v5497, 4294901760
      %5645 = vmatpush.msra.mxu0 %v5644
      %v5646 = vand.u32 %v5495, 4294901760
      %5647 = vmatpush.msra.mxu0 %v5646
      %v5648 = vand.u32 %v5493, 4294901760
      %5649 = vmatpush.msra.mxu0 %v5648
      %v5650 = vand.u32 %v5491, 4294901760
      %5651 = vmatpush.msra.mxu0 %v5650
      %v5652 = vand.u32 %v5489, 4294901760
      %5653 = vmatpush.msra.mxu0 %v5652
      %v5654 = vand.u32 %v5487, 4294901760
      %5655 = vmatpush.msra.mxu0 %v5654
      %v5656 = vand.u32 %v5485, 4294901760
      %5657 = vmatpush.msra.mxu0 %v5656
      %v5658 = vand.u32 %v5483, 4294901760
      %5659 = vmatpush.msra.mxu0 %v5658
      %v5660 = vand.u32 %v5502, 4294901760
      %v5661 = vsub.f32 %v5502, %v5660
      %v5662 = vand.u32 %v5661, 4294901760
      %5663 = vmatmul.f32.gmra.mxu0 %v5662
      %v5664 = vpop.f32.mrf.mxu0
      %v5665 = vadd.f32 %v5634, %v5664
      %5666 = vdwg.mxu0
      %5667 = vmatpush.msra.mxu0 0.0
      %5668 = vmatpush.msra.mxu0 0.0
      %5669 = vmatpush.msra.mxu0 0.0
      %5670 = vmatpush.msra.mxu0 0.0
      %5671 = vmatpush.msra.mxu0 0.0
      %5672 = vmatpush.msra.mxu0 0.0
      %5673 = vmatpush.msra.mxu0 0.0
      %5674 = vmatpush.msra.mxu0 0.0
      %v5675 = vand.u32 %v5497, 4294901760
      %v5676 = vsub.f32 %v5497, %v5675
      %v5677 = vand.u32 %v5676, 4294901760
      %5678 = vmatpush.msra.mxu0 %v5677
      %v5679 = vand.u32 %v5495, 4294901760
      %v5680 = vsub.f32 %v5495, %v5679
      %v5681 = vand.u32 %v5680, 4294901760
      %5682 = vmatpush.msra.mxu0 %v5681
      %v5683 = vand.u32 %v5493, 4294901760
      %v5684 = vsub.f32 %v5493, %v5683
      %v5685 = vand.u32 %v5684, 4294901760
      %5686 = vmatpush.msra.mxu0 %v5685
      %v5687 = vand.u32 %v5491, 4294901760
      %v5688 = vsub.f32 %v5491, %v5687
      %v5689 = vand.u32 %v5688, 4294901760
      %5690 = vmatpush.msra.mxu0 %v5689
      %v5691 = vand.u32 %v5489, 4294901760
      %v5692 = vsub.f32 %v5489, %v5691
      %v5693 = vand.u32 %v5692, 4294901760
      %5694 = vmatpush.msra.mxu0 %v5693
      %v5695 = vand.u32 %v5487, 4294901760
      %v5696 = vsub.f32 %v5487, %v5695
      %v5697 = vand.u32 %v5696, 4294901760
      %5698 = vmatpush.msra.mxu0 %v5697
      %v5699 = vand.u32 %v5485, 4294901760
      %v5700 = vsub.f32 %v5485, %v5699
      %v5701 = vand.u32 %v5700, 4294901760
      %5702 = vmatpush.msra.mxu0 %v5701
      %v5703 = vand.u32 %v5483, 4294901760
      %v5704 = vsub.f32 %v5483, %v5703
      %v5705 = vand.u32 %v5704, 4294901760
      %5706 = vmatpush.msra.mxu0 %v5705
      %v5707 = vand.u32 %v5502, 4294901760
      %5708 = vmatmul.f32.gmra.mxu0 %v5707
      %v5709 = vpop.f32.mrf.mxu0
      %v5710 = vadd.f32 %v5665, %v5709
      %5711 = vdwg.mxu0
      %5712 = vmatpush.msra.mxu0 0.0
      %5713 = vmatpush.msra.mxu0 0.0
      %5714 = vmatpush.msra.mxu0 0.0
      %5715 = vmatpush.msra.mxu0 0.0
      %5716 = vmatpush.msra.mxu0 0.0
      %5717 = vmatpush.msra.mxu0 0.0
      %5718 = vmatpush.msra.mxu0 0.0
      %5719 = vmatpush.msra.mxu0 0.0
      %v5720 = vand.u32 %v5497, 4294901760
      %5721 = vmatpush.msra.mxu0 %v5720
      %v5722 = vand.u32 %v5495, 4294901760
      %5723 = vmatpush.msra.mxu0 %v5722
      %v5724 = vand.u32 %v5493, 4294901760
      %5725 = vmatpush.msra.mxu0 %v5724
      %v5726 = vand.u32 %v5491, 4294901760
      %5727 = vmatpush.msra.mxu0 %v5726
      %v5728 = vand.u32 %v5489, 4294901760
      %5729 = vmatpush.msra.mxu0 %v5728
      %v5730 = vand.u32 %v5487, 4294901760
      %5731 = vmatpush.msra.mxu0 %v5730
      %v5732 = vand.u32 %v5485, 4294901760
      %5733 = vmatpush.msra.mxu0 %v5732
      %v5734 = vand.u32 %v5483, 4294901760
      %5735 = vmatpush.msra.mxu0 %v5734
      %v5736 = vand.u32 %v5502, 4294901760
      %5737 = vmatmul.f32.gmra.mxu0 %v5736
      %v5738 = vpop.f32.mrf.mxu0
      %v5739 = vadd.f32 %v5710, %v5738
      %5740 = vdwg.mxu0
      %5741 = vmatpush.msra.mxu0 0.0
      %5742 = vmatpush.msra.mxu0 0.0
      %5743 = vmatpush.msra.mxu0 0.0
      %5744 = vmatpush.msra.mxu0 0.0
      %5745 = vmatpush.msra.mxu0 0.0
      %5746 = vmatpush.msra.mxu0 0.0
      %5747 = vmatpush.msra.mxu0 0.0
      %5748 = vmatpush.msra.mxu0 0.0
      %v5749 = vand.u32 %v5498, 4294901760
      %5750 = vmatpush.msra.mxu0 %v5749
      %v5751 = vand.u32 %v5496, 4294901760
      %5752 = vmatpush.msra.mxu0 %v5751
      %v5753 = vand.u32 %v5494, 4294901760
      %5754 = vmatpush.msra.mxu0 %v5753
      %v5755 = vand.u32 %v5492, 4294901760
      %5756 = vmatpush.msra.mxu0 %v5755
      %v5757 = vand.u32 %v5490, 4294901760
      %5758 = vmatpush.msra.mxu0 %v5757
      %v5759 = vand.u32 %v5488, 4294901760
      %5760 = vmatpush.msra.mxu0 %v5759
      %v5761 = vand.u32 %v5486, 4294901760
      %5762 = vmatpush.msra.mxu0 %v5761
      %v5763 = vand.u32 %v5484, 4294901760
      %5764 = vmatpush.msra.mxu0 %v5763
      %v5765 = vand.u32 %v5502, 4294901760
      %v5766 = vsub.f32 %v5502, %v5765
      %v5767 = vand.u32 %v5766, 4294901760
      %v5768 = vsub.f32 %v5766, %v5767
      %v5769 = vand.u32 %v5768, 4294901760
      %5770 = vmatmul.f32.gmra.mxu0 %v5769
      %v5771 = vpop.f32.mrf.mxu0
      %v5772 = vadd.f32 0.0, %v5771
      %5773 = vdwg.mxu0
      %5774 = vmatpush.msra.mxu0 0.0
      %5775 = vmatpush.msra.mxu0 0.0
      %5776 = vmatpush.msra.mxu0 0.0
      %5777 = vmatpush.msra.mxu0 0.0
      %5778 = vmatpush.msra.mxu0 0.0
      %5779 = vmatpush.msra.mxu0 0.0
      %5780 = vmatpush.msra.mxu0 0.0
      %5781 = vmatpush.msra.mxu0 0.0
      %v5782 = vand.u32 %v5498, 4294901760
      %v5783 = vsub.f32 %v5498, %v5782
      %v5784 = vand.u32 %v5783, 4294901760
      %v5785 = vsub.f32 %v5783, %v5784
      %v5786 = vand.u32 %v5785, 4294901760
      %5787 = vmatpush.msra.mxu0 %v5786
      %v5788 = vand.u32 %v5496, 4294901760
      %v5789 = vsub.f32 %v5496, %v5788
      %v5790 = vand.u32 %v5789, 4294901760
      %v5791 = vsub.f32 %v5789, %v5790
      %v5792 = vand.u32 %v5791, 4294901760
      %5793 = vmatpush.msra.mxu0 %v5792
      %v5794 = vand.u32 %v5494, 4294901760
      %v5795 = vsub.f32 %v5494, %v5794
      %v5796 = vand.u32 %v5795, 4294901760
      %v5797 = vsub.f32 %v5795, %v5796
      %v5798 = vand.u32 %v5797, 4294901760
      %5799 = vmatpush.msra.mxu0 %v5798
      %v5800 = vand.u32 %v5492, 4294901760
      %v5801 = vsub.f32 %v5492, %v5800
      %v5802 = vand.u32 %v5801, 4294901760
      %v5803 = vsub.f32 %v5801, %v5802
      %v5804 = vand.u32 %v5803, 4294901760
      %5805 = vmatpush.msra.mxu0 %v5804
      %v5806 = vand.u32 %v5490, 4294901760
      %v5807 = vsub.f32 %v5490, %v5806
      %v5808 = vand.u32 %v5807, 4294901760
      %v5809 = vsub.f32 %v5807, %v5808
      %v5810 = vand.u32 %v5809, 4294901760
      %5811 = vmatpush.msra.mxu0 %v5810
      %v5812 = vand.u32 %v5488, 4294901760
      %v5813 = vsub.f32 %v5488, %v5812
      %v5814 = vand.u32 %v5813, 4294901760
      %v5815 = vsub.f32 %v5813, %v5814
      %v5816 = vand.u32 %v5815, 4294901760
      %5817 = vmatpush.msra.mxu0 %v5816
      %v5818 = vand.u32 %v5486, 4294901760
      %v5819 = vsub.f32 %v5486, %v5818
      %v5820 = vand.u32 %v5819, 4294901760
      %v5821 = vsub.f32 %v5819, %v5820
      %v5822 = vand.u32 %v5821, 4294901760
      %5823 = vmatpush.msra.mxu0 %v5822
      %v5824 = vand.u32 %v5484, 4294901760
      %v5825 = vsub.f32 %v5484, %v5824
      %v5826 = vand.u32 %v5825, 4294901760
      %v5827 = vsub.f32 %v5825, %v5826
      %v5828 = vand.u32 %v5827, 4294901760
      %5829 = vmatpush.msra.mxu0 %v5828
      %v5830 = vand.u32 %v5502, 4294901760
      %5831 = vmatmul.f32.gmra.mxu0 %v5830
      %v5832 = vpop.f32.mrf.mxu0
      %v5833 = vadd.f32 %v5772, %v5832
      %5834 = vdwg.mxu0
      %5835 = vmatpush.msra.mxu0 0.0
      %5836 = vmatpush.msra.mxu0 0.0
      %5837 = vmatpush.msra.mxu0 0.0
      %5838 = vmatpush.msra.mxu0 0.0
      %5839 = vmatpush.msra.mxu0 0.0
      %5840 = vmatpush.msra.mxu0 0.0
      %5841 = vmatpush.msra.mxu0 0.0
      %5842 = vmatpush.msra.mxu0 0.0
      %v5843 = vand.u32 %v5498, 4294901760
      %v5844 = vsub.f32 %v5498, %v5843
      %5845 = vmatpush.msra.mxu0 %v5844
      %v5846 = vand.u32 %v5496, 4294901760
      %v5847 = vsub.f32 %v5496, %v5846
      %5848 = vmatpush.msra.mxu0 %v5847
      %v5849 = vand.u32 %v5494, 4294901760
      %v5850 = vsub.f32 %v5494, %v5849
      %5851 = vmatpush.msra.mxu0 %v5850
      %v5852 = vand.u32 %v5492, 4294901760
      %v5853 = vsub.f32 %v5492, %v5852
      %5854 = vmatpush.msra.mxu0 %v5853
      %v5855 = vand.u32 %v5490, 4294901760
      %v5856 = vsub.f32 %v5490, %v5855
      %5857 = vmatpush.msra.mxu0 %v5856
      %v5858 = vand.u32 %v5488, 4294901760
      %v5859 = vsub.f32 %v5488, %v5858
      %5860 = vmatpush.msra.mxu0 %v5859
      %v5861 = vand.u32 %v5486, 4294901760
      %v5862 = vsub.f32 %v5486, %v5861
      %5863 = vmatpush.msra.mxu0 %v5862
      %v5864 = vand.u32 %v5484, 4294901760
      %v5865 = vsub.f32 %v5484, %v5864
      %5866 = vmatpush.msra.mxu0 %v5865
      %v5867 = vand.u32 %v5502, 4294901760
      %v5868 = vsub.f32 %v5502, %v5867
      %5869 = vmatmul.f32.gmra.mxu0 %v5868
      %v5870 = vpop.f32.mrf.mxu0
      %v5871 = vadd.f32 %v5833, %v5870
      %5872 = vdwg.mxu0
      %5873 = vmatpush.msra.mxu0 0.0
      %5874 = vmatpush.msra.mxu0 0.0
      %5875 = vmatpush.msra.mxu0 0.0
      %5876 = vmatpush.msra.mxu0 0.0
      %5877 = vmatpush.msra.mxu0 0.0
      %5878 = vmatpush.msra.mxu0 0.0
      %5879 = vmatpush.msra.mxu0 0.0
      %5880 = vmatpush.msra.mxu0 0.0
      %v5881 = vand.u32 %v5498, 4294901760
      %5882 = vmatpush.msra.mxu0 %v5881
      %v5883 = vand.u32 %v5496, 4294901760
      %5884 = vmatpush.msra.mxu0 %v5883
      %v5885 = vand.u32 %v5494, 4294901760
      %5886 = vmatpush.msra.mxu0 %v5885
      %v5887 = vand.u32 %v5492, 4294901760
      %5888 = vmatpush.msra.mxu0 %v5887
      %v5889 = vand.u32 %v5490, 4294901760
      %5890 = vmatpush.msra.mxu0 %v5889
      %v5891 = vand.u32 %v5488, 4294901760
      %5892 = vmatpush.msra.mxu0 %v5891
      %v5893 = vand.u32 %v5486, 4294901760
      %5894 = vmatpush.msra.mxu0 %v5893
      %v5895 = vand.u32 %v5484, 4294901760
      %5896 = vmatpush.msra.mxu0 %v5895
      %v5897 = vand.u32 %v5502, 4294901760
      %v5898 = vsub.f32 %v5502, %v5897
      %v5899 = vand.u32 %v5898, 4294901760
      %5900 = vmatmul.f32.gmra.mxu0 %v5899
      %v5901 = vpop.f32.mrf.mxu0
      %v5902 = vadd.f32 %v5871, %v5901
      %5903 = vdwg.mxu0
      %5904 = vmatpush.msra.mxu0 0.0
      %5905 = vmatpush.msra.mxu0 0.0
      %5906 = vmatpush.msra.mxu0 0.0
      %5907 = vmatpush.msra.mxu0 0.0
      %5908 = vmatpush.msra.mxu0 0.0
      %5909 = vmatpush.msra.mxu0 0.0
      %5910 = vmatpush.msra.mxu0 0.0
      %5911 = vmatpush.msra.mxu0 0.0
      %v5912 = vand.u32 %v5498, 4294901760
      %v5913 = vsub.f32 %v5498, %v5912
      %v5914 = vand.u32 %v5913, 4294901760
      %5915 = vmatpush.msra.mxu0 %v5914
      %v5916 = vand.u32 %v5496, 4294901760
      %v5917 = vsub.f32 %v5496, %v5916
      %v5918 = vand.u32 %v5917, 4294901760
      %5919 = vmatpush.msra.mxu0 %v5918
      %v5920 = vand.u32 %v5494, 4294901760
      %v5921 = vsub.f32 %v5494, %v5920
      %v5922 = vand.u32 %v5921, 4294901760
      %5923 = vmatpush.msra.mxu0 %v5922
      %v5924 = vand.u32 %v5492, 4294901760
      %v5925 = vsub.f32 %v5492, %v5924
      %v5926 = vand.u32 %v5925, 4294901760
      %5927 = vmatpush.msra.mxu0 %v5926
      %v5928 = vand.u32 %v5490, 4294901760
      %v5929 = vsub.f32 %v5490, %v5928
      %v5930 = vand.u32 %v5929, 4294901760
      %5931 = vmatpush.msra.mxu0 %v5930
      %v5932 = vand.u32 %v5488, 4294901760
      %v5933 = vsub.f32 %v5488, %v5932
      %v5934 = vand.u32 %v5933, 4294901760
      %5935 = vmatpush.msra.mxu0 %v5934
      %v5936 = vand.u32 %v5486, 4294901760
      %v5937 = vsub.f32 %v5486, %v5936
      %v5938 = vand.u32 %v5937, 4294901760
      %5939 = vmatpush.msra.mxu0 %v5938
      %v5940 = vand.u32 %v5484, 4294901760
      %v5941 = vsub.f32 %v5484, %v5940
      %v5942 = vand.u32 %v5941, 4294901760
      %5943 = vmatpush.msra.mxu0 %v5942
      %v5944 = vand.u32 %v5502, 4294901760
      %5945 = vmatmul.f32.gmra.mxu0 %v5944
      %v5946 = vpop.f32.mrf.mxu0
      %v5947 = vadd.f32 %v5902, %v5946
      %5948 = vdwg.mxu0
      %5949 = vmatpush.msra.mxu0 0.0
      %5950 = vmatpush.msra.mxu0 0.0
      %5951 = vmatpush.msra.mxu0 0.0
      %5952 = vmatpush.msra.mxu0 0.0
      %5953 = vmatpush.msra.mxu0 0.0
      %5954 = vmatpush.msra.mxu0 0.0
      %5955 = vmatpush.msra.mxu0 0.0
      %5956 = vmatpush.msra.mxu0 0.0
      %v5957 = vand.u32 %v5498, 4294901760
      %5958 = vmatpush.msra.mxu0 %v5957
      %v5959 = vand.u32 %v5496, 4294901760
      %5960 = vmatpush.msra.mxu0 %v5959
      %v5961 = vand.u32 %v5494, 4294901760
      %5962 = vmatpush.msra.mxu0 %v5961
      %v5963 = vand.u32 %v5492, 4294901760
      %5964 = vmatpush.msra.mxu0 %v5963
      %v5965 = vand.u32 %v5490, 4294901760
      %5966 = vmatpush.msra.mxu0 %v5965
      %v5967 = vand.u32 %v5488, 4294901760
      %5968 = vmatpush.msra.mxu0 %v5967
      %v5969 = vand.u32 %v5486, 4294901760
      %5970 = vmatpush.msra.mxu0 %v5969
      %v5971 = vand.u32 %v5484, 4294901760
      %5972 = vmatpush.msra.mxu0 %v5971
      %v5973 = vand.u32 %v5502, 4294901760
      %5974 = vmatmul.f32.gmra.mxu0 %v5973
      %v5975 = vpop.f32.mrf.mxu0
      %v5976 = vadd.f32 %v5947, %v5975
      %5977 = vdwg.mxu0
      %5978 = vxpose.xlu0.b32.start [1/16] %v5739, 128
      %5979 = vxpose.xlu0.b32.cont [2/16] 0.0, 128
      %5980 = vxpose.xlu0.b32.cont [3/16] 0.0, 128
      %5981 = vxpose.xlu0.b32.cont [4/16] 0.0, 128
      %5982 = vxpose.xlu0.b32.cont [5/16] 0.0, 128
      %5983 = vxpose.xlu0.b32.cont [6/16] 0.0, 128
      %5984 = vxpose.xlu0.b32.cont [7/16] 0.0, 128
      %5985 = vxpose.xlu0.b32.cont [8/16] 0.0, 128
      %5986 = vxpose.xlu0.b32.cont [9/16] 0.0, 128
      %5987 = vxpose.xlu0.b32.cont [10/16] 0.0, 128
      %5988 = vxpose.xlu0.b32.cont [11/16] 0.0, 128
      %5989 = vxpose.xlu0.b32.cont [12/16] 0.0, 128
      %5990 = vxpose.xlu0.b32.cont [13/16] 0.0, 128
      %5991 = vxpose.xlu0.b32.cont [14/16] 0.0, 128
      %5992 = vxpose.xlu0.b32.cont [15/16] 0.0, 128
      %5993 = vxpose.xlu0.b32.end [16/16] 0.0, 128
      %v5994 = vpop.trf.xlu0
      %v5995 = vpop.trf.xlu0
      %v5996 = vpop.trf.xlu0
      %v5997 = vpop.trf.xlu0
      %v5998 = vpop.trf.xlu0
      %v5999 = vpop.trf.xlu0
      %v6000 = vpop.trf.xlu0
      %v6001 = vpop.trf.xlu0
      %v6002 = vpop.trf.xlu0
      %v6003 = vpop.trf.xlu0
      %v6004 = vpop.trf.xlu0
      %v6005 = vpop.trf.xlu0
      %v6006 = vpop.trf.xlu0
      %v6007 = vpop.trf.xlu0
      %v6008 = vpop.trf.xlu0
      %v6009 = vpop.trf.xlu0
      %6010 = vxpose.xlu0.b32.start [1/16] %v5976, 128
      %6011 = vxpose.xlu0.b32.cont [2/16] 0.0, 128
      %6012 = vxpose.xlu0.b32.cont [3/16] 0.0, 128
      %6013 = vxpose.xlu0.b32.cont [4/16] 0.0, 128
      %6014 = vxpose.xlu0.b32.cont [5/16] 0.0, 128
      %6015 = vxpose.xlu0.b32.cont [6/16] 0.0, 128
      %6016 = vxpose.xlu0.b32.cont [7/16] 0.0, 128
      %6017 = vxpose.xlu0.b32.cont [8/16] 0.0, 128
      %6018 = vxpose.xlu0.b32.cont [9/16] 0.0, 128
      %6019 = vxpose.xlu0.b32.cont [10/16] 0.0, 128
      %6020 = vxpose.xlu0.b32.cont [11/16] 0.0, 128
      %6021 = vxpose.xlu0.b32.cont [12/16] 0.0, 128
      %6022 = vxpose.xlu0.b32.cont [13/16] 0.0, 128
      %6023 = vxpose.xlu0.b32.cont [14/16] 0.0, 128
      %6024 = vxpose.xlu0.b32.cont [15/16] 0.0, 128
      %6025 = vxpose.xlu0.b32.end [16/16] 0.0, 128
      %v6026 = vpop.trf.xlu0
      %v6027 = vpop.trf.xlu0
      %v6028 = vpop.trf.xlu0
      %v6029 = vpop.trf.xlu0
      %v6030 = vpop.trf.xlu0
      %v6031 = vpop.trf.xlu0
      %v6032 = vpop.trf.xlu0
      %v6033 = vpop.trf.xlu0
      %v6034 = vpop.trf.xlu0
      %v6035 = vpop.trf.xlu0
      %v6036 = vpop.trf.xlu0
      %v6037 = vpop.trf.xlu0
      %v6038 = vpop.trf.xlu0
      %v6039 = vpop.trf.xlu0
      %v6040 = vpop.trf.xlu0
      %v6041 = vpop.trf.xlu0
      %v6042 = vld [vmem:[%s3] sm:$0x1]
      %v6044 = vperm.slane %v6042, 0
      %v6046 = vadd.f32 %v5994, %v6044
      %v6047 = vadd.f32 %v5995, %v6044
      %v6048 = vadd.f32 %v5996, %v6044
      %v6049 = vadd.f32 %v5997, %v6044
      %v6050 = vadd.f32 %v5998, %v6044
      %v6051 = vadd.f32 %v5999, %v6044
      %v6052 = vadd.f32 %v6000, %v6044
      %v6053 = vadd.f32 %v6001, %v6044
      %v6054 = vadd.f32 %v6002, %v6044
      %v6055 = vadd.f32 %v6003, %v6044
      %v6056 = vadd.f32 %v6004, %v6044
      %v6057 = vadd.f32 %v6005, %v6044
      %v6058 = vadd.f32 %v6006, %v6044
      %v6059 = vadd.f32 %v6007, %v6044
      %v6060 = vadd.f32 %v6008, %v6044
      %v6061 = vadd.f32 %v6009, %v6044
      %v6062 = vadd.f32 %v6026, %v6044
      %v6063 = vadd.f32 %v6027, %v6044
      %v6064 = vadd.f32 %v6028, %v6044
      %v6065 = vadd.f32 %v6029, %v6044
      %v6066 = vadd.f32 %v6030, %v6044
      %v6067 = vadd.f32 %v6031, %v6044
      %v6068 = vadd.f32 %v6032, %v6044
      %v6069 = vadd.f32 %v6033, %v6044
      %v6070 = vadd.f32 %v6034, %v6044
      %v6071 = vadd.f32 %v6035, %v6044
      %v6072 = vadd.f32 %v6036, %v6044
      %v6073 = vadd.f32 %v6037, %v6044
      %v6074 = vadd.f32 %v6038, %v6044
      %v6075 = vadd.f32 %v6039, %v6044
      %v6076 = vadd.f32 %v6040, %v6044
      %v6077 = vadd.f32 %v6041, %v6044
      %vm6078 = vcmask 56320
      %6079 = vst.msk [vmem:[%s199] sm:$0xff] %vm6078, %v6046
      %6080 = vst.msk [vmem:[%s199 + $0x8] sm:$0xff] %vm6078, %v6047
      %6081 = vst.msk [vmem:[%s199 + $0x10] sm:$0xff] %vm6078, %v6048
      %6082 = vst.msk [vmem:[%s199 + $0x18] sm:$0xff] %vm6078, %v6049
      %6083 = vst.msk [vmem:[%s199 + $0x20] sm:$0xff] %vm6078, %v6050
      %6084 = vst.msk [vmem:[%s199 + $0x28] sm:$0xff] %vm6078, %v6051
      %6085 = vst.msk [vmem:[%s199 + $0x30] sm:$0xff] %vm6078, %v6052
      %6086 = vst.msk [vmem:[%s199 + $0x38] sm:$0xff] %vm6078, %v6053
      %6087 = vst.msk [vmem:[%s199 + $0x40] sm:$0xff] %vm6078, %v6054
      %6088 = vst.msk [vmem:[%s199 + $0x48] sm:$0xff] %vm6078, %v6055
      %6089 = vst.msk [vmem:[%s199 + $0x50] sm:$0xff] %vm6078, %v6056
      %6090 = vst.msk [vmem:[%s199 + $0x58] sm:$0xff] %vm6078, %v6057
      %6091 = vst.msk [vmem:[%s199 + $0x60] sm:$0xff] %vm6078, %v6058
      %6092 = vst.msk [vmem:[%s199 + $0x68] sm:$0xff] %vm6078, %v6059
      %6093 = vst.msk [vmem:[%s199 + $0x70] sm:$0xff] %vm6078, %v6060
      %6094 = vst.msk [vmem:[%s199 + $0x78] sm:$0xff] %vm6078, %v6061
      %6095 = vst.msk [vmem:[%s199 + $0x80] sm:$0xff] %vm6078, %v6062
      %6096 = vst.msk [vmem:[%s199 + $0x88] sm:$0xff] %vm6078, %v6063
      %6097 = vst.msk [vmem:[%s199 + $0x90] sm:$0xff] %vm6078, %v6064
      %6098 = vst.msk [vmem:[%s199 + $0x98] sm:$0xff] %vm6078, %v6065
      %6099 = vst.msk [vmem:[%s199 + $0xa0] sm:$0xff] %vm6078, %v6066
      %6100 = vst.msk [vmem:[%s199 + $0xa8] sm:$0xff] %vm6078, %v6067
      %6101 = vst.msk [vmem:[%s199 + $0xb0] sm:$0xff] %vm6078, %v6068
      %6102 = vst.msk [vmem:[%s199 + $0xb8] sm:$0xff] %vm6078, %v6069
      %6103 = vst.msk [vmem:[%s199 + $0xc0] sm:$0xff] %vm6078, %v6070
      %6104 = vst.msk [vmem:[%s199 + $0xc8] sm:$0xff] %vm6078, %v6071
      %6105 = vst.msk [vmem:[%s199 + $0xd0] sm:$0xff] %vm6078, %v6072
      %6106 = vst.msk [vmem:[%s199 + $0xd8] sm:$0xff] %vm6078, %v6073
      %6107 = vst.msk [vmem:[%s199 + $0xe0] sm:$0xff] %vm6078, %v6074
      %6108 = vst.msk [vmem:[%s199 + $0xe8] sm:$0xff] %vm6078, %v6075
      %6109 = vst.msk [vmem:[%s199 + $0xf0] sm:$0xff] %vm6078, %v6076
      %6110 = vst.msk [vmem:[%s199 + $0xf8] sm:$0xff] %vm6078, %v6077
      %s6111 = smul.u32 32, %s15
      %p6112 = scmp.lt.s32.totalorder %s6111, 63
      %s6113 = scalar_select %p6112, %s6111, 63
      %s6114 = smul.addr %s6113, 8
      %s6115 = scalar_lea.vmem %s4, %s6114
      // Predicated region
      $region37: #{tpu_custom_call.1} parent=35 // pred_check
        %p6116 = pneg %p122
      $region38: #{tpu_custom_call.1} parent=35 // pred_check_branch
        %6118 = sbr.rel (%p6116) target = $region40
      $region39: #{tpu_custom_call.1} parent=35 // pred_region
        %s6119 = smul.u32 32, %s15
      $region40: #{tpu_custom_call.1} parent=35 // pred_fallthru
        _
    $region36: #{tpu_custom_call.1} parent=5 // pred_fallthru
      _
    %p6120 = scmp.le.s32.totalorder 2, %s10
    // Predicated region
    $region41: #{tpu_custom_call.1} parent=5 // pred_check
      %p6121 = pneg %p6120
    $region42: #{tpu_custom_call.1} parent=5 // pred_check_branch
      %6123 = sbr.rel (%p6121) target = $region44
    $region43: #{tpu_custom_call.1} parent=5 // pred_region
      %s6124 = ssub.s32 %s10, 2
      // Predicated region
      $region45: #{tpu_custom_call.1} parent=43 // pred_check
        %p6125 = pneg %p128
      $region46: #{tpu_custom_call.1} parent=43 // pred_check_branch
        %6127 = sbr.rel (%p6125) target = $region48
      $region47: #{tpu_custom_call.1} parent=43 // pred_region
        %s6128 = smul.u32 32, %s16
        %p6129 = scmp.lt.s32.totalorder %s6128, 63
        %s6130 = scalar_select %p6129, %s6128, 63
        %s6131 = smul.addr %s6130, 8
        %s6132 = scalar_lea.vmem %s4, %s6131
      $region48: #{tpu_custom_call.1} parent=43 // pred_fallthru
        _
    $region44: #{tpu_custom_call.1} parent=5 // pred_fallthru
      _
  $region6: #{tpu_custom_call.1} parent=0 // loop_footer
    %s14 = sadd.s32 1, %s10
  $region7: #{tpu_custom_call.1} parent=0 // loop_footer_branch
    %9 = sbr.rel target = $region3
  $region8: #{tpu_custom_call.1} parent=0 // loop_exit
    _

</llo_original>
